<compile_context>
chip_gen: v6e
topology: v6e:2x2x1
jax: 0.10.0
libtpu: 0.0.40
codegen_flags: <defaults>
</compile_context>

<pallas_src>
import jax
import jax.numpy as jnp
from jax.experimental import pallas as pl
from jax.experimental.pallas import tpu as pltpu


# ----------------------------------------------------------------------------
# Host-side helpers (cheap XLA glue on the raw input / static weights)
# ----------------------------------------------------------------------------
def _conv2d_size_out(size, kernel_size=3, stride=2):
    return (size - (kernel_size - 1) - 1) // stride + 1


def _im2col(x_nhwc, k, stride):
    """Patch matrix (n*oh*ow, k*k*c), rows ordered (n, oh, ow), cols (di, dj, c)."""
    n, h, w, c = x_nhwc.shape
    oh = (h - k) // stride + 1
    ow = (w - k) // stride + 1
    cols = []
    for di in range(k):
        for dj in range(k):
            cols.append(
                x_nhwc[:, di:di + stride * (oh - 1) + 1:stride,
                       dj:dj + stride * (ow - 1) + 1:stride, :])
    patches = jnp.concatenate(cols, axis=-1)            # (n, oh, ow, k*k*c)
    return patches.reshape(n * oh * ow, k * k * c), oh, ow


# ----------------------------------------------------------------------------
# Fused Pallas kernel: conv1/2/3 (+ folded BN, ReLU) + Linear head, all in VMEM
# ----------------------------------------------------------------------------
def _build_fused_kernel(dims):
    n_b, oh1, ow1, c1, oh2, ow2, c2, oh3, ow3, c3 = dims

    def kernel(p1_ref, w1_ref, b1_ref, w2_ref, b2_ref, w3_ref, b3_ref,
               wh_ref, bh_ref, o_ref,
               act1_ref, p2_ref, act2_ref, p3_ref, flat_ref):
        f32 = jnp.float32

        # ---- conv1 + folded BN1 + ReLU (patches precomputed on host) -------
        a1 = jnp.dot(p1_ref[...], w1_ref[...], preferred_element_type=f32)
        act1_ref[...] = jnp.maximum(a1 + b1_ref[...], 0.0)

        # ---- in-VMEM im2col for conv2 (static contiguous copies only) ------
        for n in range(n_b):
            for oi in range(oh2):
                for oj in range(ow2):
                    r = (n * oh2 + oi) * ow2 + oj
                    for di in range(3):
                        for dj in range(3):
                            s = (n * oh1 + 2 * oi + di) * ow1 + (2 * oj + dj)
                            c = (di * 3 + dj) * c1
                            p2_ref[r:r + 1, c:c + c1] = act1_ref[s:s + 1, :]

        a2 = jnp.dot(p2_ref[...].astype(jnp.bfloat16), w2_ref[...],
                     preferred_element_type=f32)
        act2_ref[...] = jnp.maximum(a2 + b2_ref[...], 0.0)

        # ---- in-VMEM im2col for conv3 ---------------------------------------
        for n in range(n_b):
            for oi in range(oh3):
                for oj in range(ow3):
                    r = (n * oh3 + oi) * ow3 + oj
                    for di in range(3):
                        for dj in range(3):
                            s = (n * oh2 + 2 * oi + di) * ow2 + (2 * oj + dj)
                            c = (di * 3 + dj) * c2
                            p3_ref[r:r + 1, c:c + c2] = act2_ref[s:s + 1, :]

        a3 = jnp.dot(p3_ref[...].astype(jnp.bfloat16), w3_ref[...],
                     preferred_element_type=f32)
        a3 = jnp.maximum(a3 + b3_ref[...], 0.0)         # (n_b*oh3*ow3, c3)

        # ---- flatten in HWC order (head weight pre-permuted to match) ------
        sp3 = oh3 * ow3
        for n in range(n_b):
            for p in range(sp3):
                s = n * sp3 + p
                flat_ref[n:n + 1, p * c3:(p + 1) * c3] = a3[s:s + 1, :]

        # ---- Linear head ----------------------------------------------------
        head = jnp.dot(flat_ref[...].astype(jnp.bfloat16), wh_ref[...],
                       preferred_element_type=f32)
        o_ref[...] = (head + bh_ref[...]).astype(o_ref.dtype)

    return kernel


# ----------------------------------------------------------------------------
# DCQN parameters and forward
# ----------------------------------------------------------------------------
def dcqn_init(key, h, w, outputs, gray=False):
    channels = 1 if gray else 3

    def conv_params(k, cin, cout, ksize=3):
        kw_, kb_ = jax.random.split(k)
        bound = 1.0 / float(cin * ksize * ksize) ** 0.5
        wt = jax.random.uniform(kw_, (cout, cin, ksize, ksize), jnp.float32,
                                -bound, bound)
        bs = jax.random.uniform(kb_, (cout,), jnp.float32, -bound, bound)
        return wt, bs

    def bn_params(c):
        return (jnp.ones((c,), jnp.float32),   # gamma
                jnp.zeros((c,), jnp.float32),  # beta
                jnp.zeros((c,), jnp.float32),  # running_mean
                jnp.ones((c,), jnp.float32))   # running_var

    k1, k2, k3, k4 = jax.random.split(key, 4)
    convh = _conv2d_size_out(_conv2d_size_out(_conv2d_size_out(h)))
    convw = _conv2d_size_out(_conv2d_size_out(_conv2d_size_out(w)))
    linear_input_size = convh * convw * 32

    kw_, kb_ = jax.random.split(k4)
    bound = 1.0 / float(linear_input_size) ** 0.5
    head_w = jax.random.uniform(kw_, (outputs, linear_input_size), jnp.float32,
                                -bound, bound)
    head_b = jax.random.uniform(kb_, (outputs,), jnp.float32, -bound, bound)

    return {
        "conv1": conv_params(k1, channels, 16),
        "bn1": bn_params(16),
        "conv2": conv_params(k2, 16, 32),
        "bn2": bn_params(32),
        "conv3": conv_params(k3, 32, 32),
        "bn3": bn_params(32),
        "head": (head_w, head_b),
    }


def dcqn_forward(params, x_nchw, eps=1e-5):
    n_b = x_nchw.shape[0]

    # ------------------ host-side prep (tiny XLA glue) -----------------------
    x = jnp.transpose(x_nchw, (0, 2, 3, 1)).astype(jnp.float32)   # NCHW -> NHWC
    patches1, oh1, ow1 = _im2col(x, 3, 2)
    patches1 = patches1.astype(jnp.bfloat16)

    def fold(conv, bn):
        """Fold conv bias + inference-mode BN into (bf16 weight, f32 bias)."""
        wt, bs = conv
        gamma, beta, mean, var = bn
        cout, cin, kh, kw = wt.shape
        w2d = jnp.transpose(wt, (2, 3, 1, 0)).reshape(kh * kw * cin, cout)
        s = gamma / jnp.sqrt(var + eps)
        w_f = (w2d * s[None, :]).astype(jnp.bfloat16)
        b_f = ((bs - mean) * s + beta).reshape(1, cout).astype(jnp.float32)
        return w_f, b_f

    w1, b1 = fold(params["conv1"], params["bn1"])
    w2, b2 = fold(params["conv2"], params["bn2"])
    w3, b3 = fold(params["conv3"], params["bn3"])

    c1, c2, c3 = w1.shape[1], w2.shape[1], w3.shape[1]
    oh2, ow2 = _conv2d_size_out(oh1), _conv2d_size_out(ow1)
    oh3, ow3 = _conv2d_size_out(oh2), _conv2d_size_out(ow2)

    head_w, head_b = params["head"]
    n_out = head_w.shape[0]
    # torch.flatten order is (c, oi, oj); kernel produces (oi, oj, c) -> permute
    # the head weight rows once on the host (identity when oh3*ow3 == 1).
    perm = [c * oh3 * ow3 + oi * ow3 + oj
            for oi in range(oh3) for oj in range(ow3) for c in range(c3)]
    wh = head_w.T[jnp.asarray(perm, dtype=jnp.int32), :].astype(jnp.bfloat16)
    bh = head_b.reshape(1, n_out).astype(jnp.float32)

    args = (patches1, w1, b1, w2, b2, w3, b3, wh, bh)
    kernel = _build_fused_kernel(
        (n_b, oh1, ow1, c1, oh2, ow2, c2, oh3, ow3, c3))

    scratch = [
        pltpu.VMEM((n_b * oh1 * ow1, c1), jnp.float32),        # act1
        pltpu.VMEM((n_b * oh2 * ow2, 9 * c1), jnp.float32),    # conv2 patches
        pltpu.VMEM((n_b * oh2 * ow2, c2), jnp.float32),        # act2
        pltpu.VMEM((n_b * oh3 * ow3, 9 * c2), jnp.float32),    # conv3 patches
        pltpu.VMEM((n_b, oh3 * ow3 * c3), jnp.float32),        # flattened feats
    ]

    return pl.pallas_call(
        kernel,
        out_shape=jax.ShapeDtypeStruct((n_b, n_out), jnp.float32),
        grid=(1,),
        in_specs=[pl.BlockSpec(a.shape, lambda i: (0, 0)) for a in args],
        out_specs=pl.BlockSpec((n_b, n_out), lambda i: (0, 0)),
        scratch_shapes=scratch,
        compiler_params=pltpu.CompilerParams(
            dimension_semantics=("arbitrary",)),
    )(*args)


if __name__ == "__main__":
    key = jax.random.PRNGKey(0)
    pkey, xkey = jax.random.split(key)

    h, w, outputs, batch = 16, 16, 4, 2
    params = dcqn_init(pkey, h, w, outputs, gray=False)

    x = jax.random.normal(xkey, (batch, 3, h, w), dtype=jnp.float32)  # NCHW

    fwd = jax.jit(dcqn_forward)
    out = jax.block_until_ready(fwd(params, x))

    assert out.shape == (batch, outputs), out.shape
    assert bool(jnp.all(jnp.isfinite(out)))
    print("KERNEL_OK")
</pallas_src>

<mosaic_0001>
module attributes {stable_mosaic.version = 11 : i64} {
  func.func @kernel(%arg0: i32, %arg1: memref<98x27xbf16, #tpu.memory_space<vmem>>, %arg2: memref<27x16xbf16, #tpu.memory_space<vmem>>, %arg3: memref<1x16xf32, #tpu.memory_space<vmem>>, %arg4: memref<144x32xbf16, #tpu.memory_space<vmem>>, %arg5: memref<1x32xf32, #tpu.memory_space<vmem>>, %arg6: memref<288x32xbf16, #tpu.memory_space<vmem>>, %arg7: memref<1x32xf32, #tpu.memory_space<vmem>>, %arg8: memref<32x4xbf16, #tpu.memory_space<vmem>>, %arg9: memref<1x4xf32, #tpu.memory_space<vmem>>, %arg10: memref<2x4xf32, #tpu.memory_space<vmem>>, %arg11: memref<98x16xf32, #tpu.memory_space<vmem>>, %arg12: memref<18x144xf32, #tpu.memory_space<vmem>>, %arg13: memref<18x32xf32, #tpu.memory_space<vmem>>, %arg14: memref<2x288xf32, #tpu.memory_space<vmem>>, %arg15: memref<2x32xf32, #tpu.memory_space<vmem>>) attributes {dimension_semantics = [#tpu.dimension_semantics<arbitrary>], iteration_bounds = array<i64: 1>, scalar_prefetch = 0 : i64, scratch_operands = 5 : i64, tpu.core_type = #tpu.core_type<tc>, window_params = [{pipeline_mode = #tpu.pipeline_mode<synchronous>, transform_indices = @transform_0, window_bounds = array<i64: 98, 27>}, {pipeline_mode = #tpu.pipeline_mode<synchronous>, transform_indices = @transform_1, window_bounds = array<i64: 27, 16>}, {pipeline_mode = #tpu.pipeline_mode<synchronous>, transform_indices = @transform_2, window_bounds = array<i64: 1, 16>}, {pipeline_mode = #tpu.pipeline_mode<synchronous>, transform_indices = @transform_3, window_bounds = array<i64: 144, 32>}, {pipeline_mode = #tpu.pipeline_mode<synchronous>, transform_indices = @transform_4, window_bounds = array<i64: 1, 32>}, {pipeline_mode = #tpu.pipeline_mode<synchronous>, transform_indices = @transform_5, window_bounds = array<i64: 288, 32>}, {pipeline_mode = #tpu.pipeline_mode<synchronous>, transform_indices = @transform_6, window_bounds = array<i64: 1, 32>}, {pipeline_mode = #tpu.pipeline_mode<synchronous>, transform_indices = @transform_7, window_bounds = array<i64: 32, 4>}, {pipeline_mode = #tpu.pipeline_mode<synchronous>, transform_indices = @transform_8, window_bounds = array<i64: 1, 4>}, {pipeline_mode = #tpu.pipeline_mode<synchronous>, transform_indices = @transform_9, window_bounds = array<i64: 2, 4>}]} {
    %c0 = arith.constant 0 : index
    %c0_0 = arith.constant 0 : index
    %0 = vector.load %arg1[%c0, %c0_0] : memref<98x27xbf16, #tpu.memory_space<vmem>>, vector<98x27xbf16>
    %c0_1 = arith.constant 0 : index
    %c0_2 = arith.constant 0 : index
    %1 = vector.load %arg2[%c0_1, %c0_2] : memref<27x16xbf16, #tpu.memory_space<vmem>>, vector<27x16xbf16>
    %cst = arith.constant dense<0.000000e+00> : vector<98x16xf32>
    %2 = tpu.matmul %0, %1, %cst {dimension_numbers = #tpu.dot_dimension_numbers<[1], [0], [0], [1], [0, 0, 1, 1], [], []>} : vector<98x27xbf16>, vector<27x16xbf16>, vector<98x16xf32> -> vector<98x16xf32>
    %c0_3 = arith.constant 0 : index
    %c0_4 = arith.constant 0 : index
    %3 = vector.load %arg3[%c0_3, %c0_4] : memref<1x16xf32, #tpu.memory_space<vmem>>, vector<1x16xf32>
    %4 = vector.broadcast %3 : vector<1x16xf32> to vector<98x16xf32>
    %5 = arith.addf %2, %4 : vector<98x16xf32>
    %cst_5 = arith.constant 0.000000e+00 : f32
    %6 = vector.broadcast %cst_5 : f32 to vector<98x16xf32>
    %7 = arith.maximumf %5, %6 : vector<98x16xf32>
    %c0_6 = arith.constant 0 : index
    %c0_7 = arith.constant 0 : index
    %8 = vector.load %arg11[%c0_6, %c0_7] : memref<98x16xf32, #tpu.memory_space<vmem>>, vector<98x16xf32>
    tpu.vector_store %arg11[%c0_6, %c0_7], %7 {strides = array<i32>} : memref<98x16xf32, #tpu.memory_space<vmem>>, vector<98x16xf32>,
    %c0_8 = arith.constant 0 : index
    %c0_9 = arith.constant 0 : index
    %9 = vector.load %arg11[%c0_8, %c0_9] : memref<98x16xf32, #tpu.memory_space<vmem>>, vector<1x16xf32>
    %c0_10 = arith.constant 0 : index
    %c0_11 = arith.constant 0 : index
    %10 = vector.load %arg12[%c0_10, %c0_11] : memref<18x144xf32, #tpu.memory_space<vmem>>, vector<1x16xf32>
    tpu.vector_store %arg12[%c0_10, %c0_11], %9 {strides = array<i32>} : memref<18x144xf32, #tpu.memory_space<vmem>>, vector<1x16xf32>,
    %c1 = arith.constant 1 : index
    %c0_12 = arith.constant 0 : index
    %11 = vector.load %arg11[%c1, %c0_12] : memref<98x16xf32, #tpu.memory_space<vmem>>, vector<1x16xf32>
    %c0_13 = arith.constant 0 : index
    %c16 = arith.constant 16 : index
    %12 = vector.load %arg12[%c0_13, %c16] : memref<18x144xf32, #tpu.memory_space<vmem>>, vector<1x16xf32>
    tpu.vector_store %arg12[%c0_13, %c16], %11 {strides = array<i32>} : memref<18x144xf32, #tpu.memory_space<vmem>>, vector<1x16xf32>,
    %c2 = arith.constant 2 : index
    %c0_14 = arith.constant 0 : index
    %13 = vector.load %arg11[%c2, %c0_14] : memref<98x16xf32, #tpu.memory_space<vmem>>, vector<1x16xf32>
    %c0_15 = arith.constant 0 : index
    %c32 = arith.constant 32 : index
    %14 = vector.load %arg12[%c0_15, %c32] : memref<18x144xf32, #tpu.memory_space<vmem>>, vector<1x16xf32>
    tpu.vector_store %arg12[%c0_15, %c32], %13 {strides = array<i32>} : memref<18x144xf32, #tpu.memory_space<vmem>>, vector<1x16xf32>,
    %c7 = arith.constant 7 : index
    %c0_16 = arith.constant 0 : index
    %15 = vector.load %arg11[%c7, %c0_16] : memref<98x16xf32, #tpu.memory_space<vmem>>, vector<1x16xf32>
    %c0_17 = arith.constant 0 : index
    %c48 = arith.constant 48 : index
    %16 = vector.load %arg12[%c0_17, %c48] : memref<18x144xf32, #tpu.memory_space<vmem>>, vector<1x16xf32>
    tpu.vector_store %arg12[%c0_17, %c48], %15 {strides = array<i32>} : memref<18x144xf32, #tpu.memory_space<vmem>>, vector<1x16xf32>,
    %c8 = arith.constant 8 : index
    %c0_18 = arith.constant 0 : index
    %17 = vector.load %arg11[%c8, %c0_18] : memref<98x16xf32, #tpu.memory_space<vmem>>, vector<1x16xf32>
    %c0_19 = arith.constant 0 : index
    %c64 = arith.constant 64 : index
    %18 = vector.load %arg12[%c0_19, %c64] : memref<18x144xf32, #tpu.memory_space<vmem>>, vector<1x16xf32>
    tpu.vector_store %arg12[%c0_19, %c64], %17 {strides = array<i32>} : memref<18x144xf32, #tpu.memory_space<vmem>>, vector<1x16xf32>,
    %c9 = arith.constant 9 : index
    %c0_20 = arith.constant 0 : index
    %19 = vector.load %arg11[%c9, %c0_20] : memref<98x16xf32, #tpu.memory_space<vmem>>, vector<1x16xf32>
    %c0_21 = arith.constant 0 : index
    %c80 = arith.constant 80 : index
    %20 = vector.load %arg12[%c0_21, %c80] : memref<18x144xf32, #tpu.memory_space<vmem>>, vector<1x16xf32>
    tpu.vector_store %arg12[%c0_21, %c80], %19 {strides = array<i32>} : memref<18x144xf32, #tpu.memory_space<vmem>>, vector<1x16xf32>,
    %c14 = arith.constant 14 : index
    %c0_22 = arith.constant 0 : index
    %21 = vector.load %arg11[%c14, %c0_22] : memref<98x16xf32, #tpu.memory_space<vmem>>, vector<1x16xf32>
    %c0_23 = arith.constant 0 : index
    %c96 = arith.constant 96 : index
    %22 = vector.load %arg12[%c0_23, %c96] : memref<18x144xf32, #tpu.memory_space<vmem>>, vector<1x16xf32>
    tpu.vector_store %arg12[%c0_23, %c96], %21 {strides = array<i32>} : memref<18x144xf32, #tpu.memory_space<vmem>>, vector<1x16xf32>,
    %c15 = arith.constant 15 : index
    %c0_24 = arith.constant 0 : index
    %23 = vector.load %arg11[%c15, %c0_24] : memref<98x16xf32, #tpu.memory_space<vmem>>, vector<1x16xf32>
    %c0_25 = arith.constant 0 : index
    %c112 = arith.constant 112 : index
    %24 = vector.load %arg12[%c0_25, %c112] : memref<18x144xf32, #tpu.memory_space<vmem>>, vector<1x16xf32>
    tpu.vector_store %arg12[%c0_25, %c112], %23 {strides = array<i32>} : memref<18x144xf32, #tpu.memory_space<vmem>>, vector<1x16xf32>,
    %c16_26 = arith.constant 16 : index
    %c0_27 = arith.constant 0 : index
    %25 = vector.load %arg11[%c16_26, %c0_27] : memref<98x16xf32, #tpu.memory_space<vmem>>, vector<1x16xf32>
    %c0_28 = arith.constant 0 : index
    %c128 = arith.constant 128 : index
    %26 = vector.load %arg12[%c0_28, %c128] : memref<18x144xf32, #tpu.memory_space<vmem>>, vector<1x16xf32>
    tpu.vector_store %arg12[%c0_28, %c128], %25 {strides = array<i32>} : memref<18x144xf32, #tpu.memory_space<vmem>>, vector<1x16xf32>,
    %c2_29 = arith.constant 2 : index
    %c0_30 = arith.constant 0 : index
    %27 = vector.load %arg11[%c2_29, %c0_30] : memref<98x16xf32, #tpu.memory_space<vmem>>, vector<1x16xf32>
    %c1_31 = arith.constant 1 : index
    %c0_32 = arith.constant 0 : index
    %28 = vector.load %arg12[%c1_31, %c0_32] : memref<18x144xf32, #tpu.memory_space<vmem>>, vector<1x16xf32>
    tpu.vector_store %arg12[%c1_31, %c0_32], %27 {strides = array<i32>} : memref<18x144xf32, #tpu.memory_space<vmem>>, vector<1x16xf32>,
    %c3 = arith.constant 3 : index
    %c0_33 = arith.constant 0 : index
    %29 = vector.load %arg11[%c3, %c0_33] : memref<98x16xf32, #tpu.memory_space<vmem>>, vector<1x16xf32>
    %c1_34 = arith.constant 1 : index
    %c16_35 = arith.constant 16 : index
    %30 = vector.load %arg12[%c1_34, %c16_35] : memref<18x144xf32, #tpu.memory_space<vmem>>, vector<1x16xf32>
    tpu.vector_store %arg12[%c1_34, %c16_35], %29 {strides = array<i32>} : memref<18x144xf32, #tpu.memory_space<vmem>>, vector<1x16xf32>,
    %c4 = arith.constant 4 : index
    %c0_36 = arith.constant 0 : index
    %31 = vector.load %arg11[%c4, %c0_36] : memref<98x16xf32, #tpu.memory_space<vmem>>, vector<1x16xf32>
    %c1_37 = arith.constant 1 : index
    %c32_38 = arith.constant 32 : index
    %32 = vector.load %arg12[%c1_37, %c32_38] : memref<18x144xf32, #tpu.memory_space<vmem>>, vector<1x16xf32>
    tpu.vector_store %arg12[%c1_37, %c32_38], %31 {strides = array<i32>} : memref<18x144xf32, #tpu.memory_space<vmem>>, vector<1x16xf32>,
    %c9_39 = arith.constant 9 : index
    %c0_40 = arith.constant 0 : index
    %33 = vector.load %arg11[%c9_39, %c0_40] : memref<98x16xf32, #tpu.memory_space<vmem>>, vector<1x16xf32>
    %c1_41 = arith.constant 1 : index
    %c48_42 = arith.constant 48 : index
    %34 = vector.load %arg12[%c1_41, %c48_42] : memref<18x144xf32, #tpu.memory_space<vmem>>, vector<1x16xf32>
    tpu.vector_store %arg12[%c1_41, %c48_42], %33 {strides = array<i32>} : memref<18x144xf32, #tpu.memory_space<vmem>>, vector<1x16xf32>,
    %c10 = arith.constant 10 : index
    %c0_43 = arith.constant 0 : index
    %35 = vector.load %arg11[%c10, %c0_43] : memref<98x16xf32, #tpu.memory_space<vmem>>, vector<1x16xf32>
    %c1_44 = arith.constant 1 : index
    %c64_45 = arith.constant 64 : index
    %36 = vector.load %arg12[%c1_44, %c64_45] : memref<18x144xf32, #tpu.memory_space<vmem>>, vector<1x16xf32>
    tpu.vector_store %arg12[%c1_44, %c64_45], %35 {strides = array<i32>} : memref<18x144xf32, #tpu.memory_space<vmem>>, vector<1x16xf32>,
    %c11 = arith.constant 11 : index
    %c0_46 = arith.constant 0 : index
    %37 = vector.load %arg11[%c11, %c0_46] : memref<98x16xf32, #tpu.memory_space<vmem>>, vector<1x16xf32>
    %c1_47 = arith.constant 1 : index
    %c80_48 = arith.constant 80 : index
    %38 = vector.load %arg12[%c1_47, %c80_48] : memref<18x144xf32, #tpu.memory_space<vmem>>, vector<1x16xf32>
    tpu.vector_store %arg12[%c1_47, %c80_48], %37 {strides = array<i32>} : memref<18x144xf32, #tpu.memory_space<vmem>>, vector<1x16xf32>,
    %c16_49 = arith.constant 16 : index
    %c0_50 = arith.constant 0 : index
    %39 = vector.load %arg11[%c16_49, %c0_50] : memref<98x16xf32, #tpu.memory_space<vmem>>, vector<1x16xf32>
    %c1_51 = arith.constant 1 : index
    %c96_52 = arith.constant 96 : index
    %40 = vector.load %arg12[%c1_51, %c96_52] : memref<18x144xf32, #tpu.memory_space<vmem>>, vector<1x16xf32>
    tpu.vector_store %arg12[%c1_51, %c96_52], %39 {strides = array<i32>} : memref<18x144xf32, #tpu.memory_space<vmem>>, vector<1x16xf32>,
    %c17 = arith.constant 17 : index
    %c0_53 = arith.constant 0 : index
    %41 = vector.load %arg11[%c17, %c0_53] : memref<98x16xf32, #tpu.memory_space<vmem>>, vector<1x16xf32>
    %c1_54 = arith.constant 1 : index
    %c112_55 = arith.constant 112 : index
    %42 = vector.load %arg12[%c1_54, %c112_55] : memref<18x144xf32, #tpu.memory_space<vmem>>, vector<1x16xf32>
    tpu.vector_store %arg12[%c1_54, %c112_55], %41 {strides = array<i32>} : memref<18x144xf32, #tpu.memory_space<vmem>>, vector<1x16xf32>,
    %c18 = arith.constant 18 : index
    %c0_56 = arith.constant 0 : index
    %43 = vector.load %arg11[%c18, %c0_56] : memref<98x16xf32, #tpu.memory_space<vmem>>, vector<1x16xf32>
    %c1_57 = arith.constant 1 : index
    %c128_58 = arith.constant 128 : index
    %44 = vector.load %arg12[%c1_57, %c128_58] : memref<18x144xf32, #tpu.memory_space<vmem>>, vector<1x16xf32>
    tpu.vector_store %arg12[%c1_57, %c128_58], %43 {strides = array<i32>} : memref<18x144xf32, #tpu.memory_space<vmem>>, vector<1x16xf32>,
    %c4_59 = arith.constant 4 : index
    %c0_60 = arith.constant 0 : index
    %45 = vector.load %arg11[%c4_59, %c0_60] : memref<98x16xf32, #tpu.memory_space<vmem>>, vector<1x16xf32>
    %c2_61 = arith.constant 2 : index
    %c0_62 = arith.constant 0 : index
    %46 = vector.load %arg12[%c2_61, %c0_62] : memref<18x144xf32, #tpu.memory_space<vmem>>, vector<1x16xf32>
    tpu.vector_store %arg12[%c2_61, %c0_62], %45 {strides = array<i32>} : memref<18x144xf32, #tpu.memory_space<vmem>>, vector<1x16xf32>,
    %c5 = arith.constant 5 : index
    %c0_63 = arith.constant 0 : index
    %47 = vector.load %arg11[%c5, %c0_63] : memref<98x16xf32, #tpu.memory_space<vmem>>, vector<1x16xf32>
    %c2_64 = arith.constant 2 : index
    %c16_65 = arith.constant 16 : index
    %48 = vector.load %arg12[%c2_64, %c16_65] : memref<18x144xf32, #tpu.memory_space<vmem>>, vector<1x16xf32>
    tpu.vector_store %arg12[%c2_64, %c16_65], %47 {strides = array<i32>} : memref<18x144xf32, #tpu.memory_space<vmem>>, vector<1x16xf32>,
    %c6 = arith.constant 6 : index
    %c0_66 = arith.constant 0 : index
    %49 = vector.load %arg11[%c6, %c0_66] : memref<98x16xf32, #tpu.memory_space<vmem>>, vector<1x16xf32>
    %c2_67 = arith.constant 2 : index
    %c32_68 = arith.constant 32 : index
    %50 = vector.load %arg12[%c2_67, %c32_68] : memref<18x144xf32, #tpu.memory_space<vmem>>, vector<1x16xf32>
    tpu.vector_store %arg12[%c2_67, %c32_68], %49 {strides = array<i32>} : memref<18x144xf32, #tpu.memory_space<vmem>>, vector<1x16xf32>,
    %c11_69 = arith.constant 11 : index
    %c0_70 = arith.constant 0 : index
    %51 = vector.load %arg11[%c11_69, %c0_70] : memref<98x16xf32, #tpu.memory_space<vmem>>, vector<1x16xf32>
    %c2_71 = arith.constant 2 : index
    %c48_72 = arith.constant 48 : index
    %52 = vector.load %arg12[%c2_71, %c48_72] : memref<18x144xf32, #tpu.memory_space<vmem>>, vector<1x16xf32>
    tpu.vector_store %arg12[%c2_71, %c48_72], %51 {strides = array<i32>} : memref<18x144xf32, #tpu.memory_space<vmem>>, vector<1x16xf32>,
    %c12 = arith.constant 12 : index
    %c0_73 = arith.constant 0 : index
    %53 = vector.load %arg11[%c12, %c0_73] : memref<98x16xf32, #tpu.memory_space<vmem>>, vector<1x16xf32>
    %c2_74 = arith.constant 2 : index
    %c64_75 = arith.constant 64 : index
    %54 = vector.load %arg12[%c2_74, %c64_75] : memref<18x144xf32, #tpu.memory_space<vmem>>, vector<1x16xf32>
    tpu.vector_store %arg12[%c2_74, %c64_75], %53 {strides = array<i32>} : memref<18x144xf32, #tpu.memory_space<vmem>>, vector<1x16xf32>,
    %c13 = arith.constant 13 : index
    %c0_76 = arith.constant 0 : index
    %55 = vector.load %arg11[%c13, %c0_76] : memref<98x16xf32, #tpu.memory_space<vmem>>, vector<1x16xf32>
    %c2_77 = arith.constant 2 : index
    %c80_78 = arith.constant 80 : index
    %56 = vector.load %arg12[%c2_77, %c80_78] : memref<18x144xf32, #tpu.memory_space<vmem>>, vector<1x16xf32>
    tpu.vector_store %arg12[%c2_77, %c80_78], %55 {strides = array<i32>} : memref<18x144xf32, #tpu.memory_space<vmem>>, vector<1x16xf32>,
    %c18_79 = arith.constant 18 : index
    %c0_80 = arith.constant 0 : index
    %57 = vector.load %arg11[%c18_79, %c0_80] : memref<98x16xf32, #tpu.memory_space<vmem>>, vector<1x16xf32>
    %c2_81 = arith.constant 2 : index
    %c96_82 = arith.constant 96 : index
    %58 = vector.load %arg12[%c2_81, %c96_82] : memref<18x144xf32, #tpu.memory_space<vmem>>, vector<1x16xf32>
    tpu.vector_store %arg12[%c2_81, %c96_82], %57 {strides = array<i32>} : memref<18x144xf32, #tpu.memory_space<vmem>>, vector<1x16xf32>,
    %c19 = arith.constant 19 : index
    %c0_83 = arith.constant 0 : index
    %59 = vector.load %arg11[%c19, %c0_83] : memref<98x16xf32, #tpu.memory_space<vmem>>, vector<1x16xf32>
    %c2_84 = arith.constant 2 : index
    %c112_85 = arith.constant 112 : index
    %60 = vector.load %arg12[%c2_84, %c112_85] : memref<18x144xf32, #tpu.memory_space<vmem>>, vector<1x16xf32>
    tpu.vector_store %arg12[%c2_84, %c112_85], %59 {strides = array<i32>} : memref<18x144xf32, #tpu.memory_space<vmem>>, vector<1x16xf32>,
    %c20 = arith.constant 20 : index
    %c0_86 = arith.constant 0 : index
    %61 = vector.load %arg11[%c20, %c0_86] : memref<98x16xf32, #tpu.memory_space<vmem>>, vector<1x16xf32>
    %c2_87 = arith.constant 2 : index
    %c128_88 = arith.constant 128 : index
    %62 = vector.load %arg12[%c2_87, %c128_88] : memref<18x144xf32, #tpu.memory_space<vmem>>, vector<1x16xf32>
    tpu.vector_store %arg12[%c2_87, %c128_88], %61 {strides = array<i32>} : memref<18x144xf32, #tpu.memory_space<vmem>>, vector<1x16xf32>,
    %c14_89 = arith.constant 14 : index
    %c0_90 = arith.constant 0 : index
    %63 = vector.load %arg11[%c14_89, %c0_90] : memref<98x16xf32, #tpu.memory_space<vmem>>, vector<1x16xf32>
    %c3_91 = arith.constant 3 : index
    %c0_92 = arith.constant 0 : index
    %64 = vector.load %arg12[%c3_91, %c0_92] : memref<18x144xf32, #tpu.memory_space<vmem>>, vector<1x16xf32>
    tpu.vector_store %arg12[%c3_91, %c0_92], %63 {strides = array<i32>} : memref<18x144xf32, #tpu.memory_space<vmem>>, vector<1x16xf32>,
    %c15_93 = arith.constant 15 : index
    %c0_94 = arith.constant 0 : index
    %65 = vector.load %arg11[%c15_93, %c0_94] : memref<98x16xf32, #tpu.memory_space<vmem>>, vector<1x16xf32>
    %c3_95 = arith.constant 3 : index
    %c16_96 = arith.constant 16 : index
    %66 = vector.load %arg12[%c3_95, %c16_96] : memref<18x144xf32, #tpu.memory_space<vmem>>, vector<1x16xf32>
    tpu.vector_store %arg12[%c3_95, %c16_96], %65 {strides = array<i32>} : memref<18x144xf32, #tpu.memory_space<vmem>>, vector<1x16xf32>,
    %c16_97 = arith.constant 16 : index
    %c0_98 = arith.constant 0 : index
    %67 = vector.load %arg11[%c16_97, %c0_98] : memref<98x16xf32, #tpu.memory_space<vmem>>, vector<1x16xf32>
    %c3_99 = arith.constant 3 : index
    %c32_100 = arith.constant 32 : index
    %68 = vector.load %arg12[%c3_99, %c32_100] : memref<18x144xf32, #tpu.memory_space<vmem>>, vector<1x16xf32>
    tpu.vector_store %arg12[%c3_99, %c32_100], %67 {strides = array<i32>} : memref<18x144xf32, #tpu.memory_space<vmem>>, vector<1x16xf32>,
    %c21 = arith.constant 21 : index
    %c0_101 = arith.constant 0 : index
    %69 = vector.load %arg11[%c21, %c0_101] : memref<98x16xf32, #tpu.memory_space<vmem>>, vector<1x16xf32>
    %c3_102 = arith.constant 3 : index
    %c48_103 = arith.constant 48 : index
    %70 = vector.load %arg12[%c3_102, %c48_103] : memref<18x144xf32, #tpu.memory_space<vmem>>, vector<1x16xf32>
    tpu.vector_store %arg12[%c3_102, %c48_103], %69 {strides = array<i32>} : memref<18x144xf32, #tpu.memory_space<vmem>>, vector<1x16xf32>,
    %c22 = arith.constant 22 : index
    %c0_104 = arith.constant 0 : index
    %71 = vector.load %arg11[%c22, %c0_104] : memref<98x16xf32, #tpu.memory_space<vmem>>, vector<1x16xf32>
    %c3_105 = arith.constant 3 : index
    %c64_106 = arith.constant 64 : index
    %72 = vector.load %arg12[%c3_105, %c64_106] : memref<18x144xf32, #tpu.memory_space<vmem>>, vector<1x16xf32>
    tpu.vector_store %arg12[%c3_105, %c64_106], %71 {strides = array<i32>} : memref<18x144xf32, #tpu.memory_space<vmem>>, vector<1x16xf32>,
    %c23 = arith.constant 23 : index
    %c0_107 = arith.constant 0 : index
    %73 = vector.load %arg11[%c23, %c0_107] : memref<98x16xf32, #tpu.memory_space<vmem>>, vector<1x16xf32>
    %c3_108 = arith.constant 3 : index
    %c80_109 = arith.constant 80 : index
    %74 = vector.load %arg12[%c3_108, %c80_109] : memref<18x144xf32, #tpu.memory_space<vmem>>, vector<1x16xf32>
    tpu.vector_store %arg12[%c3_108, %c80_109], %73 {strides = array<i32>} : memref<18x144xf32, #tpu.memory_space<vmem>>, vector<1x16xf32>,
    %c28 = arith.constant 28 : index
    %c0_110 = arith.constant 0 : index
    %75 = vector.load %arg11[%c28, %c0_110] : memref<98x16xf32, #tpu.memory_space<vmem>>, vector<1x16xf32>
    %c3_111 = arith.constant 3 : index
    %c96_112 = arith.constant 96 : index
    %76 = vector.load %arg12[%c3_111, %c96_112] : memref<18x144xf32, #tpu.memory_space<vmem>>, vector<1x16xf32>
    tpu.vector_store %arg12[%c3_111, %c96_112], %75 {strides = array<i32>} : memref<18x144xf32, #tpu.memory_space<vmem>>, vector<1x16xf32>,
    %c29 = arith.constant 29 : index
    %c0_113 = arith.constant 0 : index
    %77 = vector.load %arg11[%c29, %c0_113] : memref<98x16xf32, #tpu.memory_space<vmem>>, vector<1x16xf32>
    %c3_114 = arith.constant 3 : index
    %c112_115 = arith.constant 112 : index
    %78 = vector.load %arg12[%c3_114, %c112_115] : memref<18x144xf32, #tpu.memory_space<vmem>>, vector<1x16xf32>
    tpu.vector_store %arg12[%c3_114, %c112_115], %77 {strides = array<i32>} : memref<18x144xf32, #tpu.memory_space<vmem>>, vector<1x16xf32>,
    %c30 = arith.constant 30 : index
    %c0_116 = arith.constant 0 : index
    %79 = vector.load %arg11[%c30, %c0_116] : memref<98x16xf32, #tpu.memory_space<vmem>>, vector<1x16xf32>
    %c3_117 = arith.constant 3 : index
    %c128_118 = arith.constant 128 : index
    %80 = vector.load %arg12[%c3_117, %c128_118] : memref<18x144xf32, #tpu.memory_space<vmem>>, vector<1x16xf32>
    tpu.vector_store %arg12[%c3_117, %c128_118], %79 {strides = array<i32>} : memref<18x144xf32, #tpu.memory_space<vmem>>, vector<1x16xf32>,
    %c16_119 = arith.constant 16 : index
    %c0_120 = arith.constant 0 : index
    %81 = vector.load %arg11[%c16_119, %c0_120] : memref<98x16xf32, #tpu.memory_space<vmem>>, vector<1x16xf32>
    %c4_121 = arith.constant 4 : index
    %c0_122 = arith.constant 0 : index
    %82 = vector.load %arg12[%c4_121, %c0_122] : memref<18x144xf32, #tpu.memory_space<vmem>>, vector<1x16xf32>
    tpu.vector_store %arg12[%c4_121, %c0_122], %81 {strides = array<i32>} : memref<18x144xf32, #tpu.memory_space<vmem>>, vector<1x16xf32>,
    %c17_123 = arith.constant 17 : index
    %c0_124 = arith.constant 0 : index
    %83 = vector.load %arg11[%c17_123, %c0_124] : memref<98x16xf32, #tpu.memory_space<vmem>>, vector<1x16xf32>
    %c4_125 = arith.constant 4 : index
    %c16_126 = arith.constant 16 : index
    %84 = vector.load %arg12[%c4_125, %c16_126] : memref<18x144xf32, #tpu.memory_space<vmem>>, vector<1x16xf32>
    tpu.vector_store %arg12[%c4_125, %c16_126], %83 {strides = array<i32>} : memref<18x144xf32, #tpu.memory_space<vmem>>, vector<1x16xf32>,
    %c18_127 = arith.constant 18 : index
    %c0_128 = arith.constant 0 : index
    %85 = vector.load %arg11[%c18_127, %c0_128] : memref<98x16xf32, #tpu.memory_space<vmem>>, vector<1x16xf32>
    %c4_129 = arith.constant 4 : index
    %c32_130 = arith.constant 32 : index
    %86 = vector.load %arg12[%c4_129, %c32_130] : memref<18x144xf32, #tpu.memory_space<vmem>>, vector<1x16xf32>
    tpu.vector_store %arg12[%c4_129, %c32_130], %85 {strides = array<i32>} : memref<18x144xf32, #tpu.memory_space<vmem>>, vector<1x16xf32>,
    %c23_131 = arith.constant 23 : index
    %c0_132 = arith.constant 0 : index
    %87 = vector.load %arg11[%c23_131, %c0_132] : memref<98x16xf32, #tpu.memory_space<vmem>>, vector<1x16xf32>
    %c4_133 = arith.constant 4 : index
    %c48_134 = arith.constant 48 : index
    %88 = vector.load %arg12[%c4_133, %c48_134] : memref<18x144xf32, #tpu.memory_space<vmem>>, vector<1x16xf32>
    tpu.vector_store %arg12[%c4_133, %c48_134], %87 {strides = array<i32>} : memref<18x144xf32, #tpu.memory_space<vmem>>, vector<1x16xf32>,
    %c24 = arith.constant 24 : index
    %c0_135 = arith.constant 0 : index
    %89 = vector.load %arg11[%c24, %c0_135] : memref<98x16xf32, #tpu.memory_space<vmem>>, vector<1x16xf32>
    %c4_136 = arith.constant 4 : index
    %c64_137 = arith.constant 64 : index
    %90 = vector.load %arg12[%c4_136, %c64_137] : memref<18x144xf32, #tpu.memory_space<vmem>>, vector<1x16xf32>
    tpu.vector_store %arg12[%c4_136, %c64_137], %89 {strides = array<i32>} : memref<18x144xf32, #tpu.memory_space<vmem>>, vector<1x16xf32>,
    %c25 = arith.constant 25 : index
    %c0_138 = arith.constant 0 : index
    %91 = vector.load %arg11[%c25, %c0_138] : memref<98x16xf32, #tpu.memory_space<vmem>>, vector<1x16xf32>
    %c4_139 = arith.constant 4 : index
    %c80_140 = arith.constant 80 : index
    %92 = vector.load %arg12[%c4_139, %c80_140] : memref<18x144xf32, #tpu.memory_space<vmem>>, vector<1x16xf32>
    tpu.vector_store %arg12[%c4_139, %c80_140], %91 {strides = array<i32>} : memref<18x144xf32, #tpu.memory_space<vmem>>, vector<1x16xf32>,
    %c30_141 = arith.constant 30 : index
    %c0_142 = arith.constant 0 : index
    %93 = vector.load %arg11[%c30_141, %c0_142] : memref<98x16xf32, #tpu.memory_space<vmem>>, vector<1x16xf32>
    %c4_143 = arith.constant 4 : index
    %c96_144 = arith.constant 96 : index
    %94 = vector.load %arg12[%c4_143, %c96_144] : memref<18x144xf32, #tpu.memory_space<vmem>>, vector<1x16xf32>
    tpu.vector_store %arg12[%c4_143, %c96_144], %93 {strides = array<i32>} : memref<18x144xf32, #tpu.memory_space<vmem>>, vector<1x16xf32>,
    %c31 = arith.constant 31 : index
    %c0_145 = arith.constant 0 : index
    %95 = vector.load %arg11[%c31, %c0_145] : memref<98x16xf32, #tpu.memory_space<vmem>>, vector<1x16xf32>
    %c4_146 = arith.constant 4 : index
    %c112_147 = arith.constant 112 : index
    %96 = vector.load %arg12[%c4_146, %c112_147] : memref<18x144xf32, #tpu.memory_space<vmem>>, vector<1x16xf32>
    tpu.vector_store %arg12[%c4_146, %c112_147], %95 {strides = array<i32>} : memref<18x144xf32, #tpu.memory_space<vmem>>, vector<1x16xf32>,
    %c32_148 = arith.constant 32 : index
    %c0_149 = arith.constant 0 : index
    %97 = vector.load %arg11[%c32_148, %c0_149] : memref<98x16xf32, #tpu.memory_space<vmem>>, vector<1x16xf32>
    %c4_150 = arith.constant 4 : index
    %c128_151 = arith.constant 128 : index
    %98 = vector.load %arg12[%c4_150, %c128_151] : memref<18x144xf32, #tpu.memory_space<vmem>>, vector<1x16xf32>
    tpu.vector_store %arg12[%c4_150, %c128_151], %97 {strides = array<i32>} : memref<18x144xf32, #tpu.memory_space<vmem>>, vector<1x16xf32>,
    %c18_152 = arith.constant 18 : index
    %c0_153 = arith.constant 0 : index
    %99 = vector.load %arg11[%c18_152, %c0_153] : memref<98x16xf32, #tpu.memory_space<vmem>>, vector<1x16xf32>
    %c5_154 = arith.constant 5 : index
    %c0_155 = arith.constant 0 : index
    %100 = vector.load %arg12[%c5_154, %c0_155] : memref<18x144xf32, #tpu.memory_space<vmem>>, vector<1x16xf32>
    tpu.vector_store %arg12[%c5_154, %c0_155], %99 {strides = array<i32>} : memref<18x144xf32, #tpu.memory_space<vmem>>, vector<1x16xf32>,
    %c19_156 = arith.constant 19 : index
    %c0_157 = arith.constant 0 : index
    %101 = vector.load %arg11[%c19_156, %c0_157] : memref<98x16xf32, #tpu.memory_space<vmem>>, vector<1x16xf32>
    %c5_158 = arith.constant 5 : index
    %c16_159 = arith.constant 16 : index
    %102 = vector.load %arg12[%c5_158, %c16_159] : memref<18x144xf32, #tpu.memory_space<vmem>>, vector<1x16xf32>
    tpu.vector_store %arg12[%c5_158, %c16_159], %101 {strides = array<i32>} : memref<18x144xf32, #tpu.memory_space<vmem>>, vector<1x16xf32>,
    %c20_160 = arith.constant 20 : index
    %c0_161 = arith.constant 0 : index
    %103 = vector.load %arg11[%c20_160, %c0_161] : memref<98x16xf32, #tpu.memory_space<vmem>>, vector<1x16xf32>
    %c5_162 = arith.constant 5 : index
    %c32_163 = arith.constant 32 : index
    %104 = vector.load %arg12[%c5_162, %c32_163] : memref<18x144xf32, #tpu.memory_space<vmem>>, vector<1x16xf32>
    tpu.vector_store %arg12[%c5_162, %c32_163], %103 {strides = array<i32>} : memref<18x144xf32, #tpu.memory_space<vmem>>, vector<1x16xf32>,
    %c25_164 = arith.constant 25 : index
    %c0_165 = arith.constant 0 : index
    %105 = vector.load %arg11[%c25_164, %c0_165] : memref<98x16xf32, #tpu.memory_space<vmem>>, vector<1x16xf32>
    %c5_166 = arith.constant 5 : index
    %c48_167 = arith.constant 48 : index
    %106 = vector.load %arg12[%c5_166, %c48_167] : memref<18x144xf32, #tpu.memory_space<vmem>>, vector<1x16xf32>
    tpu.vector_store %arg12[%c5_166, %c48_167], %105 {strides = array<i32>} : memref<18x144xf32, #tpu.memory_space<vmem>>, vector<1x16xf32>,
    %c26 = arith.constant 26 : index
    %c0_168 = arith.constant 0 : index
    %107 = vector.load %arg11[%c26, %c0_168] : memref<98x16xf32, #tpu.memory_space<vmem>>, vector<1x16xf32>
    %c5_169 = arith.constant 5 : index
    %c64_170 = arith.constant 64 : index
    %108 = vector.load %arg12[%c5_169, %c64_170] : memref<18x144xf32, #tpu.memory_space<vmem>>, vector<1x16xf32>
    tpu.vector_store %arg12[%c5_169, %c64_170], %107 {strides = array<i32>} : memref<18x144xf32, #tpu.memory_space<vmem>>, vector<1x16xf32>,
    %c27 = arith.constant 27 : index
    %c0_171 = arith.constant 0 : index
    %109 = vector.load %arg11[%c27, %c0_171] : memref<98x16xf32, #tpu.memory_space<vmem>>, vector<1x16xf32>
    %c5_172 = arith.constant 5 : index
    %c80_173 = arith.constant 80 : index
    %110 = vector.load %arg12[%c5_172, %c80_173] : memref<18x144xf32, #tpu.memory_space<vmem>>, vector<1x16xf32>
    tpu.vector_store %arg12[%c5_172, %c80_173], %109 {strides = array<i32>} : memref<18x144xf32, #tpu.memory_space<vmem>>, vector<1x16xf32>,
    %c32_174 = arith.constant 32 : index
    %c0_175 = arith.constant 0 : index
    %111 = vector.load %arg11[%c32_174, %c0_175] : memref<98x16xf32, #tpu.memory_space<vmem>>, vector<1x16xf32>
    %c5_176 = arith.constant 5 : index
    %c96_177 = arith.constant 96 : index
    %112 = vector.load %arg12[%c5_176, %c96_177] : memref<18x144xf32, #tpu.memory_space<vmem>>, vector<1x16xf32>
    tpu.vector_store %arg12[%c5_176, %c96_177], %111 {strides = array<i32>} : memref<18x144xf32, #tpu.memory_space<vmem>>, vector<1x16xf32>,
    %c33 = arith.constant 33 : index
    %c0_178 = arith.constant 0 : index
    %113 = vector.load %arg11[%c33, %c0_178] : memref<98x16xf32, #tpu.memory_space<vmem>>, vector<1x16xf32>
    %c5_179 = arith.constant 5 : index
    %c112_180 = arith.constant 112 : index
    %114 = vector.load %arg12[%c5_179, %c112_180] : memref<18x144xf32, #tpu.memory_space<vmem>>, vector<1x16xf32>
    tpu.vector_store %arg12[%c5_179, %c112_180], %113 {strides = array<i32>} : memref<18x144xf32, #tpu.memory_space<vmem>>, vector<1x16xf32>,
    %c34 = arith.constant 34 : index
    %c0_181 = arith.constant 0 : index
    %115 = vector.load %arg11[%c34, %c0_181] : memref<98x16xf32, #tpu.memory_space<vmem>>, vector<1x16xf32>
    %c5_182 = arith.constant 5 : index
    %c128_183 = arith.constant 128 : index
    %116 = vector.load %arg12[%c5_182, %c128_183] : memref<18x144xf32, #tpu.memory_space<vmem>>, vector<1x16xf32>
    tpu.vector_store %arg12[%c5_182, %c128_183], %115 {strides = array<i32>} : memref<18x144xf32, #tpu.memory_space<vmem>>, vector<1x16xf32>,
    %c28_184 = arith.constant 28 : index
    %c0_185 = arith.constant 0 : index
    %117 = vector.load %arg11[%c28_184, %c0_185] : memref<98x16xf32, #tpu.memory_space<vmem>>, vector<1x16xf32>
    %c6_186 = arith.constant 6 : index
    %c0_187 = arith.constant 0 : index
    %118 = vector.load %arg12[%c6_186, %c0_187] : memref<18x144xf32, #tpu.memory_space<vmem>>, vector<1x16xf32>
    tpu.vector_store %arg12[%c6_186, %c0_187], %117 {strides = array<i32>} : memref<18x144xf32, #tpu.memory_space<vmem>>, vector<1x16xf32>,
    %c29_188 = arith.constant 29 : index
    %c0_189 = arith.constant 0 : index
    %119 = vector.load %arg11[%c29_188, %c0_189] : memref<98x16xf32, #tpu.memory_space<vmem>>, vector<1x16xf32>
    %c6_190 = arith.constant 6 : index
    %c16_191 = arith.constant 16 : index
    %120 = vector.load %arg12[%c6_190, %c16_191] : memref<18x144xf32, #tpu.memory_space<vmem>>, vector<1x16xf32>
    tpu.vector_store %arg12[%c6_190, %c16_191], %119 {strides = array<i32>} : memref<18x144xf32, #tpu.memory_space<vmem>>, vector<1x16xf32>,
    %c30_192 = arith.constant 30 : index
    %c0_193 = arith.constant 0 : index
    %121 = vector.load %arg11[%c30_192, %c0_193] : memref<98x16xf32, #tpu.memory_space<vmem>>, vector<1x16xf32>
    %c6_194 = arith.constant 6 : index
    %c32_195 = arith.constant 32 : index
    %122 = vector.load %arg12[%c6_194, %c32_195] : memref<18x144xf32, #tpu.memory_space<vmem>>, vector<1x16xf32>
    tpu.vector_store %arg12[%c6_194, %c32_195], %121 {strides = array<i32>} : memref<18x144xf32, #tpu.memory_space<vmem>>, vector<1x16xf32>,
    %c35 = arith.constant 35 : index
    %c0_196 = arith.constant 0 : index
    %123 = vector.load %arg11[%c35, %c0_196] : memref<98x16xf32, #tpu.memory_space<vmem>>, vector<1x16xf32>
    %c6_197 = arith.constant 6 : index
    %c48_198 = arith.constant 48 : index
    %124 = vector.load %arg12[%c6_197, %c48_198] : memref<18x144xf32, #tpu.memory_space<vmem>>, vector<1x16xf32>
    tpu.vector_store %arg12[%c6_197, %c48_198], %123 {strides = array<i32>} : memref<18x144xf32, #tpu.memory_space<vmem>>, vector<1x16xf32>,
    %c36 = arith.constant 36 : index
    %c0_199 = arith.constant 0 : index
    %125 = vector.load %arg11[%c36, %c0_199] : memref<98x16xf32, #tpu.memory_space<vmem>>, vector<1x16xf32>
    %c6_200 = arith.constant 6 : index
    %c64_201 = arith.constant 64 : index
    %126 = vector.load %arg12[%c6_200, %c64_201] : memref<18x144xf32, #tpu.memory_space<vmem>>, vector<1x16xf32>
    tpu.vector_store %arg12[%c6_200, %c64_201], %125 {strides = array<i32>} : memref<18x144xf32, #tpu.memory_space<vmem>>, vector<1x16xf32>,
    %c37 = arith.constant 37 : index
    %c0_202 = arith.constant 0 : index
    %127 = vector.load %arg11[%c37, %c0_202] : memref<98x16xf32, #tpu.memory_space<vmem>>, vector<1x16xf32>
    %c6_203 = arith.constant 6 : index
    %c80_204 = arith.constant 80 : index
    %128 = vector.load %arg12[%c6_203, %c80_204] : memref<18x144xf32, #tpu.memory_space<vmem>>, vector<1x16xf32>
    tpu.vector_store %arg12[%c6_203, %c80_204], %127 {strides = array<i32>} : memref<18x144xf32, #tpu.memory_space<vmem>>, vector<1x16xf32>,
    %c42 = arith.constant 42 : index
    %c0_205 = arith.constant 0 : index
    %129 = vector.load %arg11[%c42, %c0_205] : memref<98x16xf32, #tpu.memory_space<vmem>>, vector<1x16xf32>
    %c6_206 = arith.constant 6 : index
    %c96_207 = arith.constant 96 : index
    %130 = vector.load %arg12[%c6_206, %c96_207] : memref<18x144xf32, #tpu.memory_space<vmem>>, vector<1x16xf32>
    tpu.vector_store %arg12[%c6_206, %c96_207], %129 {strides = array<i32>} : memref<18x144xf32, #tpu.memory_space<vmem>>, vector<1x16xf32>,
    %c43 = arith.constant 43 : index
    %c0_208 = arith.constant 0 : index
    %131 = vector.load %arg11[%c43, %c0_208] : memref<98x16xf32, #tpu.memory_space<vmem>>, vector<1x16xf32>
    %c6_209 = arith.constant 6 : index
    %c112_210 = arith.constant 112 : index
    %132 = vector.load %arg12[%c6_209, %c112_210] : memref<18x144xf32, #tpu.memory_space<vmem>>, vector<1x16xf32>
    tpu.vector_store %arg12[%c6_209, %c112_210], %131 {strides = array<i32>} : memref<18x144xf32, #tpu.memory_space<vmem>>, vector<1x16xf32>,
    %c44 = arith.constant 44 : index
    %c0_211 = arith.constant 0 : index
    %133 = vector.load %arg11[%c44, %c0_211] : memref<98x16xf32, #tpu.memory_space<vmem>>, vector<1x16xf32>
    %c6_212 = arith.constant 6 : index
    %c128_213 = arith.constant 128 : index
    %134 = vector.load %arg12[%c6_212, %c128_213] : memref<18x144xf32, #tpu.memory_space<vmem>>, vector<1x16xf32>
    tpu.vector_store %arg12[%c6_212, %c128_213], %133 {strides = array<i32>} : memref<18x144xf32, #tpu.memory_space<vmem>>, vector<1x16xf32>,
    %c30_214 = arith.constant 30 : index
    %c0_215 = arith.constant 0 : index
    %135 = vector.load %arg11[%c30_214, %c0_215] : memref<98x16xf32, #tpu.memory_space<vmem>>, vector<1x16xf32>
    %c7_216 = arith.constant 7 : index
    %c0_217 = arith.constant 0 : index
    %136 = vector.load %arg12[%c7_216, %c0_217] : memref<18x144xf32, #tpu.memory_space<vmem>>, vector<1x16xf32>
    tpu.vector_store %arg12[%c7_216, %c0_217], %135 {strides = array<i32>} : memref<18x144xf32, #tpu.memory_space<vmem>>, vector<1x16xf32>,
    %c31_218 = arith.constant 31 : index
    %c0_219 = arith.constant 0 : index
    %137 = vector.load %arg11[%c31_218, %c0_219] : memref<98x16xf32, #tpu.memory_space<vmem>>, vector<1x16xf32>
    %c7_220 = arith.constant 7 : index
    %c16_221 = arith.constant 16 : index
    %138 = vector.load %arg12[%c7_220, %c16_221] : memref<18x144xf32, #tpu.memory_space<vmem>>, vector<1x16xf32>
    tpu.vector_store %arg12[%c7_220, %c16_221], %137 {strides = array<i32>} : memref<18x144xf32, #tpu.memory_space<vmem>>, vector<1x16xf32>,
    %c32_222 = arith.constant 32 : index
    %c0_223 = arith.constant 0 : index
    %139 = vector.load %arg11[%c32_222, %c0_223] : memref<98x16xf32, #tpu.memory_space<vmem>>, vector<1x16xf32>
    %c7_224 = arith.constant 7 : index
    %c32_225 = arith.constant 32 : index
    %140 = vector.load %arg12[%c7_224, %c32_225] : memref<18x144xf32, #tpu.memory_space<vmem>>, vector<1x16xf32>
    tpu.vector_store %arg12[%c7_224, %c32_225], %139 {strides = array<i32>} : memref<18x144xf32, #tpu.memory_space<vmem>>, vector<1x16xf32>,
    %c37_226 = arith.constant 37 : index
    %c0_227 = arith.constant 0 : index
    %141 = vector.load %arg11[%c37_226, %c0_227] : memref<98x16xf32, #tpu.memory_space<vmem>>, vector<1x16xf32>
    %c7_228 = arith.constant 7 : index
    %c48_229 = arith.constant 48 : index
    %142 = vector.load %arg12[%c7_228, %c48_229] : memref<18x144xf32, #tpu.memory_space<vmem>>, vector<1x16xf32>
    tpu.vector_store %arg12[%c7_228, %c48_229], %141 {strides = array<i32>} : memref<18x144xf32, #tpu.memory_space<vmem>>, vector<1x16xf32>,
    %c38 = arith.constant 38 : index
    %c0_230 = arith.constant 0 : index
    %143 = vector.load %arg11[%c38, %c0_230] : memref<98x16xf32, #tpu.memory_space<vmem>>, vector<1x16xf32>
    %c7_231 = arith.constant 7 : index
    %c64_232 = arith.constant 64 : index
    %144 = vector.load %arg12[%c7_231, %c64_232] : memref<18x144xf32, #tpu.memory_space<vmem>>, vector<1x16xf32>
    tpu.vector_store %arg12[%c7_231, %c64_232], %143 {strides = array<i32>} : memref<18x144xf32, #tpu.memory_space<vmem>>, vector<1x16xf32>,
    %c39 = arith.constant 39 : index
    %c0_233 = arith.constant 0 : index
    %145 = vector.load %arg11[%c39, %c0_233] : memref<98x16xf32, #tpu.memory_space<vmem>>, vector<1x16xf32>
    %c7_234 = arith.constant 7 : index
    %c80_235 = arith.constant 80 : index
    %146 = vector.load %arg12[%c7_234, %c80_235] : memref<18x144xf32, #tpu.memory_space<vmem>>, vector<1x16xf32>
    tpu.vector_store %arg12[%c7_234, %c80_235], %145 {strides = array<i32>} : memref<18x144xf32, #tpu.memory_space<vmem>>, vector<1x16xf32>,
    %c44_236 = arith.constant 44 : index
    %c0_237 = arith.constant 0 : index
    %147 = vector.load %arg11[%c44_236, %c0_237] : memref<98x16xf32, #tpu.memory_space<vmem>>, vector<1x16xf32>
    %c7_238 = arith.constant 7 : index
    %c96_239 = arith.constant 96 : index
    %148 = vector.load %arg12[%c7_238, %c96_239] : memref<18x144xf32, #tpu.memory_space<vmem>>, vector<1x16xf32>
    tpu.vector_store %arg12[%c7_238, %c96_239], %147 {strides = array<i32>} : memref<18x144xf32, #tpu.memory_space<vmem>>, vector<1x16xf32>,
    %c45 = arith.constant 45 : index
    %c0_240 = arith.constant 0 : index
    %149 = vector.load %arg11[%c45, %c0_240] : memref<98x16xf32, #tpu.memory_space<vmem>>, vector<1x16xf32>
    %c7_241 = arith.constant 7 : index
    %c112_242 = arith.constant 112 : index
    %150 = vector.load %arg12[%c7_241, %c112_242] : memref<18x144xf32, #tpu.memory_space<vmem>>, vector<1x16xf32>
    tpu.vector_store %arg12[%c7_241, %c112_242], %149 {strides = array<i32>} : memref<18x144xf32, #tpu.memory_space<vmem>>, vector<1x16xf32>,
    %c46 = arith.constant 46 : index
    %c0_243 = arith.constant 0 : index
    %151 = vector.load %arg11[%c46, %c0_243] : memref<98x16xf32, #tpu.memory_space<vmem>>, vector<1x16xf32>
    %c7_244 = arith.constant 7 : index
    %c128_245 = arith.constant 128 : index
    %152 = vector.load %arg12[%c7_244, %c128_245] : memref<18x144xf32, #tpu.memory_space<vmem>>, vector<1x16xf32>
    tpu.vector_store %arg12[%c7_244, %c128_245], %151 {strides = array<i32>} : memref<18x144xf32, #tpu.memory_space<vmem>>, vector<1x16xf32>,
    %c32_246 = arith.constant 32 : index
    %c0_247 = arith.constant 0 : index
    %153 = vector.load %arg11[%c32_246, %c0_247] : memref<98x16xf32, #tpu.memory_space<vmem>>, vector<1x16xf32>
    %c8_248 = arith.constant 8 : index
    %c0_249 = arith.constant 0 : index
    %154 = vector.load %arg12[%c8_248, %c0_249] : memref<18x144xf32, #tpu.memory_space<vmem>>, vector<1x16xf32>
    tpu.vector_store %arg12[%c8_248, %c0_249], %153 {strides = array<i32>} : memref<18x144xf32, #tpu.memory_space<vmem>>, vector<1x16xf32>,
    %c33_250 = arith.constant 33 : index
    %c0_251 = arith.constant 0 : index
    %155 = vector.load %arg11[%c33_250, %c0_251] : memref<98x16xf32, #tpu.memory_space<vmem>>, vector<1x16xf32>
    %c8_252 = arith.constant 8 : index
    %c16_253 = arith.constant 16 : index
    %156 = vector.load %arg12[%c8_252, %c16_253] : memref<18x144xf32, #tpu.memory_space<vmem>>, vector<1x16xf32>
    tpu.vector_store %arg12[%c8_252, %c16_253], %155 {strides = array<i32>} : memref<18x144xf32, #tpu.memory_space<vmem>>, vector<1x16xf32>,
    %c34_254 = arith.constant 34 : index
    %c0_255 = arith.constant 0 : index
    %157 = vector.load %arg11[%c34_254, %c0_255] : memref<98x16xf32, #tpu.memory_space<vmem>>, vector<1x16xf32>
    %c8_256 = arith.constant 8 : index
    %c32_257 = arith.constant 32 : index
    %158 = vector.load %arg12[%c8_256, %c32_257] : memref<18x144xf32, #tpu.memory_space<vmem>>, vector<1x16xf32>
    tpu.vector_store %arg12[%c8_256, %c32_257], %157 {strides = array<i32>} : memref<18x144xf32, #tpu.memory_space<vmem>>, vector<1x16xf32>,
    %c39_258 = arith.constant 39 : index
    %c0_259 = arith.constant 0 : index
    %159 = vector.load %arg11[%c39_258, %c0_259] : memref<98x16xf32, #tpu.memory_space<vmem>>, vector<1x16xf32>
    %c8_260 = arith.constant 8 : index
    %c48_261 = arith.constant 48 : index
    %160 = vector.load %arg12[%c8_260, %c48_261] : memref<18x144xf32, #tpu.memory_space<vmem>>, vector<1x16xf32>
    tpu.vector_store %arg12[%c8_260, %c48_261], %159 {strides = array<i32>} : memref<18x144xf32, #tpu.memory_space<vmem>>, vector<1x16xf32>,
    %c40 = arith.constant 40 : index
    %c0_262 = arith.constant 0 : index
    %161 = vector.load %arg11[%c40, %c0_262] : memref<98x16xf32, #tpu.memory_space<vmem>>, vector<1x16xf32>
    %c8_263 = arith.constant 8 : index
    %c64_264 = arith.constant 64 : index
    %162 = vector.load %arg12[%c8_263, %c64_264] : memref<18x144xf32, #tpu.memory_space<vmem>>, vector<1x16xf32>
    tpu.vector_store %arg12[%c8_263, %c64_264], %161 {strides = array<i32>} : memref<18x144xf32, #tpu.memory_space<vmem>>, vector<1x16xf32>,
    %c41 = arith.constant 41 : index
    %c0_265 = arith.constant 0 : index
    %163 = vector.load %arg11[%c41, %c0_265] : memref<98x16xf32, #tpu.memory_space<vmem>>, vector<1x16xf32>
    %c8_266 = arith.constant 8 : index
    %c80_267 = arith.constant 80 : index
    %164 = vector.load %arg12[%c8_266, %c80_267] : memref<18x144xf32, #tpu.memory_space<vmem>>, vector<1x16xf32>
    tpu.vector_store %arg12[%c8_266, %c80_267], %163 {strides = array<i32>} : memref<18x144xf32, #tpu.memory_space<vmem>>, vector<1x16xf32>,
    %c46_268 = arith.constant 46 : index
    %c0_269 = arith.constant 0 : index
    %165 = vector.load %arg11[%c46_268, %c0_269] : memref<98x16xf32, #tpu.memory_space<vmem>>, vector<1x16xf32>
    %c8_270 = arith.constant 8 : index
    %c96_271 = arith.constant 96 : index
    %166 = vector.load %arg12[%c8_270, %c96_271] : memref<18x144xf32, #tpu.memory_space<vmem>>, vector<1x16xf32>
    tpu.vector_store %arg12[%c8_270, %c96_271], %165 {strides = array<i32>} : memref<18x144xf32, #tpu.memory_space<vmem>>, vector<1x16xf32>,
    %c47 = arith.constant 47 : index
    %c0_272 = arith.constant 0 : index
    %167 = vector.load %arg11[%c47, %c0_272] : memref<98x16xf32, #tpu.memory_space<vmem>>, vector<1x16xf32>
    %c8_273 = arith.constant 8 : index
    %c112_274 = arith.constant 112 : index
    %168 = vector.load %arg12[%c8_273, %c112_274] : memref<18x144xf32, #tpu.memory_space<vmem>>, vector<1x16xf32>
    tpu.vector_store %arg12[%c8_273, %c112_274], %167 {strides = array<i32>} : memref<18x144xf32, #tpu.memory_space<vmem>>, vector<1x16xf32>,
    %c48_275 = arith.constant 48 : index
    %c0_276 = arith.constant 0 : index
    %169 = vector.load %arg11[%c48_275, %c0_276] : memref<98x16xf32, #tpu.memory_space<vmem>>, vector<1x16xf32>
    %c8_277 = arith.constant 8 : index
    %c128_278 = arith.constant 128 : index
    %170 = vector.load %arg12[%c8_277, %c128_278] : memref<18x144xf32, #tpu.memory_space<vmem>>, vector<1x16xf32>
    tpu.vector_store %arg12[%c8_277, %c128_278], %169 {strides = array<i32>} : memref<18x144xf32, #tpu.memory_space<vmem>>, vector<1x16xf32>,
    %c49 = arith.constant 49 : index
    %c0_279 = arith.constant 0 : index
    %171 = vector.load %arg11[%c49, %c0_279] : memref<98x16xf32, #tpu.memory_space<vmem>>, vector<1x16xf32>
    %c9_280 = arith.constant 9 : index
    %c0_281 = arith.constant 0 : index
    %172 = vector.load %arg12[%c9_280, %c0_281] : memref<18x144xf32, #tpu.memory_space<vmem>>, vector<1x16xf32>
    tpu.vector_store %arg12[%c9_280, %c0_281], %171 {strides = array<i32>} : memref<18x144xf32, #tpu.memory_space<vmem>>, vector<1x16xf32>,
    %c50 = arith.constant 50 : index
    %c0_282 = arith.constant 0 : index
    %173 = vector.load %arg11[%c50, %c0_282] : memref<98x16xf32, #tpu.memory_space<vmem>>, vector<1x16xf32>
    %c9_283 = arith.constant 9 : index
    %c16_284 = arith.constant 16 : index
    %174 = vector.load %arg12[%c9_283, %c16_284] : memref<18x144xf32, #tpu.memory_space<vmem>>, vector<1x16xf32>
    tpu.vector_store %arg12[%c9_283, %c16_284], %173 {strides = array<i32>} : memref<18x144xf32, #tpu.memory_space<vmem>>, vector<1x16xf32>,
    %c51 = arith.constant 51 : index
    %c0_285 = arith.constant 0 : index
    %175 = vector.load %arg11[%c51, %c0_285] : memref<98x16xf32, #tpu.memory_space<vmem>>, vector<1x16xf32>
    %c9_286 = arith.constant 9 : index
    %c32_287 = arith.constant 32 : index
    %176 = vector.load %arg12[%c9_286, %c32_287] : memref<18x144xf32, #tpu.memory_space<vmem>>, vector<1x16xf32>
    tpu.vector_store %arg12[%c9_286, %c32_287], %175 {strides = array<i32>} : memref<18x144xf32, #tpu.memory_space<vmem>>, vector<1x16xf32>,
    %c56 = arith.constant 56 : index
    %c0_288 = arith.constant 0 : index
    %177 = vector.load %arg11[%c56, %c0_288] : memref<98x16xf32, #tpu.memory_space<vmem>>, vector<1x16xf32>
    %c9_289 = arith.constant 9 : index
    %c48_290 = arith.constant 48 : index
    %178 = vector.load %arg12[%c9_289, %c48_290] : memref<18x144xf32, #tpu.memory_space<vmem>>, vector<1x16xf32>
    tpu.vector_store %arg12[%c9_289, %c48_290], %177 {strides = array<i32>} : memref<18x144xf32, #tpu.memory_space<vmem>>, vector<1x16xf32>,
    %c57 = arith.constant 57 : index
    %c0_291 = arith.constant 0 : index
    %179 = vector.load %arg11[%c57, %c0_291] : memref<98x16xf32, #tpu.memory_space<vmem>>, vector<1x16xf32>
    %c9_292 = arith.constant 9 : index
    %c64_293 = arith.constant 64 : index
    %180 = vector.load %arg12[%c9_292, %c64_293] : memref<18x144xf32, #tpu.memory_space<vmem>>, vector<1x16xf32>
    tpu.vector_store %arg12[%c9_292, %c64_293], %179 {strides = array<i32>} : memref<18x144xf32, #tpu.memory_space<vmem>>, vector<1x16xf32>,
    %c58 = arith.constant 58 : index
    %c0_294 = arith.constant 0 : index
    %181 = vector.load %arg11[%c58, %c0_294] : memref<98x16xf32, #tpu.memory_space<vmem>>, vector<1x16xf32>
    %c9_295 = arith.constant 9 : index
    %c80_296 = arith.constant 80 : index
    %182 = vector.load %arg12[%c9_295, %c80_296] : memref<18x144xf32, #tpu.memory_space<vmem>>, vector<1x16xf32>
    tpu.vector_store %arg12[%c9_295, %c80_296], %181 {strides = array<i32>} : memref<18x144xf32, #tpu.memory_space<vmem>>, vector<1x16xf32>,
    %c63 = arith.constant 63 : index
    %c0_297 = arith.constant 0 : index
    %183 = vector.load %arg11[%c63, %c0_297] : memref<98x16xf32, #tpu.memory_space<vmem>>, vector<1x16xf32>
    %c9_298 = arith.constant 9 : index
    %c96_299 = arith.constant 96 : index
    %184 = vector.load %arg12[%c9_298, %c96_299] : memref<18x144xf32, #tpu.memory_space<vmem>>, vector<1x16xf32>
    tpu.vector_store %arg12[%c9_298, %c96_299], %183 {strides = array<i32>} : memref<18x144xf32, #tpu.memory_space<vmem>>, vector<1x16xf32>,
    %c64_300 = arith.constant 64 : index
    %c0_301 = arith.constant 0 : index
    %185 = vector.load %arg11[%c64_300, %c0_301] : memref<98x16xf32, #tpu.memory_space<vmem>>, vector<1x16xf32>
    %c9_302 = arith.constant 9 : index
    %c112_303 = arith.constant 112 : index
    %186 = vector.load %arg12[%c9_302, %c112_303] : memref<18x144xf32, #tpu.memory_space<vmem>>, vector<1x16xf32>
    tpu.vector_store %arg12[%c9_302, %c112_303], %185 {strides = array<i32>} : memref<18x144xf32, #tpu.memory_space<vmem>>, vector<1x16xf32>,
    %c65 = arith.constant 65 : index
    %c0_304 = arith.constant 0 : index
    %187 = vector.load %arg11[%c65, %c0_304] : memref<98x16xf32, #tpu.memory_space<vmem>>, vector<1x16xf32>
    %c9_305 = arith.constant 9 : index
    %c128_306 = arith.constant 128 : index
    %188 = vector.load %arg12[%c9_305, %c128_306] : memref<18x144xf32, #tpu.memory_space<vmem>>, vector<1x16xf32>
    tpu.vector_store %arg12[%c9_305, %c128_306], %187 {strides = array<i32>} : memref<18x144xf32, #tpu.memory_space<vmem>>, vector<1x16xf32>,
    %c51_307 = arith.constant 51 : index
    %c0_308 = arith.constant 0 : index
    %189 = vector.load %arg11[%c51_307, %c0_308] : memref<98x16xf32, #tpu.memory_space<vmem>>, vector<1x16xf32>
    %c10_309 = arith.constant 10 : index
    %c0_310 = arith.constant 0 : index
    %190 = vector.load %arg12[%c10_309, %c0_310] : memref<18x144xf32, #tpu.memory_space<vmem>>, vector<1x16xf32>
    tpu.vector_store %arg12[%c10_309, %c0_310], %189 {strides = array<i32>} : memref<18x144xf32, #tpu.memory_space<vmem>>, vector<1x16xf32>,
    %c52 = arith.constant 52 : index
    %c0_311 = arith.constant 0 : index
    %191 = vector.load %arg11[%c52, %c0_311] : memref<98x16xf32, #tpu.memory_space<vmem>>, vector<1x16xf32>
    %c10_312 = arith.constant 10 : index
    %c16_313 = arith.constant 16 : index
    %192 = vector.load %arg12[%c10_312, %c16_313] : memref<18x144xf32, #tpu.memory_space<vmem>>, vector<1x16xf32>
    tpu.vector_store %arg12[%c10_312, %c16_313], %191 {strides = array<i32>} : memref<18x144xf32, #tpu.memory_space<vmem>>, vector<1x16xf32>,
    %c53 = arith.constant 53 : index
    %c0_314 = arith.constant 0 : index
    %193 = vector.load %arg11[%c53, %c0_314] : memref<98x16xf32, #tpu.memory_space<vmem>>, vector<1x16xf32>
    %c10_315 = arith.constant 10 : index
    %c32_316 = arith.constant 32 : index
    %194 = vector.load %arg12[%c10_315, %c32_316] : memref<18x144xf32, #tpu.memory_space<vmem>>, vector<1x16xf32>
    tpu.vector_store %arg12[%c10_315, %c32_316], %193 {strides = array<i32>} : memref<18x144xf32, #tpu.memory_space<vmem>>, vector<1x16xf32>,
    %c58_317 = arith.constant 58 : index
    %c0_318 = arith.constant 0 : index
    %195 = vector.load %arg11[%c58_317, %c0_318] : memref<98x16xf32, #tpu.memory_space<vmem>>, vector<1x16xf32>
    %c10_319 = arith.constant 10 : index
    %c48_320 = arith.constant 48 : index
    %196 = vector.load %arg12[%c10_319, %c48_320] : memref<18x144xf32, #tpu.memory_space<vmem>>, vector<1x16xf32>
    tpu.vector_store %arg12[%c10_319, %c48_320], %195 {strides = array<i32>} : memref<18x144xf32, #tpu.memory_space<vmem>>, vector<1x16xf32>,
    %c59 = arith.constant 59 : index
    %c0_321 = arith.constant 0 : index
    %197 = vector.load %arg11[%c59, %c0_321] : memref<98x16xf32, #tpu.memory_space<vmem>>, vector<1x16xf32>
    %c10_322 = arith.constant 10 : index
    %c64_323 = arith.constant 64 : index
    %198 = vector.load %arg12[%c10_322, %c64_323] : memref<18x144xf32, #tpu.memory_space<vmem>>, vector<1x16xf32>
    tpu.vector_store %arg12[%c10_322, %c64_323], %197 {strides = array<i32>} : memref<18x144xf32, #tpu.memory_space<vmem>>, vector<1x16xf32>,
    %c60 = arith.constant 60 : index
    %c0_324 = arith.constant 0 : index
    %199 = vector.load %arg11[%c60, %c0_324] : memref<98x16xf32, #tpu.memory_space<vmem>>, vector<1x16xf32>
    %c10_325 = arith.constant 10 : index
    %c80_326 = arith.constant 80 : index
    %200 = vector.load %arg12[%c10_325, %c80_326] : memref<18x144xf32, #tpu.memory_space<vmem>>, vector<1x16xf32>
    tpu.vector_store %arg12[%c10_325, %c80_326], %199 {strides = array<i32>} : memref<18x144xf32, #tpu.memory_space<vmem>>, vector<1x16xf32>,
    %c65_327 = arith.constant 65 : index
    %c0_328 = arith.constant 0 : index
    %201 = vector.load %arg11[%c65_327, %c0_328] : memref<98x16xf32, #tpu.memory_space<vmem>>, vector<1x16xf32>
    %c10_329 = arith.constant 10 : index
    %c96_330 = arith.constant 96 : index
    %202 = vector.load %arg12[%c10_329, %c96_330] : memref<18x144xf32, #tpu.memory_space<vmem>>, vector<1x16xf32>
    tpu.vector_store %arg12[%c10_329, %c96_330], %201 {strides = array<i32>} : memref<18x144xf32, #tpu.memory_space<vmem>>, vector<1x16xf32>,
    %c66 = arith.constant 66 : index
    %c0_331 = arith.constant 0 : index
    %203 = vector.load %arg11[%c66, %c0_331] : memref<98x16xf32, #tpu.memory_space<vmem>>, vector<1x16xf32>
    %c10_332 = arith.constant 10 : index
    %c112_333 = arith.constant 112 : index
    %204 = vector.load %arg12[%c10_332, %c112_333] : memref<18x144xf32, #tpu.memory_space<vmem>>, vector<1x16xf32>
    tpu.vector_store %arg12[%c10_332, %c112_333], %203 {strides = array<i32>} : memref<18x144xf32, #tpu.memory_space<vmem>>, vector<1x16xf32>,
    %c67 = arith.constant 67 : index
    %c0_334 = arith.constant 0 : index
    %205 = vector.load %arg11[%c67, %c0_334] : memref<98x16xf32, #tpu.memory_space<vmem>>, vector<1x16xf32>
    %c10_335 = arith.constant 10 : index
    %c128_336 = arith.constant 128 : index
    %206 = vector.load %arg12[%c10_335, %c128_336] : memref<18x144xf32, #tpu.memory_space<vmem>>, vector<1x16xf32>
    tpu.vector_store %arg12[%c10_335, %c128_336], %205 {strides = array<i32>} : memref<18x144xf32, #tpu.memory_space<vmem>>, vector<1x16xf32>,
    %c53_337 = arith.constant 53 : index
    %c0_338 = arith.constant 0 : index
    %207 = vector.load %arg11[%c53_337, %c0_338] : memref<98x16xf32, #tpu.memory_space<vmem>>, vector<1x16xf32>
    %c11_339 = arith.constant 11 : index
    %c0_340 = arith.constant 0 : index
    %208 = vector.load %arg12[%c11_339, %c0_340] : memref<18x144xf32, #tpu.memory_space<vmem>>, vector<1x16xf32>
    tpu.vector_store %arg12[%c11_339, %c0_340], %207 {strides = array<i32>} : memref<18x144xf32, #tpu.memory_space<vmem>>, vector<1x16xf32>,
    %c54 = arith.constant 54 : index
    %c0_341 = arith.constant 0 : index
    %209 = vector.load %arg11[%c54, %c0_341] : memref<98x16xf32, #tpu.memory_space<vmem>>, vector<1x16xf32>
    %c11_342 = arith.constant 11 : index
    %c16_343 = arith.constant 16 : index
    %210 = vector.load %arg12[%c11_342, %c16_343] : memref<18x144xf32, #tpu.memory_space<vmem>>, vector<1x16xf32>
    tpu.vector_store %arg12[%c11_342, %c16_343], %209 {strides = array<i32>} : memref<18x144xf32, #tpu.memory_space<vmem>>, vector<1x16xf32>,
    %c55 = arith.constant 55 : index
    %c0_344 = arith.constant 0 : index
    %211 = vector.load %arg11[%c55, %c0_344] : memref<98x16xf32, #tpu.memory_space<vmem>>, vector<1x16xf32>
    %c11_345 = arith.constant 11 : index
    %c32_346 = arith.constant 32 : index
    %212 = vector.load %arg12[%c11_345, %c32_346] : memref<18x144xf32, #tpu.memory_space<vmem>>, vector<1x16xf32>
    tpu.vector_store %arg12[%c11_345, %c32_346], %211 {strides = array<i32>} : memref<18x144xf32, #tpu.memory_space<vmem>>, vector<1x16xf32>,
    %c60_347 = arith.constant 60 : index
    %c0_348 = arith.constant 0 : index
    %213 = vector.load %arg11[%c60_347, %c0_348] : memref<98x16xf32, #tpu.memory_space<vmem>>, vector<1x16xf32>
    %c11_349 = arith.constant 11 : index
    %c48_350 = arith.constant 48 : index
    %214 = vector.load %arg12[%c11_349, %c48_350] : memref<18x144xf32, #tpu.memory_space<vmem>>, vector<1x16xf32>
    tpu.vector_store %arg12[%c11_349, %c48_350], %213 {strides = array<i32>} : memref<18x144xf32, #tpu.memory_space<vmem>>, vector<1x16xf32>,
    %c61 = arith.constant 61 : index
    %c0_351 = arith.constant 0 : index
    %215 = vector.load %arg11[%c61, %c0_351] : memref<98x16xf32, #tpu.memory_space<vmem>>, vector<1x16xf32>
    %c11_352 = arith.constant 11 : index
    %c64_353 = arith.constant 64 : index
    %216 = vector.load %arg12[%c11_352, %c64_353] : memref<18x144xf32, #tpu.memory_space<vmem>>, vector<1x16xf32>
    tpu.vector_store %arg12[%c11_352, %c64_353], %215 {strides = array<i32>} : memref<18x144xf32, #tpu.memory_space<vmem>>, vector<1x16xf32>,
    %c62 = arith.constant 62 : index
    %c0_354 = arith.constant 0 : index
    %217 = vector.load %arg11[%c62, %c0_354] : memref<98x16xf32, #tpu.memory_space<vmem>>, vector<1x16xf32>
    %c11_355 = arith.constant 11 : index
    %c80_356 = arith.constant 80 : index
    %218 = vector.load %arg12[%c11_355, %c80_356] : memref<18x144xf32, #tpu.memory_space<vmem>>, vector<1x16xf32>
    tpu.vector_store %arg12[%c11_355, %c80_356], %217 {strides = array<i32>} : memref<18x144xf32, #tpu.memory_space<vmem>>, vector<1x16xf32>,
    %c67_357 = arith.constant 67 : index
    %c0_358 = arith.constant 0 : index
    %219 = vector.load %arg11[%c67_357, %c0_358] : memref<98x16xf32, #tpu.memory_space<vmem>>, vector<1x16xf32>
    %c11_359 = arith.constant 11 : index
    %c96_360 = arith.constant 96 : index
    %220 = vector.load %arg12[%c11_359, %c96_360] : memref<18x144xf32, #tpu.memory_space<vmem>>, vector<1x16xf32>
    tpu.vector_store %arg12[%c11_359, %c96_360], %219 {strides = array<i32>} : memref<18x144xf32, #tpu.memory_space<vmem>>, vector<1x16xf32>,
    %c68 = arith.constant 68 : index
    %c0_361 = arith.constant 0 : index
    %221 = vector.load %arg11[%c68, %c0_361] : memref<98x16xf32, #tpu.memory_space<vmem>>, vector<1x16xf32>
    %c11_362 = arith.constant 11 : index
    %c112_363 = arith.constant 112 : index
    %222 = vector.load %arg12[%c11_362, %c112_363] : memref<18x144xf32, #tpu.memory_space<vmem>>, vector<1x16xf32>
    tpu.vector_store %arg12[%c11_362, %c112_363], %221 {strides = array<i32>} : memref<18x144xf32, #tpu.memory_space<vmem>>, vector<1x16xf32>,
    %c69 = arith.constant 69 : index
    %c0_364 = arith.constant 0 : index
    %223 = vector.load %arg11[%c69, %c0_364] : memref<98x16xf32, #tpu.memory_space<vmem>>, vector<1x16xf32>
    %c11_365 = arith.constant 11 : index
    %c128_366 = arith.constant 128 : index
    %224 = vector.load %arg12[%c11_365, %c128_366] : memref<18x144xf32, #tpu.memory_space<vmem>>, vector<1x16xf32>
    tpu.vector_store %arg12[%c11_365, %c128_366], %223 {strides = array<i32>} : memref<18x144xf32, #tpu.memory_space<vmem>>, vector<1x16xf32>,
    %c63_367 = arith.constant 63 : index
    %c0_368 = arith.constant 0 : index
    %225 = vector.load %arg11[%c63_367, %c0_368] : memref<98x16xf32, #tpu.memory_space<vmem>>, vector<1x16xf32>
    %c12_369 = arith.constant 12 : index
    %c0_370 = arith.constant 0 : index
    %226 = vector.load %arg12[%c12_369, %c0_370] : memref<18x144xf32, #tpu.memory_space<vmem>>, vector<1x16xf32>
    tpu.vector_store %arg12[%c12_369, %c0_370], %225 {strides = array<i32>} : memref<18x144xf32, #tpu.memory_space<vmem>>, vector<1x16xf32>,
    %c64_371 = arith.constant 64 : index
    %c0_372 = arith.constant 0 : index
    %227 = vector.load %arg11[%c64_371, %c0_372] : memref<98x16xf32, #tpu.memory_space<vmem>>, vector<1x16xf32>
    %c12_373 = arith.constant 12 : index
    %c16_374 = arith.constant 16 : index
    %228 = vector.load %arg12[%c12_373, %c16_374] : memref<18x144xf32, #tpu.memory_space<vmem>>, vector<1x16xf32>
    tpu.vector_store %arg12[%c12_373, %c16_374], %227 {strides = array<i32>} : memref<18x144xf32, #tpu.memory_space<vmem>>, vector<1x16xf32>,
    %c65_375 = arith.constant 65 : index
    %c0_376 = arith.constant 0 : index
    %229 = vector.load %arg11[%c65_375, %c0_376] : memref<98x16xf32, #tpu.memory_space<vmem>>, vector<1x16xf32>
    %c12_377 = arith.constant 12 : index
    %c32_378 = arith.constant 32 : index
    %230 = vector.load %arg12[%c12_377, %c32_378] : memref<18x144xf32, #tpu.memory_space<vmem>>, vector<1x16xf32>
    tpu.vector_store %arg12[%c12_377, %c32_378], %229 {strides = array<i32>} : memref<18x144xf32, #tpu.memory_space<vmem>>, vector<1x16xf32>,
    %c70 = arith.constant 70 : index
    %c0_379 = arith.constant 0 : index
    %231 = vector.load %arg11[%c70, %c0_379] : memref<98x16xf32, #tpu.memory_space<vmem>>, vector<1x16xf32>
    %c12_380 = arith.constant 12 : index
    %c48_381 = arith.constant 48 : index
    %232 = vector.load %arg12[%c12_380, %c48_381] : memref<18x144xf32, #tpu.memory_space<vmem>>, vector<1x16xf32>
    tpu.vector_store %arg12[%c12_380, %c48_381], %231 {strides = array<i32>} : memref<18x144xf32, #tpu.memory_space<vmem>>, vector<1x16xf32>,
    %c71 = arith.constant 71 : index
    %c0_382 = arith.constant 0 : index
    %233 = vector.load %arg11[%c71, %c0_382] : memref<98x16xf32, #tpu.memory_space<vmem>>, vector<1x16xf32>
    %c12_383 = arith.constant 12 : index
    %c64_384 = arith.constant 64 : index
    %234 = vector.load %arg12[%c12_383, %c64_384] : memref<18x144xf32, #tpu.memory_space<vmem>>, vector<1x16xf32>
    tpu.vector_store %arg12[%c12_383, %c64_384], %233 {strides = array<i32>} : memref<18x144xf32, #tpu.memory_space<vmem>>, vector<1x16xf32>,
    %c72 = arith.constant 72 : index
    %c0_385 = arith.constant 0 : index
    %235 = vector.load %arg11[%c72, %c0_385] : memref<98x16xf32, #tpu.memory_space<vmem>>, vector<1x16xf32>
    %c12_386 = arith.constant 12 : index
    %c80_387 = arith.constant 80 : index
    %236 = vector.load %arg12[%c12_386, %c80_387] : memref<18x144xf32, #tpu.memory_space<vmem>>, vector<1x16xf32>
    tpu.vector_store %arg12[%c12_386, %c80_387], %235 {strides = array<i32>} : memref<18x144xf32, #tpu.memory_space<vmem>>, vector<1x16xf32>,
    %c77 = arith.constant 77 : index
    %c0_388 = arith.constant 0 : index
    %237 = vector.load %arg11[%c77, %c0_388] : memref<98x16xf32, #tpu.memory_space<vmem>>, vector<1x16xf32>
    %c12_389 = arith.constant 12 : index
    %c96_390 = arith.constant 96 : index
    %238 = vector.load %arg12[%c12_389, %c96_390] : memref<18x144xf32, #tpu.memory_space<vmem>>, vector<1x16xf32>
    tpu.vector_store %arg12[%c12_389, %c96_390], %237 {strides = array<i32>} : memref<18x144xf32, #tpu.memory_space<vmem>>, vector<1x16xf32>,
    %c78 = arith.constant 78 : index
    %c0_391 = arith.constant 0 : index
    %239 = vector.load %arg11[%c78, %c0_391] : memref<98x16xf32, #tpu.memory_space<vmem>>, vector<1x16xf32>
    %c12_392 = arith.constant 12 : index
    %c112_393 = arith.constant 112 : index
    %240 = vector.load %arg12[%c12_392, %c112_393] : memref<18x144xf32, #tpu.memory_space<vmem>>, vector<1x16xf32>
    tpu.vector_store %arg12[%c12_392, %c112_393], %239 {strides = array<i32>} : memref<18x144xf32, #tpu.memory_space<vmem>>, vector<1x16xf32>,
    %c79 = arith.constant 79 : index
    %c0_394 = arith.constant 0 : index
    %241 = vector.load %arg11[%c79, %c0_394] : memref<98x16xf32, #tpu.memory_space<vmem>>, vector<1x16xf32>
    %c12_395 = arith.constant 12 : index
    %c128_396 = arith.constant 128 : index
    %242 = vector.load %arg12[%c12_395, %c128_396] : memref<18x144xf32, #tpu.memory_space<vmem>>, vector<1x16xf32>
    tpu.vector_store %arg12[%c12_395, %c128_396], %241 {strides = array<i32>} : memref<18x144xf32, #tpu.memory_space<vmem>>, vector<1x16xf32>,
    %c65_397 = arith.constant 65 : index
    %c0_398 = arith.constant 0 : index
    %243 = vector.load %arg11[%c65_397, %c0_398] : memref<98x16xf32, #tpu.memory_space<vmem>>, vector<1x16xf32>
    %c13_399 = arith.constant 13 : index
    %c0_400 = arith.constant 0 : index
    %244 = vector.load %arg12[%c13_399, %c0_400] : memref<18x144xf32, #tpu.memory_space<vmem>>, vector<1x16xf32>
    tpu.vector_store %arg12[%c13_399, %c0_400], %243 {strides = array<i32>} : memref<18x144xf32, #tpu.memory_space<vmem>>, vector<1x16xf32>,
    %c66_401 = arith.constant 66 : index
    %c0_402 = arith.constant 0 : index
    %245 = vector.load %arg11[%c66_401, %c0_402] : memref<98x16xf32, #tpu.memory_space<vmem>>, vector<1x16xf32>
    %c13_403 = arith.constant 13 : index
    %c16_404 = arith.constant 16 : index
    %246 = vector.load %arg12[%c13_403, %c16_404] : memref<18x144xf32, #tpu.memory_space<vmem>>, vector<1x16xf32>
    tpu.vector_store %arg12[%c13_403, %c16_404], %245 {strides = array<i32>} : memref<18x144xf32, #tpu.memory_space<vmem>>, vector<1x16xf32>,
    %c67_405 = arith.constant 67 : index
    %c0_406 = arith.constant 0 : index
    %247 = vector.load %arg11[%c67_405, %c0_406] : memref<98x16xf32, #tpu.memory_space<vmem>>, vector<1x16xf32>
    %c13_407 = arith.constant 13 : index
    %c32_408 = arith.constant 32 : index
    %248 = vector.load %arg12[%c13_407, %c32_408] : memref<18x144xf32, #tpu.memory_space<vmem>>, vector<1x16xf32>
    tpu.vector_store %arg12[%c13_407, %c32_408], %247 {strides = array<i32>} : memref<18x144xf32, #tpu.memory_space<vmem>>, vector<1x16xf32>,
    %c72_409 = arith.constant 72 : index
    %c0_410 = arith.constant 0 : index
    %249 = vector.load %arg11[%c72_409, %c0_410] : memref<98x16xf32, #tpu.memory_space<vmem>>, vector<1x16xf32>
    %c13_411 = arith.constant 13 : index
    %c48_412 = arith.constant 48 : index
    %250 = vector.load %arg12[%c13_411, %c48_412] : memref<18x144xf32, #tpu.memory_space<vmem>>, vector<1x16xf32>
    tpu.vector_store %arg12[%c13_411, %c48_412], %249 {strides = array<i32>} : memref<18x144xf32, #tpu.memory_space<vmem>>, vector<1x16xf32>,
    %c73 = arith.constant 73 : index
    %c0_413 = arith.constant 0 : index
    %251 = vector.load %arg11[%c73, %c0_413] : memref<98x16xf32, #tpu.memory_space<vmem>>, vector<1x16xf32>
    %c13_414 = arith.constant 13 : index
    %c64_415 = arith.constant 64 : index
    %252 = vector.load %arg12[%c13_414, %c64_415] : memref<18x144xf32, #tpu.memory_space<vmem>>, vector<1x16xf32>
    tpu.vector_store %arg12[%c13_414, %c64_415], %251 {strides = array<i32>} : memref<18x144xf32, #tpu.memory_space<vmem>>, vector<1x16xf32>,
    %c74 = arith.constant 74 : index
    %c0_416 = arith.constant 0 : index
    %253 = vector.load %arg11[%c74, %c0_416] : memref<98x16xf32, #tpu.memory_space<vmem>>, vector<1x16xf32>
    %c13_417 = arith.constant 13 : index
    %c80_418 = arith.constant 80 : index
    %254 = vector.load %arg12[%c13_417, %c80_418] : memref<18x144xf32, #tpu.memory_space<vmem>>, vector<1x16xf32>
    tpu.vector_store %arg12[%c13_417, %c80_418], %253 {strides = array<i32>} : memref<18x144xf32, #tpu.memory_space<vmem>>, vector<1x16xf32>,
    %c79_419 = arith.constant 79 : index
    %c0_420 = arith.constant 0 : index
    %255 = vector.load %arg11[%c79_419, %c0_420] : memref<98x16xf32, #tpu.memory_space<vmem>>, vector<1x16xf32>
    %c13_421 = arith.constant 13 : index
    %c96_422 = arith.constant 96 : index
    %256 = vector.load %arg12[%c13_421, %c96_422] : memref<18x144xf32, #tpu.memory_space<vmem>>, vector<1x16xf32>
    tpu.vector_store %arg12[%c13_421, %c96_422], %255 {strides = array<i32>} : memref<18x144xf32, #tpu.memory_space<vmem>>, vector<1x16xf32>,
    %c80_423 = arith.constant 80 : index
    %c0_424 = arith.constant 0 : index
    %257 = vector.load %arg11[%c80_423, %c0_424] : memref<98x16xf32, #tpu.memory_space<vmem>>, vector<1x16xf32>
    %c13_425 = arith.constant 13 : index
    %c112_426 = arith.constant 112 : index
    %258 = vector.load %arg12[%c13_425, %c112_426] : memref<18x144xf32, #tpu.memory_space<vmem>>, vector<1x16xf32>
    tpu.vector_store %arg12[%c13_425, %c112_426], %257 {strides = array<i32>} : memref<18x144xf32, #tpu.memory_space<vmem>>, vector<1x16xf32>,
    %c81 = arith.constant 81 : index
    %c0_427 = arith.constant 0 : index
    %259 = vector.load %arg11[%c81, %c0_427] : memref<98x16xf32, #tpu.memory_space<vmem>>, vector<1x16xf32>
    %c13_428 = arith.constant 13 : index
    %c128_429 = arith.constant 128 : index
    %260 = vector.load %arg12[%c13_428, %c128_429] : memref<18x144xf32, #tpu.memory_space<vmem>>, vector<1x16xf32>
    tpu.vector_store %arg12[%c13_428, %c128_429], %259 {strides = array<i32>} : memref<18x144xf32, #tpu.memory_space<vmem>>, vector<1x16xf32>,
    %c67_430 = arith.constant 67 : index
    %c0_431 = arith.constant 0 : index
    %261 = vector.load %arg11[%c67_430, %c0_431] : memref<98x16xf32, #tpu.memory_space<vmem>>, vector<1x16xf32>
    %c14_432 = arith.constant 14 : index
    %c0_433 = arith.constant 0 : index
    %262 = vector.load %arg12[%c14_432, %c0_433] : memref<18x144xf32, #tpu.memory_space<vmem>>, vector<1x16xf32>
    tpu.vector_store %arg12[%c14_432, %c0_433], %261 {strides = array<i32>} : memref<18x144xf32, #tpu.memory_space<vmem>>, vector<1x16xf32>,
    %c68_434 = arith.constant 68 : index
    %c0_435 = arith.constant 0 : index
    %263 = vector.load %arg11[%c68_434, %c0_435] : memref<98x16xf32, #tpu.memory_space<vmem>>, vector<1x16xf32>
    %c14_436 = arith.constant 14 : index
    %c16_437 = arith.constant 16 : index
    %264 = vector.load %arg12[%c14_436, %c16_437] : memref<18x144xf32, #tpu.memory_space<vmem>>, vector<1x16xf32>
    tpu.vector_store %arg12[%c14_436, %c16_437], %263 {strides = array<i32>} : memref<18x144xf32, #tpu.memory_space<vmem>>, vector<1x16xf32>,
    %c69_438 = arith.constant 69 : index
    %c0_439 = arith.constant 0 : index
    %265 = vector.load %arg11[%c69_438, %c0_439] : memref<98x16xf32, #tpu.memory_space<vmem>>, vector<1x16xf32>
    %c14_440 = arith.constant 14 : index
    %c32_441 = arith.constant 32 : index
    %266 = vector.load %arg12[%c14_440, %c32_441] : memref<18x144xf32, #tpu.memory_space<vmem>>, vector<1x16xf32>
    tpu.vector_store %arg12[%c14_440, %c32_441], %265 {strides = array<i32>} : memref<18x144xf32, #tpu.memory_space<vmem>>, vector<1x16xf32>,
    %c74_442 = arith.constant 74 : index
    %c0_443 = arith.constant 0 : index
    %267 = vector.load %arg11[%c74_442, %c0_443] : memref<98x16xf32, #tpu.memory_space<vmem>>, vector<1x16xf32>
    %c14_444 = arith.constant 14 : index
    %c48_445 = arith.constant 48 : index
    %268 = vector.load %arg12[%c14_444, %c48_445] : memref<18x144xf32, #tpu.memory_space<vmem>>, vector<1x16xf32>
    tpu.vector_store %arg12[%c14_444, %c48_445], %267 {strides = array<i32>} : memref<18x144xf32, #tpu.memory_space<vmem>>, vector<1x16xf32>,
    %c75 = arith.constant 75 : index
    %c0_446 = arith.constant 0 : index
    %269 = vector.load %arg11[%c75, %c0_446] : memref<98x16xf32, #tpu.memory_space<vmem>>, vector<1x16xf32>
    %c14_447 = arith.constant 14 : index
    %c64_448 = arith.constant 64 : index
    %270 = vector.load %arg12[%c14_447, %c64_448] : memref<18x144xf32, #tpu.memory_space<vmem>>, vector<1x16xf32>
    tpu.vector_store %arg12[%c14_447, %c64_448], %269 {strides = array<i32>} : memref<18x144xf32, #tpu.memory_space<vmem>>, vector<1x16xf32>,
    %c76 = arith.constant 76 : index
    %c0_449 = arith.constant 0 : index
    %271 = vector.load %arg11[%c76, %c0_449] : memref<98x16xf32, #tpu.memory_space<vmem>>, vector<1x16xf32>
    %c14_450 = arith.constant 14 : index
    %c80_451 = arith.constant 80 : index
    %272 = vector.load %arg12[%c14_450, %c80_451] : memref<18x144xf32, #tpu.memory_space<vmem>>, vector<1x16xf32>
    tpu.vector_store %arg12[%c14_450, %c80_451], %271 {strides = array<i32>} : memref<18x144xf32, #tpu.memory_space<vmem>>, vector<1x16xf32>,
    %c81_452 = arith.constant 81 : index
    %c0_453 = arith.constant 0 : index
    %273 = vector.load %arg11[%c81_452, %c0_453] : memref<98x16xf32, #tpu.memory_space<vmem>>, vector<1x16xf32>
    %c14_454 = arith.constant 14 : index
    %c96_455 = arith.constant 96 : index
    %274 = vector.load %arg12[%c14_454, %c96_455] : memref<18x144xf32, #tpu.memory_space<vmem>>, vector<1x16xf32>
    tpu.vector_store %arg12[%c14_454, %c96_455], %273 {strides = array<i32>} : memref<18x144xf32, #tpu.memory_space<vmem>>, vector<1x16xf32>,
    %c82 = arith.constant 82 : index
    %c0_456 = arith.constant 0 : index
    %275 = vector.load %arg11[%c82, %c0_456] : memref<98x16xf32, #tpu.memory_space<vmem>>, vector<1x16xf32>
    %c14_457 = arith.constant 14 : index
    %c112_458 = arith.constant 112 : index
    %276 = vector.load %arg12[%c14_457, %c112_458] : memref<18x144xf32, #tpu.memory_space<vmem>>, vector<1x16xf32>
    tpu.vector_store %arg12[%c14_457, %c112_458], %275 {strides = array<i32>} : memref<18x144xf32, #tpu.memory_space<vmem>>, vector<1x16xf32>,
    %c83 = arith.constant 83 : index
    %c0_459 = arith.constant 0 : index
    %277 = vector.load %arg11[%c83, %c0_459] : memref<98x16xf32, #tpu.memory_space<vmem>>, vector<1x16xf32>
    %c14_460 = arith.constant 14 : index
    %c128_461 = arith.constant 128 : index
    %278 = vector.load %arg12[%c14_460, %c128_461] : memref<18x144xf32, #tpu.memory_space<vmem>>, vector<1x16xf32>
    tpu.vector_store %arg12[%c14_460, %c128_461], %277 {strides = array<i32>} : memref<18x144xf32, #tpu.memory_space<vmem>>, vector<1x16xf32>,
    %c77_462 = arith.constant 77 : index
    %c0_463 = arith.constant 0 : index
    %279 = vector.load %arg11[%c77_462, %c0_463] : memref<98x16xf32, #tpu.memory_space<vmem>>, vector<1x16xf32>
    %c15_464 = arith.constant 15 : index
    %c0_465 = arith.constant 0 : index
    %280 = vector.load %arg12[%c15_464, %c0_465] : memref<18x144xf32, #tpu.memory_space<vmem>>, vector<1x16xf32>
    tpu.vector_store %arg12[%c15_464, %c0_465], %279 {strides = array<i32>} : memref<18x144xf32, #tpu.memory_space<vmem>>, vector<1x16xf32>,
    %c78_466 = arith.constant 78 : index
    %c0_467 = arith.constant 0 : index
    %281 = vector.load %arg11[%c78_466, %c0_467] : memref<98x16xf32, #tpu.memory_space<vmem>>, vector<1x16xf32>
    %c15_468 = arith.constant 15 : index
    %c16_469 = arith.constant 16 : index
    %282 = vector.load %arg12[%c15_468, %c16_469] : memref<18x144xf32, #tpu.memory_space<vmem>>, vector<1x16xf32>
    tpu.vector_store %arg12[%c15_468, %c16_469], %281 {strides = array<i32>} : memref<18x144xf32, #tpu.memory_space<vmem>>, vector<1x16xf32>,
    %c79_470 = arith.constant 79 : index
    %c0_471 = arith.constant 0 : index
    %283 = vector.load %arg11[%c79_470, %c0_471] : memref<98x16xf32, #tpu.memory_space<vmem>>, vector<1x16xf32>
    %c15_472 = arith.constant 15 : index
    %c32_473 = arith.constant 32 : index
    %284 = vector.load %arg12[%c15_472, %c32_473] : memref<18x144xf32, #tpu.memory_space<vmem>>, vector<1x16xf32>
    tpu.vector_store %arg12[%c15_472, %c32_473], %283 {strides = array<i32>} : memref<18x144xf32, #tpu.memory_space<vmem>>, vector<1x16xf32>,
    %c84 = arith.constant 84 : index
    %c0_474 = arith.constant 0 : index
    %285 = vector.load %arg11[%c84, %c0_474] : memref<98x16xf32, #tpu.memory_space<vmem>>, vector<1x16xf32>
    %c15_475 = arith.constant 15 : index
    %c48_476 = arith.constant 48 : index
    %286 = vector.load %arg12[%c15_475, %c48_476] : memref<18x144xf32, #tpu.memory_space<vmem>>, vector<1x16xf32>
    tpu.vector_store %arg12[%c15_475, %c48_476], %285 {strides = array<i32>} : memref<18x144xf32, #tpu.memory_space<vmem>>, vector<1x16xf32>,
    %c85 = arith.constant 85 : index
    %c0_477 = arith.constant 0 : index
    %287 = vector.load %arg11[%c85, %c0_477] : memref<98x16xf32, #tpu.memory_space<vmem>>, vector<1x16xf32>
    %c15_478 = arith.constant 15 : index
    %c64_479 = arith.constant 64 : index
    %288 = vector.load %arg12[%c15_478, %c64_479] : memref<18x144xf32, #tpu.memory_space<vmem>>, vector<1x16xf32>
    tpu.vector_store %arg12[%c15_478, %c64_479], %287 {strides = array<i32>} : memref<18x144xf32, #tpu.memory_space<vmem>>, vector<1x16xf32>,
    %c86 = arith.constant 86 : index
    %c0_480 = arith.constant 0 : index
    %289 = vector.load %arg11[%c86, %c0_480] : memref<98x16xf32, #tpu.memory_space<vmem>>, vector<1x16xf32>
    %c15_481 = arith.constant 15 : index
    %c80_482 = arith.constant 80 : index
    %290 = vector.load %arg12[%c15_481, %c80_482] : memref<18x144xf32, #tpu.memory_space<vmem>>, vector<1x16xf32>
    tpu.vector_store %arg12[%c15_481, %c80_482], %289 {strides = array<i32>} : memref<18x144xf32, #tpu.memory_space<vmem>>, vector<1x16xf32>,
    %c91 = arith.constant 91 : index
    %c0_483 = arith.constant 0 : index
    %291 = vector.load %arg11[%c91, %c0_483] : memref<98x16xf32, #tpu.memory_space<vmem>>, vector<1x16xf32>
    %c15_484 = arith.constant 15 : index
    %c96_485 = arith.constant 96 : index
    %292 = vector.load %arg12[%c15_484, %c96_485] : memref<18x144xf32, #tpu.memory_space<vmem>>, vector<1x16xf32>
    tpu.vector_store %arg12[%c15_484, %c96_485], %291 {strides = array<i32>} : memref<18x144xf32, #tpu.memory_space<vmem>>, vector<1x16xf32>,
    %c92 = arith.constant 92 : index
    %c0_486 = arith.constant 0 : index
    %293 = vector.load %arg11[%c92, %c0_486] : memref<98x16xf32, #tpu.memory_space<vmem>>, vector<1x16xf32>
    %c15_487 = arith.constant 15 : index
    %c112_488 = arith.constant 112 : index
    %294 = vector.load %arg12[%c15_487, %c112_488] : memref<18x144xf32, #tpu.memory_space<vmem>>, vector<1x16xf32>
    tpu.vector_store %arg12[%c15_487, %c112_488], %293 {strides = array<i32>} : memref<18x144xf32, #tpu.memory_space<vmem>>, vector<1x16xf32>,
    %c93 = arith.constant 93 : index
    %c0_489 = arith.constant 0 : index
    %295 = vector.load %arg11[%c93, %c0_489] : memref<98x16xf32, #tpu.memory_space<vmem>>, vector<1x16xf32>
    %c15_490 = arith.constant 15 : index
    %c128_491 = arith.constant 128 : index
    %296 = vector.load %arg12[%c15_490, %c128_491] : memref<18x144xf32, #tpu.memory_space<vmem>>, vector<1x16xf32>
    tpu.vector_store %arg12[%c15_490, %c128_491], %295 {strides = array<i32>} : memref<18x144xf32, #tpu.memory_space<vmem>>, vector<1x16xf32>,
    %c79_492 = arith.constant 79 : index
    %c0_493 = arith.constant 0 : index
    %297 = vector.load %arg11[%c79_492, %c0_493] : memref<98x16xf32, #tpu.memory_space<vmem>>, vector<1x16xf32>
    %c16_494 = arith.constant 16 : index
    %c0_495 = arith.constant 0 : index
    %298 = vector.load %arg12[%c16_494, %c0_495] : memref<18x144xf32, #tpu.memory_space<vmem>>, vector<1x16xf32>
    tpu.vector_store %arg12[%c16_494, %c0_495], %297 {strides = array<i32>} : memref<18x144xf32, #tpu.memory_space<vmem>>, vector<1x16xf32>,
    %c80_496 = arith.constant 80 : index
    %c0_497 = arith.constant 0 : index
    %299 = vector.load %arg11[%c80_496, %c0_497] : memref<98x16xf32, #tpu.memory_space<vmem>>, vector<1x16xf32>
    %c16_498 = arith.constant 16 : index
    %c16_499 = arith.constant 16 : index
    %300 = vector.load %arg12[%c16_498, %c16_499] : memref<18x144xf32, #tpu.memory_space<vmem>>, vector<1x16xf32>
    tpu.vector_store %arg12[%c16_498, %c16_499], %299 {strides = array<i32>} : memref<18x144xf32, #tpu.memory_space<vmem>>, vector<1x16xf32>,
    %c81_500 = arith.constant 81 : index
    %c0_501 = arith.constant 0 : index
    %301 = vector.load %arg11[%c81_500, %c0_501] : memref<98x16xf32, #tpu.memory_space<vmem>>, vector<1x16xf32>
    %c16_502 = arith.constant 16 : index
    %c32_503 = arith.constant 32 : index
    %302 = vector.load %arg12[%c16_502, %c32_503] : memref<18x144xf32, #tpu.memory_space<vmem>>, vector<1x16xf32>
    tpu.vector_store %arg12[%c16_502, %c32_503], %301 {strides = array<i32>} : memref<18x144xf32, #tpu.memory_space<vmem>>, vector<1x16xf32>,
    %c86_504 = arith.constant 86 : index
    %c0_505 = arith.constant 0 : index
    %303 = vector.load %arg11[%c86_504, %c0_505] : memref<98x16xf32, #tpu.memory_space<vmem>>, vector<1x16xf32>
    %c16_506 = arith.constant 16 : index
    %c48_507 = arith.constant 48 : index
    %304 = vector.load %arg12[%c16_506, %c48_507] : memref<18x144xf32, #tpu.memory_space<vmem>>, vector<1x16xf32>
    tpu.vector_store %arg12[%c16_506, %c48_507], %303 {strides = array<i32>} : memref<18x144xf32, #tpu.memory_space<vmem>>, vector<1x16xf32>,
    %c87 = arith.constant 87 : index
    %c0_508 = arith.constant 0 : index
    %305 = vector.load %arg11[%c87, %c0_508] : memref<98x16xf32, #tpu.memory_space<vmem>>, vector<1x16xf32>
    %c16_509 = arith.constant 16 : index
    %c64_510 = arith.constant 64 : index
    %306 = vector.load %arg12[%c16_509, %c64_510] : memref<18x144xf32, #tpu.memory_space<vmem>>, vector<1x16xf32>
    tpu.vector_store %arg12[%c16_509, %c64_510], %305 {strides = array<i32>} : memref<18x144xf32, #tpu.memory_space<vmem>>, vector<1x16xf32>,
    %c88 = arith.constant 88 : index
    %c0_511 = arith.constant 0 : index
    %307 = vector.load %arg11[%c88, %c0_511] : memref<98x16xf32, #tpu.memory_space<vmem>>, vector<1x16xf32>
    %c16_512 = arith.constant 16 : index
    %c80_513 = arith.constant 80 : index
    %308 = vector.load %arg12[%c16_512, %c80_513] : memref<18x144xf32, #tpu.memory_space<vmem>>, vector<1x16xf32>
    tpu.vector_store %arg12[%c16_512, %c80_513], %307 {strides = array<i32>} : memref<18x144xf32, #tpu.memory_space<vmem>>, vector<1x16xf32>,
    %c93_514 = arith.constant 93 : index
    %c0_515 = arith.constant 0 : index
    %309 = vector.load %arg11[%c93_514, %c0_515] : memref<98x16xf32, #tpu.memory_space<vmem>>, vector<1x16xf32>
    %c16_516 = arith.constant 16 : index
    %c96_517 = arith.constant 96 : index
    %310 = vector.load %arg12[%c16_516, %c96_517] : memref<18x144xf32, #tpu.memory_space<vmem>>, vector<1x16xf32>
    tpu.vector_store %arg12[%c16_516, %c96_517], %309 {strides = array<i32>} : memref<18x144xf32, #tpu.memory_space<vmem>>, vector<1x16xf32>,
    %c94 = arith.constant 94 : index
    %c0_518 = arith.constant 0 : index
    %311 = vector.load %arg11[%c94, %c0_518] : memref<98x16xf32, #tpu.memory_space<vmem>>, vector<1x16xf32>
    %c16_519 = arith.constant 16 : index
    %c112_520 = arith.constant 112 : index
    %312 = vector.load %arg12[%c16_519, %c112_520] : memref<18x144xf32, #tpu.memory_space<vmem>>, vector<1x16xf32>
    tpu.vector_store %arg12[%c16_519, %c112_520], %311 {strides = array<i32>} : memref<18x144xf32, #tpu.memory_space<vmem>>, vector<1x16xf32>,
    %c95 = arith.constant 95 : index
    %c0_521 = arith.constant 0 : index
    %313 = vector.load %arg11[%c95, %c0_521] : memref<98x16xf32, #tpu.memory_space<vmem>>, vector<1x16xf32>
    %c16_522 = arith.constant 16 : index
    %c128_523 = arith.constant 128 : index
    %314 = vector.load %arg12[%c16_522, %c128_523] : memref<18x144xf32, #tpu.memory_space<vmem>>, vector<1x16xf32>
    tpu.vector_store %arg12[%c16_522, %c128_523], %313 {strides = array<i32>} : memref<18x144xf32, #tpu.memory_space<vmem>>, vector<1x16xf32>,
    %c81_524 = arith.constant 81 : index
    %c0_525 = arith.constant 0 : index
    %315 = vector.load %arg11[%c81_524, %c0_525] : memref<98x16xf32, #tpu.memory_space<vmem>>, vector<1x16xf32>
    %c17_526 = arith.constant 17 : index
    %c0_527 = arith.constant 0 : index
    %316 = vector.load %arg12[%c17_526, %c0_527] : memref<18x144xf32, #tpu.memory_space<vmem>>, vector<1x16xf32>
    tpu.vector_store %arg12[%c17_526, %c0_527], %315 {strides = array<i32>} : memref<18x144xf32, #tpu.memory_space<vmem>>, vector<1x16xf32>,
    %c82_528 = arith.constant 82 : index
    %c0_529 = arith.constant 0 : index
    %317 = vector.load %arg11[%c82_528, %c0_529] : memref<98x16xf32, #tpu.memory_space<vmem>>, vector<1x16xf32>
    %c17_530 = arith.constant 17 : index
    %c16_531 = arith.constant 16 : index
    %318 = vector.load %arg12[%c17_530, %c16_531] : memref<18x144xf32, #tpu.memory_space<vmem>>, vector<1x16xf32>
    tpu.vector_store %arg12[%c17_530, %c16_531], %317 {strides = array<i32>} : memref<18x144xf32, #tpu.memory_space<vmem>>, vector<1x16xf32>,
    %c83_532 = arith.constant 83 : index
    %c0_533 = arith.constant 0 : index
    %319 = vector.load %arg11[%c83_532, %c0_533] : memref<98x16xf32, #tpu.memory_space<vmem>>, vector<1x16xf32>
    %c17_534 = arith.constant 17 : index
    %c32_535 = arith.constant 32 : index
    %320 = vector.load %arg12[%c17_534, %c32_535] : memref<18x144xf32, #tpu.memory_space<vmem>>, vector<1x16xf32>
    tpu.vector_store %arg12[%c17_534, %c32_535], %319 {strides = array<i32>} : memref<18x144xf32, #tpu.memory_space<vmem>>, vector<1x16xf32>,
    %c88_536 = arith.constant 88 : index
    %c0_537 = arith.constant 0 : index
    %321 = vector.load %arg11[%c88_536, %c0_537] : memref<98x16xf32, #tpu.memory_space<vmem>>, vector<1x16xf32>
    %c17_538 = arith.constant 17 : index
    %c48_539 = arith.constant 48 : index
    %322 = vector.load %arg12[%c17_538, %c48_539] : memref<18x144xf32, #tpu.memory_space<vmem>>, vector<1x16xf32>
    tpu.vector_store %arg12[%c17_538, %c48_539], %321 {strides = array<i32>} : memref<18x144xf32, #tpu.memory_space<vmem>>, vector<1x16xf32>,
    %c89 = arith.constant 89 : index
    %c0_540 = arith.constant 0 : index
    %323 = vector.load %arg11[%c89, %c0_540] : memref<98x16xf32, #tpu.memory_space<vmem>>, vector<1x16xf32>
    %c17_541 = arith.constant 17 : index
    %c64_542 = arith.constant 64 : index
    %324 = vector.load %arg12[%c17_541, %c64_542] : memref<18x144xf32, #tpu.memory_space<vmem>>, vector<1x16xf32>
    tpu.vector_store %arg12[%c17_541, %c64_542], %323 {strides = array<i32>} : memref<18x144xf32, #tpu.memory_space<vmem>>, vector<1x16xf32>,
    %c90 = arith.constant 90 : index
    %c0_543 = arith.constant 0 : index
    %325 = vector.load %arg11[%c90, %c0_543] : memref<98x16xf32, #tpu.memory_space<vmem>>, vector<1x16xf32>
    %c17_544 = arith.constant 17 : index
    %c80_545 = arith.constant 80 : index
    %326 = vector.load %arg12[%c17_544, %c80_545] : memref<18x144xf32, #tpu.memory_space<vmem>>, vector<1x16xf32>
    tpu.vector_store %arg12[%c17_544, %c80_545], %325 {strides = array<i32>} : memref<18x144xf32, #tpu.memory_space<vmem>>, vector<1x16xf32>,
    %c95_546 = arith.constant 95 : index
    %c0_547 = arith.constant 0 : index
    %327 = vector.load %arg11[%c95_546, %c0_547] : memref<98x16xf32, #tpu.memory_space<vmem>>, vector<1x16xf32>
    %c17_548 = arith.constant 17 : index
    %c96_549 = arith.constant 96 : index
    %328 = vector.load %arg12[%c17_548, %c96_549] : memref<18x144xf32, #tpu.memory_space<vmem>>, vector<1x16xf32>
    tpu.vector_store %arg12[%c17_548, %c96_549], %327 {strides = array<i32>} : memref<18x144xf32, #tpu.memory_space<vmem>>, vector<1x16xf32>,
    %c96_550 = arith.constant 96 : index
    %c0_551 = arith.constant 0 : index
    %329 = vector.load %arg11[%c96_550, %c0_551] : memref<98x16xf32, #tpu.memory_space<vmem>>, vector<1x16xf32>
    %c17_552 = arith.constant 17 : index
    %c112_553 = arith.constant 112 : index
    %330 = vector.load %arg12[%c17_552, %c112_553] : memref<18x144xf32, #tpu.memory_space<vmem>>, vector<1x16xf32>
    tpu.vector_store %arg12[%c17_552, %c112_553], %329 {strides = array<i32>} : memref<18x144xf32, #tpu.memory_space<vmem>>, vector<1x16xf32>,
    %c97 = arith.constant 97 : index
    %c0_554 = arith.constant 0 : index
    %331 = vector.load %arg11[%c97, %c0_554] : memref<98x16xf32, #tpu.memory_space<vmem>>, vector<1x16xf32>
    %c17_555 = arith.constant 17 : index
    %c128_556 = arith.constant 128 : index
    %332 = vector.load %arg12[%c17_555, %c128_556] : memref<18x144xf32, #tpu.memory_space<vmem>>, vector<1x16xf32>
    tpu.vector_store %arg12[%c17_555, %c128_556], %331 {strides = array<i32>} : memref<18x144xf32, #tpu.memory_space<vmem>>, vector<1x16xf32>,
    %c0_557 = arith.constant 0 : index
    %c0_558 = arith.constant 0 : index
    %333 = vector.load %arg12[%c0_557, %c0_558] : memref<18x144xf32, #tpu.memory_space<vmem>>, vector<18x144xf32>
    %334 = arith.truncf %333 : vector<18x144xf32> to vector<18x144xbf16>
    %c0_559 = arith.constant 0 : index
    %c0_560 = arith.constant 0 : index
    %335 = vector.load %arg4[%c0_559, %c0_560] : memref<144x32xbf16, #tpu.memory_space<vmem>>, vector<144x32xbf16>
    %cst_561 = arith.constant dense<0.000000e+00> : vector<18x32xf32>
    %336 = tpu.matmul %334, %335, %cst_561 {dimension_numbers = #tpu.dot_dimension_numbers<[1], [0], [0], [1], [0, 0, 1, 1], [], []>} : vector<18x144xbf16>, vector<144x32xbf16>, vector<18x32xf32> -> vector<18x32xf32>
    %c0_562 = arith.constant 0 : index
    %c0_563 = arith.constant 0 : index
    %337 = vector.load %arg5[%c0_562, %c0_563] : memref<1x32xf32, #tpu.memory_space<vmem>>, vector<1x32xf32>
    %338 = vector.broadcast %337 : vector<1x32xf32> to vector<18x32xf32>
    %339 = arith.addf %336, %338 : vector<18x32xf32>
    %cst_564 = arith.constant 0.000000e+00 : f32
    %340 = vector.broadcast %cst_564 : f32 to vector<18x32xf32>
    %341 = arith.maximumf %339, %340 : vector<18x32xf32>
    %c0_565 = arith.constant 0 : index
    %c0_566 = arith.constant 0 : index
    %342 = vector.load %arg13[%c0_565, %c0_566] : memref<18x32xf32, #tpu.memory_space<vmem>>, vector<18x32xf32>
    tpu.vector_store %arg13[%c0_565, %c0_566], %341 {strides = array<i32>} : memref<18x32xf32, #tpu.memory_space<vmem>>, vector<18x32xf32>,
    %c0_567 = arith.constant 0 : index
    %c0_568 = arith.constant 0 : index
    %343 = vector.load %arg13[%c0_567, %c0_568] : memref<18x32xf32, #tpu.memory_space<vmem>>, vector<1x32xf32>
    %c0_569 = arith.constant 0 : index
    %c0_570 = arith.constant 0 : index
    %344 = vector.load %arg14[%c0_569, %c0_570] : memref<2x288xf32, #tpu.memory_space<vmem>>, vector<1x32xf32>
    tpu.vector_store %arg14[%c0_569, %c0_570], %343 {strides = array<i32>} : memref<2x288xf32, #tpu.memory_space<vmem>>, vector<1x32xf32>,
    %c1_571 = arith.constant 1 : index
    %c0_572 = arith.constant 0 : index
    %345 = vector.load %arg13[%c1_571, %c0_572] : memref<18x32xf32, #tpu.memory_space<vmem>>, vector<1x32xf32>
    %c0_573 = arith.constant 0 : index
    %c32_574 = arith.constant 32 : index
    %346 = vector.load %arg14[%c0_573, %c32_574] : memref<2x288xf32, #tpu.memory_space<vmem>>, vector<1x32xf32>
    tpu.vector_store %arg14[%c0_573, %c32_574], %345 {strides = array<i32>} : memref<2x288xf32, #tpu.memory_space<vmem>>, vector<1x32xf32>,
    %c2_575 = arith.constant 2 : index
    %c0_576 = arith.constant 0 : index
    %347 = vector.load %arg13[%c2_575, %c0_576] : memref<18x32xf32, #tpu.memory_space<vmem>>, vector<1x32xf32>
    %c0_577 = arith.constant 0 : index
    %c64_578 = arith.constant 64 : index
    %348 = vector.load %arg14[%c0_577, %c64_578] : memref<2x288xf32, #tpu.memory_space<vmem>>, vector<1x32xf32>
    tpu.vector_store %arg14[%c0_577, %c64_578], %347 {strides = array<i32>} : memref<2x288xf32, #tpu.memory_space<vmem>>, vector<1x32xf32>,
    %c3_579 = arith.constant 3 : index
    %c0_580 = arith.constant 0 : index
    %349 = vector.load %arg13[%c3_579, %c0_580] : memref<18x32xf32, #tpu.memory_space<vmem>>, vector<1x32xf32>
    %c0_581 = arith.constant 0 : index
    %c96_582 = arith.constant 96 : index
    %350 = vector.load %arg14[%c0_581, %c96_582] : memref<2x288xf32, #tpu.memory_space<vmem>>, vector<1x32xf32>
    tpu.vector_store %arg14[%c0_581, %c96_582], %349 {strides = array<i32>} : memref<2x288xf32, #tpu.memory_space<vmem>>, vector<1x32xf32>,
    %c4_583 = arith.constant 4 : index
    %c0_584 = arith.constant 0 : index
    %351 = vector.load %arg13[%c4_583, %c0_584] : memref<18x32xf32, #tpu.memory_space<vmem>>, vector<1x32xf32>
    %c0_585 = arith.constant 0 : index
    %c128_586 = arith.constant 128 : index
    %352 = vector.load %arg14[%c0_585, %c128_586] : memref<2x288xf32, #tpu.memory_space<vmem>>, vector<1x32xf32>
    tpu.vector_store %arg14[%c0_585, %c128_586], %351 {strides = array<i32>} : memref<2x288xf32, #tpu.memory_space<vmem>>, vector<1x32xf32>,
    %c5_587 = arith.constant 5 : index
    %c0_588 = arith.constant 0 : index
    %353 = vector.load %arg13[%c5_587, %c0_588] : memref<18x32xf32, #tpu.memory_space<vmem>>, vector<1x32xf32>
    %c0_589 = arith.constant 0 : index
    %c160 = arith.constant 160 : index
    %354 = vector.load %arg14[%c0_589, %c160] : memref<2x288xf32, #tpu.memory_space<vmem>>, vector<1x32xf32>
    tpu.vector_store %arg14[%c0_589, %c160], %353 {strides = array<i32>} : memref<2x288xf32, #tpu.memory_space<vmem>>, vector<1x32xf32>,
    %c6_590 = arith.constant 6 : index
    %c0_591 = arith.constant 0 : index
    %355 = vector.load %arg13[%c6_590, %c0_591] : memref<18x32xf32, #tpu.memory_space<vmem>>, vector<1x32xf32>
    %c0_592 = arith.constant 0 : index
    %c192 = arith.constant 192 : index
    %356 = vector.load %arg14[%c0_592, %c192] : memref<2x288xf32, #tpu.memory_space<vmem>>, vector<1x32xf32>
    tpu.vector_store %arg14[%c0_592, %c192], %355 {strides = array<i32>} : memref<2x288xf32, #tpu.memory_space<vmem>>, vector<1x32xf32>,
    %c7_593 = arith.constant 7 : index
    %c0_594 = arith.constant 0 : index
    %357 = vector.load %arg13[%c7_593, %c0_594] : memref<18x32xf32, #tpu.memory_space<vmem>>, vector<1x32xf32>
    %c0_595 = arith.constant 0 : index
    %c224 = arith.constant 224 : index
    %358 = vector.load %arg14[%c0_595, %c224] : memref<2x288xf32, #tpu.memory_space<vmem>>, vector<1x32xf32>
    tpu.vector_store %arg14[%c0_595, %c224], %357 {strides = array<i32>} : memref<2x288xf32, #tpu.memory_space<vmem>>, vector<1x32xf32>,
    %c8_596 = arith.constant 8 : index
    %c0_597 = arith.constant 0 : index
    %359 = vector.load %arg13[%c8_596, %c0_597] : memref<18x32xf32, #tpu.memory_space<vmem>>, vector<1x32xf32>
    %c0_598 = arith.constant 0 : index
    %c256 = arith.constant 256 : index
    %360 = vector.load %arg14[%c0_598, %c256] : memref<2x288xf32, #tpu.memory_space<vmem>>, vector<1x32xf32>
    tpu.vector_store %arg14[%c0_598, %c256], %359 {strides = array<i32>} : memref<2x288xf32, #tpu.memory_space<vmem>>, vector<1x32xf32>,
    %c9_599 = arith.constant 9 : index
    %c0_600 = arith.constant 0 : index
    %361 = vector.load %arg13[%c9_599, %c0_600] : memref<18x32xf32, #tpu.memory_space<vmem>>, vector<1x32xf32>
    %c1_601 = arith.constant 1 : index
    %c0_602 = arith.constant 0 : index
    %362 = vector.load %arg14[%c1_601, %c0_602] : memref<2x288xf32, #tpu.memory_space<vmem>>, vector<1x32xf32>
    tpu.vector_store %arg14[%c1_601, %c0_602], %361 {strides = array<i32>} : memref<2x288xf32, #tpu.memory_space<vmem>>, vector<1x32xf32>,
    %c10_603 = arith.constant 10 : index
    %c0_604 = arith.constant 0 : index
    %363 = vector.load %arg13[%c10_603, %c0_604] : memref<18x32xf32, #tpu.memory_space<vmem>>, vector<1x32xf32>
    %c1_605 = arith.constant 1 : index
    %c32_606 = arith.constant 32 : index
    %364 = vector.load %arg14[%c1_605, %c32_606] : memref<2x288xf32, #tpu.memory_space<vmem>>, vector<1x32xf32>
    tpu.vector_store %arg14[%c1_605, %c32_606], %363 {strides = array<i32>} : memref<2x288xf32, #tpu.memory_space<vmem>>, vector<1x32xf32>,
    %c11_607 = arith.constant 11 : index
    %c0_608 = arith.constant 0 : index
    %365 = vector.load %arg13[%c11_607, %c0_608] : memref<18x32xf32, #tpu.memory_space<vmem>>, vector<1x32xf32>
    %c1_609 = arith.constant 1 : index
    %c64_610 = arith.constant 64 : index
    %366 = vector.load %arg14[%c1_609, %c64_610] : memref<2x288xf32, #tpu.memory_space<vmem>>, vector<1x32xf32>
    tpu.vector_store %arg14[%c1_609, %c64_610], %365 {strides = array<i32>} : memref<2x288xf32, #tpu.memory_space<vmem>>, vector<1x32xf32>,
    %c12_611 = arith.constant 12 : index
    %c0_612 = arith.constant 0 : index
    %367 = vector.load %arg13[%c12_611, %c0_612] : memref<18x32xf32, #tpu.memory_space<vmem>>, vector<1x32xf32>
    %c1_613 = arith.constant 1 : index
    %c96_614 = arith.constant 96 : index
    %368 = vector.load %arg14[%c1_613, %c96_614] : memref<2x288xf32, #tpu.memory_space<vmem>>, vector<1x32xf32>
    tpu.vector_store %arg14[%c1_613, %c96_614], %367 {strides = array<i32>} : memref<2x288xf32, #tpu.memory_space<vmem>>, vector<1x32xf32>,
    %c13_615 = arith.constant 13 : index
    %c0_616 = arith.constant 0 : index
    %369 = vector.load %arg13[%c13_615, %c0_616] : memref<18x32xf32, #tpu.memory_space<vmem>>, vector<1x32xf32>
    %c1_617 = arith.constant 1 : index
    %c128_618 = arith.constant 128 : index
    %370 = vector.load %arg14[%c1_617, %c128_618] : memref<2x288xf32, #tpu.memory_space<vmem>>, vector<1x32xf32>
    tpu.vector_store %arg14[%c1_617, %c128_618], %369 {strides = array<i32>} : memref<2x288xf32, #tpu.memory_space<vmem>>, vector<1x32xf32>,
    %c14_619 = arith.constant 14 : index
    %c0_620 = arith.constant 0 : index
    %371 = vector.load %arg13[%c14_619, %c0_620] : memref<18x32xf32, #tpu.memory_space<vmem>>, vector<1x32xf32>
    %c1_621 = arith.constant 1 : index
    %c160_622 = arith.constant 160 : index
    %372 = vector.load %arg14[%c1_621, %c160_622] : memref<2x288xf32, #tpu.memory_space<vmem>>, vector<1x32xf32>
    tpu.vector_store %arg14[%c1_621, %c160_622], %371 {strides = array<i32>} : memref<2x288xf32, #tpu.memory_space<vmem>>, vector<1x32xf32>,
    %c15_623 = arith.constant 15 : index
    %c0_624 = arith.constant 0 : index
    %373 = vector.load %arg13[%c15_623, %c0_624] : memref<18x32xf32, #tpu.memory_space<vmem>>, vector<1x32xf32>
    %c1_625 = arith.constant 1 : index
    %c192_626 = arith.constant 192 : index
    %374 = vector.load %arg14[%c1_625, %c192_626] : memref<2x288xf32, #tpu.memory_space<vmem>>, vector<1x32xf32>
    tpu.vector_store %arg14[%c1_625, %c192_626], %373 {strides = array<i32>} : memref<2x288xf32, #tpu.memory_space<vmem>>, vector<1x32xf32>,
    %c16_627 = arith.constant 16 : index
    %c0_628 = arith.constant 0 : index
    %375 = vector.load %arg13[%c16_627, %c0_628] : memref<18x32xf32, #tpu.memory_space<vmem>>, vector<1x32xf32>
    %c1_629 = arith.constant 1 : index
    %c224_630 = arith.constant 224 : index
    %376 = vector.load %arg14[%c1_629, %c224_630] : memref<2x288xf32, #tpu.memory_space<vmem>>, vector<1x32xf32>
    tpu.vector_store %arg14[%c1_629, %c224_630], %375 {strides = array<i32>} : memref<2x288xf32, #tpu.memory_space<vmem>>, vector<1x32xf32>,
    %c17_631 = arith.constant 17 : index
    %c0_632 = arith.constant 0 : index
    %377 = vector.load %arg13[%c17_631, %c0_632] : memref<18x32xf32, #tpu.memory_space<vmem>>, vector<1x32xf32>
    %c1_633 = arith.constant 1 : index
    %c256_634 = arith.constant 256 : index
    %378 = vector.load %arg14[%c1_633, %c256_634] : memref<2x288xf32, #tpu.memory_space<vmem>>, vector<1x32xf32>
    tpu.vector_store %arg14[%c1_633, %c256_634], %377 {strides = array<i32>} : memref<2x288xf32, #tpu.memory_space<vmem>>, vector<1x32xf32>,
    %c0_635 = arith.constant 0 : index
    %c0_636 = arith.constant 0 : index
    %379 = vector.load %arg14[%c0_635, %c0_636] : memref<2x288xf32, #tpu.memory_space<vmem>>, vector<2x288xf32>
    %380 = arith.truncf %379 : vector<2x288xf32> to vector<2x288xbf16>
    %c0_637 = arith.constant 0 : index
    %c0_638 = arith.constant 0 : index
    %381 = vector.load %arg6[%c0_637, %c0_638] : memref<288x32xbf16, #tpu.memory_space<vmem>>, vector<288x32xbf16>
    %cst_639 = arith.constant dense<0.000000e+00> : vector<2x32xf32>
    %382 = tpu.matmul %380, %381, %cst_639 {dimension_numbers = #tpu.dot_dimension_numbers<[1], [0], [0], [1], [0, 0, 1, 1], [], []>} : vector<2x288xbf16>, vector<288x32xbf16>, vector<2x32xf32> -> vector<2x32xf32>
    %c0_640 = arith.constant 0 : index
    %c0_641 = arith.constant 0 : index
    %383 = vector.load %arg7[%c0_640, %c0_641] : memref<1x32xf32, #tpu.memory_space<vmem>>, vector<1x32xf32>
    %384 = vector.broadcast %383 : vector<1x32xf32> to vector<2x32xf32>
    %385 = arith.addf %382, %384 : vector<2x32xf32>
    %cst_642 = arith.constant 0.000000e+00 : f32
    %386 = vector.broadcast %cst_642 : f32 to vector<2x32xf32>
    %387 = arith.maximumf %385, %386 : vector<2x32xf32>
    %388 = vector.extract_strided_slice %387 {offsets = [0, 0], sizes = [1, 32], strides = [1, 1]} : vector<2x32xf32> to vector<1x32xf32>
    %c0_643 = arith.constant 0 : index
    %c0_644 = arith.constant 0 : index
    %389 = vector.load %arg15[%c0_643, %c0_644] : memref<2x32xf32, #tpu.memory_space<vmem>>, vector<1x32xf32>
    tpu.vector_store %arg15[%c0_643, %c0_644], %388 {strides = array<i32>} : memref<2x32xf32, #tpu.memory_space<vmem>>, vector<1x32xf32>,
    %390 = vector.extract_strided_slice %387 {offsets = [1, 0], sizes = [1, 32], strides = [1, 1]} : vector<2x32xf32> to vector<1x32xf32>
    %c1_645 = arith.constant 1 : index
    %c0_646 = arith.constant 0 : index
    %391 = vector.load %arg15[%c1_645, %c0_646] : memref<2x32xf32, #tpu.memory_space<vmem>>, vector<1x32xf32>
    tpu.vector_store %arg15[%c1_645, %c0_646], %390 {strides = array<i32>} : memref<2x32xf32, #tpu.memory_space<vmem>>, vector<1x32xf32>,
    %c0_647 = arith.constant 0 : index
    %c0_648 = arith.constant 0 : index
    %392 = vector.load %arg15[%c0_647, %c0_648] : memref<2x32xf32, #tpu.memory_space<vmem>>, vector<2x32xf32>
    %393 = arith.truncf %392 : vector<2x32xf32> to vector<2x32xbf16>
    %c0_649 = arith.constant 0 : index
    %c0_650 = arith.constant 0 : index
    %394 = vector.load %arg8[%c0_649, %c0_650] : memref<32x4xbf16, #tpu.memory_space<vmem>>, vector<32x4xbf16>
    %cst_651 = arith.constant dense<0.000000e+00> : vector<2x4xf32>
    %395 = tpu.matmul %393, %394, %cst_651 {dimension_numbers = #tpu.dot_dimension_numbers<[1], [0], [0], [1], [0, 0, 1, 1], [], []>} : vector<2x32xbf16>, vector<32x4xbf16>, vector<2x4xf32> -> vector<2x4xf32>
    %c0_652 = arith.constant 0 : index
    %c0_653 = arith.constant 0 : index
    %396 = vector.load %arg9[%c0_652, %c0_653] : memref<1x4xf32, #tpu.memory_space<vmem>>, vector<1x4xf32>
    %397 = vector.broadcast %396 : vector<1x4xf32> to vector<2x4xf32>
    %398 = arith.addf %395, %397 : vector<2x4xf32>
    %c0_654 = arith.constant 0 : index
    %c0_655 = arith.constant 0 : index
    %399 = vector.load %arg10[%c0_654, %c0_655] : memref<2x4xf32, #tpu.memory_space<vmem>>, vector<2x4xf32>
    tpu.vector_store %arg10[%c0_654, %c0_655], %398 {strides = array<i32>} : memref<2x4xf32, #tpu.memory_space<vmem>>, vector<2x4xf32>,
    return
  }
  func.func @transform_0(%arg0: i32) -> (i32, i32) {
    %c0_i32 = arith.constant 0 : i32
    %c0_i32_0 = arith.constant 0 : i32
    %c0_i32_1 = arith.constant 0 : i32
    return %c0_i32, %c0_i32_0 : i32, i32
  }
  func.func @transform_1(%arg0: i32) -> (i32, i32) {
    %c0_i32 = arith.constant 0 : i32
    %c0_i32_0 = arith.constant 0 : i32
    %c0_i32_1 = arith.constant 0 : i32
    return %c0_i32, %c0_i32_0 : i32, i32
  }
  func.func @transform_2(%arg0: i32) -> (i32, i32) {
    %c0_i32 = arith.constant 0 : i32
    %c0_i32_0 = arith.constant 0 : i32
    %c0_i32_1 = arith.constant 0 : i32
    return %c0_i32, %c0_i32_0 : i32, i32
  }
  func.func @transform_3(%arg0: i32) -> (i32, i32) {
    %c0_i32 = arith.constant 0 : i32
    %c0_i32_0 = arith.constant 0 : i32
    %c0_i32_1 = arith.constant 0 : i32
    return %c0_i32, %c0_i32_0 : i32, i32
  }
  func.func @transform_4(%arg0: i32) -> (i32, i32) {
    %c0_i32 = arith.constant 0 : i32
    %c0_i32_0 = arith.constant 0 : i32
    %c0_i32_1 = arith.constant 0 : i32
    return %c0_i32, %c0_i32_0 : i32, i32
  }
  func.func @transform_5(%arg0: i32) -> (i32, i32) {
    %c0_i32 = arith.constant 0 : i32
    %c0_i32_0 = arith.constant 0 : i32
    %c0_i32_1 = arith.constant 0 : i32
    return %c0_i32, %c0_i32_0 : i32, i32
  }
  func.func @transform_6(%arg0: i32) -> (i32, i32) {
    %c0_i32 = arith.constant 0 : i32
    %c0_i32_0 = arith.constant 0 : i32
    %c0_i32_1 = arith.constant 0 : i32
    return %c0_i32, %c0_i32_0 : i32, i32
  }
  func.func @transform_7(%arg0: i32) -> (i32, i32) {
    %c0_i32 = arith.constant 0 : i32
    %c0_i32_0 = arith.constant 0 : i32
    %c0_i32_1 = arith.constant 0 : i32
    return %c0_i32, %c0_i32_0 : i32, i32
  }
  func.func @transform_8(%arg0: i32) -> (i32, i32) {
    %c0_i32 = arith.constant 0 : i32
    %c0_i32_0 = arith.constant 0 : i32
    %c0_i32_1 = arith.constant 0 : i32
    return %c0_i32, %c0_i32_0 : i32, i32
  }
  func.func @transform_9(%arg0: i32) -> (i32, i32) {
    %c0_i32 = arith.constant 0 : i32
    %c0_i32_0 = arith.constant 0 : i32
    %c0_i32_1 = arith.constant 0 : i32
    return %c0_i32, %c0_i32_0 : i32, i32
  }
}

</mosaic_0001>

<llo_original>
// kernel: dcqn_forward.1
$region0: #{dcqn_forward.1}
  #allocation0 [shape = 'u32[]', space=smem, size = 0x4, offset = 0x4, fixed_abs, tag = 'smem constant byte address 0x4 - core index']
  #allocation1 [shape = 'u32[144,128]{1,0:T(1,128)}', space=vmem, size = 0x12000, scoped, tag = 'internal scratch']
  #allocation2 [shape = 'f32[98,16]{1,0:T(8,128)}', space=vmem, size = 0xd000, scoped, tag = 'scratch operand']
  #allocation3 [shape = 'f32[18,144]{1,0:T(8,128)}', space=vmem, size = 0x6000, scoped, tag = 'scratch operand']
  #allocation4 [shape = 'f32[18,32]{1,0:T(8,128)}', space=vmem, size = 0x3000, scoped, tag = 'scratch operand']
  #allocation5 [shape = 'f32[2,288]{1,0:T(2,128)}', space=vmem, size = 0xc00, scoped, tag = 'scratch operand']
  #allocation6 [shape = 'f32[2,32]{1,0:T(2,128)}', space=vmem, size = 0x400, scoped, tag = 'scratch operand']
  %s0 = inlined_call_operand.vmem [shape: bf16[98,27], index: 0, kind: input, shape index: {}]
  %s1 = inlined_call_operand.vmem [shape: bf16[27,16], index: 1, kind: input, shape index: {}]
  %s2 = inlined_call_operand.vmem [shape: f32[1,16], index: 2, kind: input, shape index: {}]
  %s3 = inlined_call_operand.vmem [shape: bf16[144,32], index: 3, kind: input, shape index: {}]
  %s4 = inlined_call_operand.vmem [shape: f32[1,32], index: 4, kind: input, shape index: {}]
  %s5 = inlined_call_operand.vmem [shape: bf16[288,32], index: 5, kind: input, shape index: {}]
  %s6 = inlined_call_operand.vmem [shape: f32[1,32], index: 6, kind: input, shape index: {}]
  %s7 = inlined_call_operand.vmem [shape: bf16[32,4], index: 7, kind: input, shape index: {}]
  %s8 = inlined_call_operand.vmem [shape: f32[1,4], index: 8, kind: input, shape index: {}]
  %s9 = inlined_call_operand.hbm [shape: f32[2,4], index: 9, kind: output, shape index: {}]
  %s10 = sld [smem:[#allocation0]]
  $region46: #{dcqn_forward.1} parent=0
    _
  %s12 = ssub.s32 1, %s10
  %s13 = scalar_select 0, %s12, %s10
  $region1: #{dcqn_forward.1} parent=0
    #allocation7 [shape = 'u8[1024]{0}', space=vmem, size = 0x400, scoped, tag = 'output window, operand 0, single buffered']
    #allocation8 [shape = 's32[1]{0}', space=sflag, size = 0x4, scoped, tag = 'scoped memory for dcqn_forward.1']
    %14 = vsyncpa [#allocation8], 0
    // Predicated region
    $region2: #{dcqn_forward.1} parent=1 // pred_check
      _
    $region3: #{dcqn_forward.1} parent=1 // pred_check_branch
      %16 = sbr.rel (0) target = $region5
    $region4: #{dcqn_forward.1} parent=1 // pred_region
      _
    $region5: #{dcqn_forward.1} parent=1 // pred_fallthru
      _
    // Predicated region
    $region6: #{dcqn_forward.1} parent=1 // pred_check
      _
    $region7: #{dcqn_forward.1} parent=1 // pred_check_branch
      %18 = sbr.rel (0) target = $region9
    $region8: #{dcqn_forward.1} parent=1 // pred_region
      _
    $region9: #{dcqn_forward.1} parent=1 // pred_fallthru
      _
    // Predicated region
    $region10: #{dcqn_forward.1} parent=1 // pred_check
      _
    $region11: #{dcqn_forward.1} parent=1 // pred_check_branch
      %20 = sbr.rel (0) target = $region13
    $region12: #{dcqn_forward.1} parent=1 // pred_region
      _
    $region13: #{dcqn_forward.1} parent=1 // pred_fallthru
      _
    // Predicated region
    $region14: #{dcqn_forward.1} parent=1 // pred_check
      _
    $region15: #{dcqn_forward.1} parent=1 // pred_check_branch
      %22 = sbr.rel (0) target = $region17
    $region16: #{dcqn_forward.1} parent=1 // pred_region
      _
    $region17: #{dcqn_forward.1} parent=1 // pred_fallthru
      _
    // Predicated region
    $region18: #{dcqn_forward.1} parent=1 // pred_check
      _
    $region19: #{dcqn_forward.1} parent=1 // pred_check_branch
      %24 = sbr.rel (0) target = $region21
    $region20: #{dcqn_forward.1} parent=1 // pred_region
      _
    $region21: #{dcqn_forward.1} parent=1 // pred_fallthru
      _
    // Predicated region
    $region22: #{dcqn_forward.1} parent=1 // pred_check
      _
    $region23: #{dcqn_forward.1} parent=1 // pred_check_branch
      %26 = sbr.rel (0) target = $region25
    $region24: #{dcqn_forward.1} parent=1 // pred_region
      _
    $region25: #{dcqn_forward.1} parent=1 // pred_fallthru
      _
    // Predicated region
    $region26: #{dcqn_forward.1} parent=1 // pred_check
      _
    $region27: #{dcqn_forward.1} parent=1 // pred_check_branch
      %28 = sbr.rel (0) target = $region29
    $region28: #{dcqn_forward.1} parent=1 // pred_region
      _
    $region29: #{dcqn_forward.1} parent=1 // pred_fallthru
      _
    // Predicated region
    $region30: #{dcqn_forward.1} parent=1 // pred_check
      _
    $region31: #{dcqn_forward.1} parent=1 // pred_check_branch
      %30 = sbr.rel (0) target = $region33
    $region32: #{dcqn_forward.1} parent=1 // pred_region
      _
    $region33: #{dcqn_forward.1} parent=1 // pred_fallthru
      _
    // Predicated region
    $region34: #{dcqn_forward.1} parent=1 // pred_check
      _
    $region35: #{dcqn_forward.1} parent=1 // pred_check_branch
      %32 = sbr.rel (0) target = $region37
    $region36: #{dcqn_forward.1} parent=1 // pred_region
      _
    $region37: #{dcqn_forward.1} parent=1 // pred_fallthru
      _
    %v34 = vld [vmem:[%s0] sm:$0xf]
    %v35 = vld [vmem:[%s0 + $0x4] sm:$0xf]
    %v36 = vld [vmem:[%s0 + $0x8] sm:$0xf]
    %v37 = vld [vmem:[%s0 + $0xc] sm:$0xf]
    %v38 = vld [vmem:[%s0 + $0x10] sm:$0xf]
    %v39 = vld [vmem:[%s0 + $0x14] sm:$0xf]
    %v40 = vld [vmem:[%s0 + $0x18] sm:$0xf]
    %v41 = vld [vmem:[%s0 + $0x1c] sm:$0xf]
    %v42 = vld [vmem:[%s0 + $0x20] sm:$0xf]
    %v43 = vld [vmem:[%s0 + $0x24] sm:$0xf]
    %v44 = vld [vmem:[%s0 + $0x28] sm:$0xf]
    %v45 = vld [vmem:[%s0 + $0x2c] sm:$0xf]
    %v46 = vld [vmem:[%s0 + $0x30] sm:$0x1]
    %v47 = vld [vmem:[%s1] sm:$0xf]
    %v48 = vld [vmem:[%s1 + $0x4] sm:$0xf]
    %v49 = vld [vmem:[%s1 + $0x8] sm:$0xf]
    %v50 = vld [vmem:[%s1 + $0xc] sm:$0x3]
    %v51 = vld [vmem:[%s2] sm:$0x1]
    %v53 = vlaneseq
    %v54 = vshrl.u32 %v53, 7
    %v55 = vsub.s32 0, %v54
    %v56 = vrot.slane %v51, %v55
    %v71 = vunpack.c.l.b16 %v34
    %v72 = vunpack.c.l.b16 %v35
    %v73 = vunpack.c.l.b16 %v36
    %v74 = vunpack.c.l.b16 %v37
    %v75 = vunpack.c.l.b16 %v38
    %v76 = vunpack.c.l.b16 %v39
    %v77 = vunpack.c.l.b16 %v40
    %v78 = vunpack.c.l.b16 %v41
    %v79 = vunpack.c.l.b16 %v42
    %v80 = vunpack.c.l.b16 %v43
    %v81 = vunpack.c.l.b16 %v44
    %v82 = vunpack.c.l.b16 %v45
    %v83 = vunpack.c.l.b16 %v46
    %v84 = vpack.c.b16 %v72, %v71
    %v85 = vpack.c.b16 %v74, %v73
    %v86 = vpack.c.b16 %v76, %v75
    %v87 = vpack.c.b16 %v78, %v77
    %v88 = vpack.c.b16 %v80, %v79
    %v89 = vpack.c.b16 %v82, %v81
    %v90 = vpack.c.b16 %v83, %v83
    %v95 = vunpack.c.l.b16 %v47
    %v96 = vunpack.c.l.b16 %v48
    %v97 = vunpack.c.l.b16 %v49
    %v98 = vunpack.c.l.b16 %v50
    %v99 = vpack.c.b16 %v96, %v95
    %v100 = vpack.c.b16 %v98, %v97
    %vm102 = vcmask 220160
    %v104 = vsel %vm102, %v84, 0
    %v107 = vsel %vm102, %v85, 0
    %v110 = vsel %vm102, %v86, 0
    %v113 = vsel %vm102, %v87, 0
    %v116 = vsel %vm102, %v88, 0
    %v119 = vsel %vm102, %v89, 0
    %v122 = vsel %vm102, %v90, 0
    %vm124 = vcmask 1044480
    %vm125 = vcmask 1045504
    %v126 = vsel %vm124, 4294967295, 65535
    %v127 = vsel %vm125, %v126, 0
    %v129 = vand.u32 %v100, %v127
    %131 = vmatprep.subr.bf16.mxu0 0
    %132 = vmatpush1.bf16.msra.mxu0 0
    %133 = vmatprep.subr.bf16.mxu0 0
    %134 = vmatpush1.bf16.msra.mxu0 0
    %135 = vmatprep.subr.bf16.mxu0 0
    %136 = vmatpush1.bf16.msra.mxu0 0
    %137 = vmatprep.subr.bf16.mxu0 0
    %138 = vmatpush1.bf16.msra.mxu0 0
    %139 = vmatprep.subr.bf16.mxu0 0
    %140 = vmatpush1.bf16.msra.mxu0 0
    %141 = vmatprep.subr.bf16.mxu0 0
    %142 = vmatpush1.bf16.msra.mxu0 0
    %143 = vmatprep.subr.bf16.mxu0 0
    %144 = vmatpush1.bf16.msra.mxu0 %v129
    %145 = vmatprep.subr.bf16.mxu0 0
    %146 = vmatpush1.bf16.msra.mxu0 %v99
    %147 = vmatprep.subr.bf16.mxu0 0
    %148 = vmatpush2.bf16.msra.mxu0 0
    %149 = vmatprep.subr.bf16.mxu0 0
    %150 = vmatpush2.bf16.msra.mxu0 0
    %151 = vmatprep.subr.bf16.mxu0 0
    %152 = vmatpush2.bf16.msra.mxu0 0
    %153 = vmatprep.subr.bf16.mxu0 0
    %154 = vmatpush2.bf16.msra.mxu0 0
    %155 = vmatprep.subr.bf16.mxu0 0
    %156 = vmatpush2.bf16.msra.mxu0 0
    %157 = vmatprep.subr.bf16.mxu0 0
    %158 = vmatpush2.bf16.msra.mxu0 0
    %159 = vmatprep.subr.bf16.mxu0 0
    %160 = vmatpush2.bf16.msra.mxu0 0
    %161 = vmatprep.subr.bf16.mxu0 0
    %162 = vmatpush2.bf16.msra.mxu0 0
    %163 = vmatprep.mubr.bf16.mxu0 0
    %164 = vmatmul.mubr.bf16.gmra.mxu0 %v104
    %v165 = vpop.f32.mrf.mxu0
    %v166 = vadd.f32 %v56, %v165
    %v167 = vpop.f32.mrf.mxu0
    %v168 = vpop.f32.mrf.mxu0
    %v169 = vadd.f32 %v56, %v168
    %v170 = vpop.f32.mrf.mxu0
    %171 = vmatprep.mubr.bf16.mxu0 0
    %172 = vmatmul.mubr.bf16.gmra.mxu0 %v107
    %v173 = vpop.f32.mrf.mxu0
    %v174 = vadd.f32 %v56, %v173
    %v175 = vpop.f32.mrf.mxu0
    %v176 = vpop.f32.mrf.mxu0
    %v177 = vadd.f32 %v56, %v176
    %v178 = vpop.f32.mrf.mxu0
    %179 = vmatprep.mubr.bf16.mxu0 0
    %180 = vmatmul.mubr.bf16.gmra.mxu0 %v110
    %v181 = vpop.f32.mrf.mxu0
    %v182 = vadd.f32 %v56, %v181
    %v183 = vpop.f32.mrf.mxu0
    %v184 = vpop.f32.mrf.mxu0
    %v185 = vadd.f32 %v56, %v184
    %v186 = vpop.f32.mrf.mxu0
    %187 = vmatprep.mubr.bf16.mxu0 0
    %188 = vmatmul.mubr.bf16.gmra.mxu0 %v113
    %v189 = vpop.f32.mrf.mxu0
    %v190 = vadd.f32 %v56, %v189
    %v191 = vpop.f32.mrf.mxu0
    %v192 = vpop.f32.mrf.mxu0
    %v193 = vadd.f32 %v56, %v192
    %v194 = vpop.f32.mrf.mxu0
    %195 = vmatprep.mubr.bf16.mxu0 0
    %196 = vmatmul.mubr.bf16.gmra.mxu0 %v116
    %v197 = vpop.f32.mrf.mxu0
    %v198 = vadd.f32 %v56, %v197
    %v199 = vpop.f32.mrf.mxu0
    %v200 = vpop.f32.mrf.mxu0
    %v201 = vadd.f32 %v56, %v200
    %v202 = vpop.f32.mrf.mxu0
    %203 = vmatprep.mubr.bf16.mxu0 0
    %204 = vmatmul.mubr.bf16.gmra.mxu0 %v119
    %v205 = vpop.f32.mrf.mxu0
    %v206 = vadd.f32 %v56, %v205
    %v207 = vpop.f32.mrf.mxu0
    %v208 = vpop.f32.mrf.mxu0
    %v209 = vadd.f32 %v56, %v208
    %v210 = vpop.f32.mrf.mxu0
    %211 = vmatprep.mubr.bf16.mxu0 0
    %212 = vmatmul.mubr.bf16.gmra.mxu0 %v122
    %v213 = vpop.f32.mrf.mxu0
    %v214 = vadd.f32 %v56, %v213
    %v215 = vpop.f32.mrf.mxu0
    %v216 = vpop.f32.mrf.mxu0
    %v217 = vpop.f32.mrf.mxu0
    %218 = vdwg.mxu0
    %v219 = vmax.f32 %v166, 0.0
    %v220 = vmax.f32 %v169, 0.0
    %v221 = vmax.f32 %v174, 0.0
    %v222 = vmax.f32 %v177, 0.0
    %v223 = vmax.f32 %v182, 0.0
    %v224 = vmax.f32 %v185, 0.0
    %v225 = vmax.f32 %v190, 0.0
    %v226 = vmax.f32 %v193, 0.0
    %v227 = vmax.f32 %v198, 0.0
    %v228 = vmax.f32 %v201, 0.0
    %v229 = vmax.f32 %v206, 0.0
    %v230 = vmax.f32 %v209, 0.0
    %v231 = vmax.f32 %v214, 0.0
    %vm232 = vcmask 130048
    %233 = vst.msk [vmem:[#allocation2] sm:$0xff] %vm232, %v219
    %234 = vst.msk [vmem:[#allocation2 + $0x8] sm:$0xff] %vm232, %v220
    %235 = vst.msk [vmem:[#allocation2 + $0x10] sm:$0xff] %vm232, %v221
    %236 = vst.msk [vmem:[#allocation2 + $0x18] sm:$0xff] %vm232, %v222
    %237 = vst.msk [vmem:[#allocation2 + $0x20] sm:$0xff] %vm232, %v223
    %238 = vst.msk [vmem:[#allocation2 + $0x28] sm:$0xff] %vm232, %v224
    %239 = vst.msk [vmem:[#allocation2 + $0x30] sm:$0xff] %vm232, %v225
    %240 = vst.msk [vmem:[#allocation2 + $0x38] sm:$0xff] %vm232, %v226
    %241 = vst.msk [vmem:[#allocation2 + $0x40] sm:$0xff] %vm232, %v227
    %242 = vst.msk [vmem:[#allocation2 + $0x48] sm:$0xff] %vm232, %v228
    %243 = vst.msk [vmem:[#allocation2 + $0x50] sm:$0xff] %vm232, %v229
    %244 = vst.msk [vmem:[#allocation2 + $0x58] sm:$0xff] %vm232, %v230
    %vm245 = vcmask 123904
    %246 = vst.msk [vmem:[#allocation2 + $0x60] sm:$0x3] %vm245, %v231
    %v247 = vld [vmem:[#allocation2] sm:$0x1]
    %vm248 = vcmask 122880
    %249 = vst.msk [vmem:[#allocation3] sm:$0x1] %vm248, %v247
    %v250 = vld [vmem:[#allocation2 + $0x1] sm:$0x1]
    %252 = vrot.lane.b32.xlu0 %v250, 16
    %v253 = vpop.permute.xlu0 %252
    %vm255 = vcmask 254080
    %256 = vst.msk [vmem:[#allocation3] sm:$0x1] %vm255, %v253
    %v257 = vld [vmem:[#allocation2 + $0x2] sm:$0x1]
    %259 = vrot.lane.b32.xlu0 %v257, 32
    %v260 = vpop.permute.xlu0 %259
    %vm262 = vcmask 385280
    %263 = vst.msk [vmem:[#allocation3] sm:$0x1] %vm262, %v260
    %v264 = vld [vmem:[#allocation2 + $0x7] sm:$0x1]
    %266 = vrot.lane.b32.xlu0 %v264, 48
    %v267 = vpop.permute.xlu0 %266
    %vm269 = vcmask 516480
    %270 = vst.msk [vmem:[#allocation3] sm:$0x1] %vm269, %v267
    %v271 = vld [vmem:[#allocation2 + $0x8] sm:$0x1]
    %273 = vrot.lane.b32.xlu0 %v271, 64
    %v274 = vpop.permute.xlu0 %273
    %vm276 = vcmask 647680
    %277 = vst.msk [vmem:[#allocation3] sm:$0x1] %vm276, %v274
    %v278 = vld [vmem:[#allocation2 + $0x9] sm:$0x1]
    %280 = vrot.lane.b32.xlu0 %v278, 80
    %v281 = vpop.permute.xlu0 %280
    %vm283 = vcmask 778880
    %284 = vst.msk [vmem:[#allocation3] sm:$0x1] %vm283, %v281
    %v285 = vld [vmem:[#allocation2 + $0xe] sm:$0x1]
    %287 = vrot.lane.b32.xlu0 %v285, 96
    %v288 = vpop.permute.xlu0 %287
    %vm290 = vcmask 910080
    %291 = vst.msk [vmem:[#allocation3] sm:$0x1] %vm290, %v288
    %v292 = vld [vmem:[#allocation2 + $0xf] sm:$0x1]
    %294 = vrot.lane.b32.xlu0 %v292, 112
    %v295 = vpop.permute.xlu0 %294
    %vm297 = vcmask 1041280
    %298 = vst.msk [vmem:[#allocation3] sm:$0x1] %vm297, %v295
    %v299 = vld [vmem:[#allocation2 + $0x10] sm:$0x1]
    %300 = vst.msk [vmem:[#allocation3 + $0x8] sm:$0x1] %vm248, %v299
    %v301 = vld [vmem:[#allocation2 + $0x2] sm:$0x1]
    %302 = vst.msk [vmem:[#allocation3 + $0x1] sm:$0x1] %vm248, %v301
    %v303 = vld [vmem:[#allocation2 + $0x3] sm:$0x1]
    %305 = vrot.lane.b32.xlu0 %v303, 16
    %v306 = vpop.permute.xlu0 %305
    %308 = vst.msk [vmem:[#allocation3 + $0x1] sm:$0x1] %vm255, %v306
    %v309 = vld [vmem:[#allocation2 + $0x4] sm:$0x1]
    %311 = vrot.lane.b32.xlu0 %v309, 32
    %v312 = vpop.permute.xlu0 %311
    %314 = vst.msk [vmem:[#allocation3 + $0x1] sm:$0x1] %vm262, %v312
    %v315 = vld [vmem:[#allocation2 + $0x9] sm:$0x1]
    %317 = vrot.lane.b32.xlu0 %v315, 48
    %v318 = vpop.permute.xlu0 %317
    %320 = vst.msk [vmem:[#allocation3 + $0x1] sm:$0x1] %vm269, %v318
    %v321 = vld [vmem:[#allocation2 + $0xa] sm:$0x1]
    %323 = vrot.lane.b32.xlu0 %v321, 64
    %v324 = vpop.permute.xlu0 %323
    %326 = vst.msk [vmem:[#allocation3 + $0x1] sm:$0x1] %vm276, %v324
    %v327 = vld [vmem:[#allocation2 + $0xb] sm:$0x1]
    %329 = vrot.lane.b32.xlu0 %v327, 80
    %v330 = vpop.permute.xlu0 %329
    %332 = vst.msk [vmem:[#allocation3 + $0x1] sm:$0x1] %vm283, %v330
    %v333 = vld [vmem:[#allocation2 + $0x10] sm:$0x1]
    %335 = vrot.lane.b32.xlu0 %v333, 96
    %v336 = vpop.permute.xlu0 %335
    %338 = vst.msk [vmem:[#allocation3 + $0x1] sm:$0x1] %vm290, %v336
    %v339 = vld [vmem:[#allocation2 + $0x11] sm:$0x1]
    %341 = vrot.lane.b32.xlu0 %v339, 112
    %v342 = vpop.permute.xlu0 %341
    %344 = vst.msk [vmem:[#allocation3 + $0x1] sm:$0x1] %vm297, %v342
    %v345 = vld [vmem:[#allocation2 + $0x12] sm:$0x1]
    %346 = vst.msk [vmem:[#allocation3 + $0x9] sm:$0x1] %vm248, %v345
    %v347 = vld [vmem:[#allocation2 + $0x4] sm:$0x1]
    %348 = vst.msk [vmem:[#allocation3 + $0x2] sm:$0x1] %vm248, %v347
    %v349 = vld [vmem:[#allocation2 + $0x5] sm:$0x1]
    %351 = vrot.lane.b32.xlu0 %v349, 16
    %v352 = vpop.permute.xlu0 %351
    %354 = vst.msk [vmem:[#allocation3 + $0x2] sm:$0x1] %vm255, %v352
    %v355 = vld [vmem:[#allocation2 + $0x6] sm:$0x1]
    %357 = vrot.lane.b32.xlu0 %v355, 32
    %v358 = vpop.permute.xlu0 %357
    %360 = vst.msk [vmem:[#allocation3 + $0x2] sm:$0x1] %vm262, %v358
    %v361 = vld [vmem:[#allocation2 + $0xb] sm:$0x1]
    %363 = vrot.lane.b32.xlu0 %v361, 48
    %v364 = vpop.permute.xlu0 %363
    %366 = vst.msk [vmem:[#allocation3 + $0x2] sm:$0x1] %vm269, %v364
    %v367 = vld [vmem:[#allocation2 + $0xc] sm:$0x1]
    %369 = vrot.lane.b32.xlu0 %v367, 64
    %v370 = vpop.permute.xlu0 %369
    %372 = vst.msk [vmem:[#allocation3 + $0x2] sm:$0x1] %vm276, %v370
    %v373 = vld [vmem:[#allocation2 + $0xd] sm:$0x1]
    %375 = vrot.lane.b32.xlu0 %v373, 80
    %v376 = vpop.permute.xlu0 %375
    %378 = vst.msk [vmem:[#allocation3 + $0x2] sm:$0x1] %vm283, %v376
    %v379 = vld [vmem:[#allocation2 + $0x12] sm:$0x1]
    %381 = vrot.lane.b32.xlu0 %v379, 96
    %v382 = vpop.permute.xlu0 %381
    %384 = vst.msk [vmem:[#allocation3 + $0x2] sm:$0x1] %vm290, %v382
    %v385 = vld [vmem:[#allocation2 + $0x13] sm:$0x1]
    %387 = vrot.lane.b32.xlu0 %v385, 112
    %v388 = vpop.permute.xlu0 %387
    %390 = vst.msk [vmem:[#allocation3 + $0x2] sm:$0x1] %vm297, %v388
    %v391 = vld [vmem:[#allocation2 + $0x14] sm:$0x1]
    %392 = vst.msk [vmem:[#allocation3 + $0xa] sm:$0x1] %vm248, %v391
    %v393 = vld [vmem:[#allocation2 + $0xe] sm:$0x1]
    %394 = vst.msk [vmem:[#allocation3 + $0x3] sm:$0x1] %vm248, %v393
    %v395 = vld [vmem:[#allocation2 + $0xf] sm:$0x1]
    %397 = vrot.lane.b32.xlu0 %v395, 16
    %v398 = vpop.permute.xlu0 %397
    %400 = vst.msk [vmem:[#allocation3 + $0x3] sm:$0x1] %vm255, %v398
    %v401 = vld [vmem:[#allocation2 + $0x10] sm:$0x1]
    %403 = vrot.lane.b32.xlu0 %v401, 32
    %v404 = vpop.permute.xlu0 %403
    %406 = vst.msk [vmem:[#allocation3 + $0x3] sm:$0x1] %vm262, %v404
    %v407 = vld [vmem:[#allocation2 + $0x15] sm:$0x1]
    %409 = vrot.lane.b32.xlu0 %v407, 48
    %v410 = vpop.permute.xlu0 %409
    %412 = vst.msk [vmem:[#allocation3 + $0x3] sm:$0x1] %vm269, %v410
    %v413 = vld [vmem:[#allocation2 + $0x16] sm:$0x1]
    %415 = vrot.lane.b32.xlu0 %v413, 64
    %v416 = vpop.permute.xlu0 %415
    %418 = vst.msk [vmem:[#allocation3 + $0x3] sm:$0x1] %vm276, %v416
    %v419 = vld [vmem:[#allocation2 + $0x17] sm:$0x1]
    %421 = vrot.lane.b32.xlu0 %v419, 80
    %v422 = vpop.permute.xlu0 %421
    %424 = vst.msk [vmem:[#allocation3 + $0x3] sm:$0x1] %vm283, %v422
    %v425 = vld [vmem:[#allocation2 + $0x1c] sm:$0x1]
    %427 = vrot.lane.b32.xlu0 %v425, 96
    %v428 = vpop.permute.xlu0 %427
    %430 = vst.msk [vmem:[#allocation3 + $0x3] sm:$0x1] %vm290, %v428
    %v431 = vld [vmem:[#allocation2 + $0x1d] sm:$0x1]
    %433 = vrot.lane.b32.xlu0 %v431, 112
    %v434 = vpop.permute.xlu0 %433
    %436 = vst.msk [vmem:[#allocation3 + $0x3] sm:$0x1] %vm297, %v434
    %v437 = vld [vmem:[#allocation2 + $0x1e] sm:$0x1]
    %438 = vst.msk [vmem:[#allocation3 + $0xb] sm:$0x1] %vm248, %v437
    %v439 = vld [vmem:[#allocation2 + $0x10] sm:$0x1]
    %440 = vst.msk [vmem:[#allocation3 + $0x4] sm:$0x1] %vm248, %v439
    %v441 = vld [vmem:[#allocation2 + $0x11] sm:$0x1]
    %443 = vrot.lane.b32.xlu0 %v441, 16
    %v444 = vpop.permute.xlu0 %443
    %446 = vst.msk [vmem:[#allocation3 + $0x4] sm:$0x1] %vm255, %v444
    %v447 = vld [vmem:[#allocation2 + $0x12] sm:$0x1]
    %449 = vrot.lane.b32.xlu0 %v447, 32
    %v450 = vpop.permute.xlu0 %449
    %452 = vst.msk [vmem:[#allocation3 + $0x4] sm:$0x1] %vm262, %v450
    %v453 = vld [vmem:[#allocation2 + $0x17] sm:$0x1]
    %455 = vrot.lane.b32.xlu0 %v453, 48
    %v456 = vpop.permute.xlu0 %455
    %458 = vst.msk [vmem:[#allocation3 + $0x4] sm:$0x1] %vm269, %v456
    %v459 = vld [vmem:[#allocation2 + $0x18] sm:$0x1]
    %461 = vrot.lane.b32.xlu0 %v459, 64
    %v462 = vpop.permute.xlu0 %461
    %464 = vst.msk [vmem:[#allocation3 + $0x4] sm:$0x1] %vm276, %v462
    %v465 = vld [vmem:[#allocation2 + $0x19] sm:$0x1]
    %467 = vrot.lane.b32.xlu0 %v465, 80
    %v468 = vpop.permute.xlu0 %467
    %470 = vst.msk [vmem:[#allocation3 + $0x4] sm:$0x1] %vm283, %v468
    %v471 = vld [vmem:[#allocation2 + $0x1e] sm:$0x1]
    %473 = vrot.lane.b32.xlu0 %v471, 96
    %v474 = vpop.permute.xlu0 %473
    %476 = vst.msk [vmem:[#allocation3 + $0x4] sm:$0x1] %vm290, %v474
    %v477 = vld [vmem:[#allocation2 + $0x1f] sm:$0x1]
    %479 = vrot.lane.b32.xlu0 %v477, 112
    %v480 = vpop.permute.xlu0 %479
    %482 = vst.msk [vmem:[#allocation3 + $0x4] sm:$0x1] %vm297, %v480
    %v483 = vld [vmem:[#allocation2 + $0x20] sm:$0x1]
    %484 = vst.msk [vmem:[#allocation3 + $0xc] sm:$0x1] %vm248, %v483
    %v485 = vld [vmem:[#allocation2 + $0x12] sm:$0x1]
    %486 = vst.msk [vmem:[#allocation3 + $0x5] sm:$0x1] %vm248, %v485
    %v487 = vld [vmem:[#allocation2 + $0x13] sm:$0x1]
    %489 = vrot.lane.b32.xlu0 %v487, 16
    %v490 = vpop.permute.xlu0 %489
    %492 = vst.msk [vmem:[#allocation3 + $0x5] sm:$0x1] %vm255, %v490
    %v493 = vld [vmem:[#allocation2 + $0x14] sm:$0x1]
    %495 = vrot.lane.b32.xlu0 %v493, 32
    %v496 = vpop.permute.xlu0 %495
    %498 = vst.msk [vmem:[#allocation3 + $0x5] sm:$0x1] %vm262, %v496
    %v499 = vld [vmem:[#allocation2 + $0x19] sm:$0x1]
    %501 = vrot.lane.b32.xlu0 %v499, 48
    %v502 = vpop.permute.xlu0 %501
    %504 = vst.msk [vmem:[#allocation3 + $0x5] sm:$0x1] %vm269, %v502
    %v505 = vld [vmem:[#allocation2 + $0x1a] sm:$0x1]
    %507 = vrot.lane.b32.xlu0 %v505, 64
    %v508 = vpop.permute.xlu0 %507
    %510 = vst.msk [vmem:[#allocation3 + $0x5] sm:$0x1] %vm276, %v508
    %v511 = vld [vmem:[#allocation2 + $0x1b] sm:$0x1]
    %513 = vrot.lane.b32.xlu0 %v511, 80
    %v514 = vpop.permute.xlu0 %513
    %516 = vst.msk [vmem:[#allocation3 + $0x5] sm:$0x1] %vm283, %v514
    %v517 = vld [vmem:[#allocation2 + $0x20] sm:$0x1]
    %519 = vrot.lane.b32.xlu0 %v517, 96
    %v520 = vpop.permute.xlu0 %519
    %522 = vst.msk [vmem:[#allocation3 + $0x5] sm:$0x1] %vm290, %v520
    %v523 = vld [vmem:[#allocation2 + $0x21] sm:$0x1]
    %525 = vrot.lane.b32.xlu0 %v523, 112
    %v526 = vpop.permute.xlu0 %525
    %528 = vst.msk [vmem:[#allocation3 + $0x5] sm:$0x1] %vm297, %v526
    %v529 = vld [vmem:[#allocation2 + $0x22] sm:$0x1]
    %530 = vst.msk [vmem:[#allocation3 + $0xd] sm:$0x1] %vm248, %v529
    %v531 = vld [vmem:[#allocation2 + $0x1c] sm:$0x1]
    %532 = vst.msk [vmem:[#allocation3 + $0x6] sm:$0x1] %vm248, %v531
    %v533 = vld [vmem:[#allocation2 + $0x1d] sm:$0x1]
    %535 = vrot.lane.b32.xlu0 %v533, 16
    %v536 = vpop.permute.xlu0 %535
    %538 = vst.msk [vmem:[#allocation3 + $0x6] sm:$0x1] %vm255, %v536
    %v539 = vld [vmem:[#allocation2 + $0x1e] sm:$0x1]
    %541 = vrot.lane.b32.xlu0 %v539, 32
    %v542 = vpop.permute.xlu0 %541
    %544 = vst.msk [vmem:[#allocation3 + $0x6] sm:$0x1] %vm262, %v542
    %v545 = vld [vmem:[#allocation2 + $0x23] sm:$0x1]
    %547 = vrot.lane.b32.xlu0 %v545, 48
    %v548 = vpop.permute.xlu0 %547
    %550 = vst.msk [vmem:[#allocation3 + $0x6] sm:$0x1] %vm269, %v548
    %v551 = vld [vmem:[#allocation2 + $0x24] sm:$0x1]
    %553 = vrot.lane.b32.xlu0 %v551, 64
    %v554 = vpop.permute.xlu0 %553
    %556 = vst.msk [vmem:[#allocation3 + $0x6] sm:$0x1] %vm276, %v554
    %v557 = vld [vmem:[#allocation2 + $0x25] sm:$0x1]
    %559 = vrot.lane.b32.xlu0 %v557, 80
    %v560 = vpop.permute.xlu0 %559
    %562 = vst.msk [vmem:[#allocation3 + $0x6] sm:$0x1] %vm283, %v560
    %v563 = vld [vmem:[#allocation2 + $0x2a] sm:$0x1]
    %565 = vrot.lane.b32.xlu0 %v563, 96
    %v566 = vpop.permute.xlu0 %565
    %568 = vst.msk [vmem:[#allocation3 + $0x6] sm:$0x1] %vm290, %v566
    %v569 = vld [vmem:[#allocation2 + $0x2b] sm:$0x1]
    %571 = vrot.lane.b32.xlu0 %v569, 112
    %v572 = vpop.permute.xlu0 %571
    %574 = vst.msk [vmem:[#allocation3 + $0x6] sm:$0x1] %vm297, %v572
    %v575 = vld [vmem:[#allocation2 + $0x2c] sm:$0x1]
    %576 = vst.msk [vmem:[#allocation3 + $0xe] sm:$0x1] %vm248, %v575
    %v577 = vld [vmem:[#allocation2 + $0x1e] sm:$0x1]
    %578 = vst.msk [vmem:[#allocation3 + $0x7] sm:$0x1] %vm248, %v577
    %v579 = vld [vmem:[#allocation2 + $0x1f] sm:$0x1]
    %581 = vrot.lane.b32.xlu0 %v579, 16
    %v582 = vpop.permute.xlu0 %581
    %584 = vst.msk [vmem:[#allocation3 + $0x7] sm:$0x1] %vm255, %v582
    %v585 = vld [vmem:[#allocation2 + $0x20] sm:$0x1]
    %587 = vrot.lane.b32.xlu0 %v585, 32
    %v588 = vpop.permute.xlu0 %587
    %590 = vst.msk [vmem:[#allocation3 + $0x7] sm:$0x1] %vm262, %v588
    %v591 = vld [vmem:[#allocation2 + $0x25] sm:$0x1]
    %593 = vrot.lane.b32.xlu0 %v591, 48
    %v594 = vpop.permute.xlu0 %593
    %596 = vst.msk [vmem:[#allocation3 + $0x7] sm:$0x1] %vm269, %v594
    %v597 = vld [vmem:[#allocation2 + $0x26] sm:$0x1]
    %599 = vrot.lane.b32.xlu0 %v597, 64
    %v600 = vpop.permute.xlu0 %599
    %602 = vst.msk [vmem:[#allocation3 + $0x7] sm:$0x1] %vm276, %v600
    %v603 = vld [vmem:[#allocation2 + $0x27] sm:$0x1]
    %605 = vrot.lane.b32.xlu0 %v603, 80
    %v606 = vpop.permute.xlu0 %605
    %608 = vst.msk [vmem:[#allocation3 + $0x7] sm:$0x1] %vm283, %v606
    %v609 = vld [vmem:[#allocation2 + $0x2c] sm:$0x1]
    %611 = vrot.lane.b32.xlu0 %v609, 96
    %v612 = vpop.permute.xlu0 %611
    %614 = vst.msk [vmem:[#allocation3 + $0x7] sm:$0x1] %vm290, %v612
    %v615 = vld [vmem:[#allocation2 + $0x2d] sm:$0x1]
    %617 = vrot.lane.b32.xlu0 %v615, 112
    %v618 = vpop.permute.xlu0 %617
    %620 = vst.msk [vmem:[#allocation3 + $0x7] sm:$0x1] %vm297, %v618
    %v621 = vld [vmem:[#allocation2 + $0x2e] sm:$0x1]
    %622 = vst.msk [vmem:[#allocation3 + $0xf] sm:$0x1] %vm248, %v621
    %v623 = vld [vmem:[#allocation2 + $0x20] sm:$0x1]
    %624 = vst.msk [vmem:[#allocation3 + $0x10] sm:$0x1] %vm248, %v623
    %v625 = vld [vmem:[#allocation2 + $0x21] sm:$0x1]
    %627 = vrot.lane.b32.xlu0 %v625, 16
    %v628 = vpop.permute.xlu0 %627
    %630 = vst.msk [vmem:[#allocation3 + $0x10] sm:$0x1] %vm255, %v628
    %v631 = vld [vmem:[#allocation2 + $0x22] sm:$0x1]
    %633 = vrot.lane.b32.xlu0 %v631, 32
    %v634 = vpop.permute.xlu0 %633
    %636 = vst.msk [vmem:[#allocation3 + $0x10] sm:$0x1] %vm262, %v634
    %v637 = vld [vmem:[#allocation2 + $0x27] sm:$0x1]
    %639 = vrot.lane.b32.xlu0 %v637, 48
    %v640 = vpop.permute.xlu0 %639
    %642 = vst.msk [vmem:[#allocation3 + $0x10] sm:$0x1] %vm269, %v640
    %v643 = vld [vmem:[#allocation2 + $0x28] sm:$0x1]
    %645 = vrot.lane.b32.xlu0 %v643, 64
    %v646 = vpop.permute.xlu0 %645
    %648 = vst.msk [vmem:[#allocation3 + $0x10] sm:$0x1] %vm276, %v646
    %v649 = vld [vmem:[#allocation2 + $0x29] sm:$0x1]
    %651 = vrot.lane.b32.xlu0 %v649, 80
    %v652 = vpop.permute.xlu0 %651
    %654 = vst.msk [vmem:[#allocation3 + $0x10] sm:$0x1] %vm283, %v652
    %v655 = vld [vmem:[#allocation2 + $0x2e] sm:$0x1]
    %657 = vrot.lane.b32.xlu0 %v655, 96
    %v658 = vpop.permute.xlu0 %657
    %660 = vst.msk [vmem:[#allocation3 + $0x10] sm:$0x1] %vm290, %v658
    %v661 = vld [vmem:[#allocation2 + $0x2f] sm:$0x1]
    %663 = vrot.lane.b32.xlu0 %v661, 112
    %v664 = vpop.permute.xlu0 %663
    %666 = vst.msk [vmem:[#allocation3 + $0x10] sm:$0x1] %vm297, %v664
    %v667 = vld [vmem:[#allocation2 + $0x30] sm:$0x1]
    %668 = vst.msk [vmem:[#allocation3 + $0x18] sm:$0x1] %vm248, %v667
    %v669 = vld [vmem:[#allocation2 + $0x31] sm:$0x1]
    %670 = vst.msk [vmem:[#allocation3 + $0x11] sm:$0x1] %vm248, %v669
    %v671 = vld [vmem:[#allocation2 + $0x32] sm:$0x1]
    %673 = vrot.lane.b32.xlu0 %v671, 16
    %v674 = vpop.permute.xlu0 %673
    %676 = vst.msk [vmem:[#allocation3 + $0x11] sm:$0x1] %vm255, %v674
    %v677 = vld [vmem:[#allocation2 + $0x33] sm:$0x1]
    %679 = vrot.lane.b32.xlu0 %v677, 32
    %v680 = vpop.permute.xlu0 %679
    %682 = vst.msk [vmem:[#allocation3 + $0x11] sm:$0x1] %vm262, %v680
    %v683 = vld [vmem:[#allocation2 + $0x38] sm:$0x1]
    %685 = vrot.lane.b32.xlu0 %v683, 48
    %v686 = vpop.permute.xlu0 %685
    %688 = vst.msk [vmem:[#allocation3 + $0x11] sm:$0x1] %vm269, %v686
    %v689 = vld [vmem:[#allocation2 + $0x39] sm:$0x1]
    %691 = vrot.lane.b32.xlu0 %v689, 64
    %v692 = vpop.permute.xlu0 %691
    %694 = vst.msk [vmem:[#allocation3 + $0x11] sm:$0x1] %vm276, %v692
    %v695 = vld [vmem:[#allocation2 + $0x3a] sm:$0x1]
    %697 = vrot.lane.b32.xlu0 %v695, 80
    %v698 = vpop.permute.xlu0 %697
    %700 = vst.msk [vmem:[#allocation3 + $0x11] sm:$0x1] %vm283, %v698
    %v701 = vld [vmem:[#allocation2 + $0x3f] sm:$0x1]
    %703 = vrot.lane.b32.xlu0 %v701, 96
    %v704 = vpop.permute.xlu0 %703
    %706 = vst.msk [vmem:[#allocation3 + $0x11] sm:$0x1] %vm290, %v704
    %v707 = vld [vmem:[#allocation2 + $0x40] sm:$0x1]
    %709 = vrot.lane.b32.xlu0 %v707, 112
    %v710 = vpop.permute.xlu0 %709
    %712 = vst.msk [vmem:[#allocation3 + $0x11] sm:$0x1] %vm297, %v710
    %v713 = vld [vmem:[#allocation2 + $0x41] sm:$0x1]
    %714 = vst.msk [vmem:[#allocation3 + $0x19] sm:$0x1] %vm248, %v713
    %v715 = vld [vmem:[#allocation2 + $0x33] sm:$0x1]
    %716 = vst.msk [vmem:[#allocation3 + $0x12] sm:$0x1] %vm248, %v715
    %v717 = vld [vmem:[#allocation2 + $0x34] sm:$0x1]
    %719 = vrot.lane.b32.xlu0 %v717, 16
    %v720 = vpop.permute.xlu0 %719
    %722 = vst.msk [vmem:[#allocation3 + $0x12] sm:$0x1] %vm255, %v720
    %v723 = vld [vmem:[#allocation2 + $0x35] sm:$0x1]
    %725 = vrot.lane.b32.xlu0 %v723, 32
    %v726 = vpop.permute.xlu0 %725
    %728 = vst.msk [vmem:[#allocation3 + $0x12] sm:$0x1] %vm262, %v726
    %v729 = vld [vmem:[#allocation2 + $0x3a] sm:$0x1]
    %731 = vrot.lane.b32.xlu0 %v729, 48
    %v732 = vpop.permute.xlu0 %731
    %734 = vst.msk [vmem:[#allocation3 + $0x12] sm:$0x1] %vm269, %v732
    %v735 = vld [vmem:[#allocation2 + $0x3b] sm:$0x1]
    %737 = vrot.lane.b32.xlu0 %v735, 64
    %v738 = vpop.permute.xlu0 %737
    %740 = vst.msk [vmem:[#allocation3 + $0x12] sm:$0x1] %vm276, %v738
    %v741 = vld [vmem:[#allocation2 + $0x3c] sm:$0x1]
    %743 = vrot.lane.b32.xlu0 %v741, 80
    %v744 = vpop.permute.xlu0 %743
    %746 = vst.msk [vmem:[#allocation3 + $0x12] sm:$0x1] %vm283, %v744
    %v747 = vld [vmem:[#allocation2 + $0x41] sm:$0x1]
    %749 = vrot.lane.b32.xlu0 %v747, 96
    %v750 = vpop.permute.xlu0 %749
    %752 = vst.msk [vmem:[#allocation3 + $0x12] sm:$0x1] %vm290, %v750
    %v753 = vld [vmem:[#allocation2 + $0x42] sm:$0x1]
    %755 = vrot.lane.b32.xlu0 %v753, 112
    %v756 = vpop.permute.xlu0 %755
    %758 = vst.msk [vmem:[#allocation3 + $0x12] sm:$0x1] %vm297, %v756
    %v759 = vld [vmem:[#allocation2 + $0x43] sm:$0x1]
    %760 = vst.msk [vmem:[#allocation3 + $0x1a] sm:$0x1] %vm248, %v759
    %v761 = vld [vmem:[#allocation2 + $0x35] sm:$0x1]
    %762 = vst.msk [vmem:[#allocation3 + $0x13] sm:$0x1] %vm248, %v761
    %v763 = vld [vmem:[#allocation2 + $0x36] sm:$0x1]
    %765 = vrot.lane.b32.xlu0 %v763, 16
    %v766 = vpop.permute.xlu0 %765
    %768 = vst.msk [vmem:[#allocation3 + $0x13] sm:$0x1] %vm255, %v766
    %v769 = vld [vmem:[#allocation2 + $0x37] sm:$0x1]
    %771 = vrot.lane.b32.xlu0 %v769, 32
    %v772 = vpop.permute.xlu0 %771
    %774 = vst.msk [vmem:[#allocation3 + $0x13] sm:$0x1] %vm262, %v772
    %v775 = vld [vmem:[#allocation2 + $0x3c] sm:$0x1]
    %777 = vrot.lane.b32.xlu0 %v775, 48
    %v778 = vpop.permute.xlu0 %777
    %780 = vst.msk [vmem:[#allocation3 + $0x13] sm:$0x1] %vm269, %v778
    %v781 = vld [vmem:[#allocation2 + $0x3d] sm:$0x1]
    %783 = vrot.lane.b32.xlu0 %v781, 64
    %v784 = vpop.permute.xlu0 %783
    %786 = vst.msk [vmem:[#allocation3 + $0x13] sm:$0x1] %vm276, %v784
    %v787 = vld [vmem:[#allocation2 + $0x3e] sm:$0x1]
    %789 = vrot.lane.b32.xlu0 %v787, 80
    %v790 = vpop.permute.xlu0 %789
    %792 = vst.msk [vmem:[#allocation3 + $0x13] sm:$0x1] %vm283, %v790
    %v793 = vld [vmem:[#allocation2 + $0x43] sm:$0x1]
    %795 = vrot.lane.b32.xlu0 %v793, 96
    %v796 = vpop.permute.xlu0 %795
    %798 = vst.msk [vmem:[#allocation3 + $0x13] sm:$0x1] %vm290, %v796
    %v799 = vld [vmem:[#allocation2 + $0x44] sm:$0x1]
    %801 = vrot.lane.b32.xlu0 %v799, 112
    %v802 = vpop.permute.xlu0 %801
    %804 = vst.msk [vmem:[#allocation3 + $0x13] sm:$0x1] %vm297, %v802
    %v805 = vld [vmem:[#allocation2 + $0x45] sm:$0x1]
    %806 = vst.msk [vmem:[#allocation3 + $0x1b] sm:$0x1] %vm248, %v805
    %v807 = vld [vmem:[#allocation2 + $0x3f] sm:$0x1]
    %808 = vst.msk [vmem:[#allocation3 + $0x14] sm:$0x1] %vm248, %v807
    %v809 = vld [vmem:[#allocation2 + $0x40] sm:$0x1]
    %811 = vrot.lane.b32.xlu0 %v809, 16
    %v812 = vpop.permute.xlu0 %811
    %814 = vst.msk [vmem:[#allocation3 + $0x14] sm:$0x1] %vm255, %v812
    %v815 = vld [vmem:[#allocation2 + $0x41] sm:$0x1]
    %817 = vrot.lane.b32.xlu0 %v815, 32
    %v818 = vpop.permute.xlu0 %817
    %820 = vst.msk [vmem:[#allocation3 + $0x14] sm:$0x1] %vm262, %v818
    %v821 = vld [vmem:[#allocation2 + $0x46] sm:$0x1]
    %823 = vrot.lane.b32.xlu0 %v821, 48
    %v824 = vpop.permute.xlu0 %823
    %826 = vst.msk [vmem:[#allocation3 + $0x14] sm:$0x1] %vm269, %v824
    %v827 = vld [vmem:[#allocation2 + $0x47] sm:$0x1]
    %829 = vrot.lane.b32.xlu0 %v827, 64
    %v830 = vpop.permute.xlu0 %829
    %832 = vst.msk [vmem:[#allocation3 + $0x14] sm:$0x1] %vm276, %v830
    %v833 = vld [vmem:[#allocation2 + $0x48] sm:$0x1]
    %835 = vrot.lane.b32.xlu0 %v833, 80
    %v836 = vpop.permute.xlu0 %835
    %838 = vst.msk [vmem:[#allocation3 + $0x14] sm:$0x1] %vm283, %v836
    %v839 = vld [vmem:[#allocation2 + $0x4d] sm:$0x1]
    %841 = vrot.lane.b32.xlu0 %v839, 96
    %v842 = vpop.permute.xlu0 %841
    %844 = vst.msk [vmem:[#allocation3 + $0x14] sm:$0x1] %vm290, %v842
    %v845 = vld [vmem:[#allocation2 + $0x4e] sm:$0x1]
    %847 = vrot.lane.b32.xlu0 %v845, 112
    %v848 = vpop.permute.xlu0 %847
    %850 = vst.msk [vmem:[#allocation3 + $0x14] sm:$0x1] %vm297, %v848
    %v851 = vld [vmem:[#allocation2 + $0x4f] sm:$0x1]
    %852 = vst.msk [vmem:[#allocation3 + $0x1c] sm:$0x1] %vm248, %v851
    %v853 = vld [vmem:[#allocation2 + $0x41] sm:$0x1]
    %854 = vst.msk [vmem:[#allocation3 + $0x15] sm:$0x1] %vm248, %v853
    %v855 = vld [vmem:[#allocation2 + $0x42] sm:$0x1]
    %857 = vrot.lane.b32.xlu0 %v855, 16
    %v858 = vpop.permute.xlu0 %857
    %860 = vst.msk [vmem:[#allocation3 + $0x15] sm:$0x1] %vm255, %v858
    %v861 = vld [vmem:[#allocation2 + $0x43] sm:$0x1]
    %863 = vrot.lane.b32.xlu0 %v861, 32
    %v864 = vpop.permute.xlu0 %863
    %866 = vst.msk [vmem:[#allocation3 + $0x15] sm:$0x1] %vm262, %v864
    %v867 = vld [vmem:[#allocation2 + $0x48] sm:$0x1]
    %869 = vrot.lane.b32.xlu0 %v867, 48
    %v870 = vpop.permute.xlu0 %869
    %872 = vst.msk [vmem:[#allocation3 + $0x15] sm:$0x1] %vm269, %v870
    %v873 = vld [vmem:[#allocation2 + $0x49] sm:$0x1]
    %875 = vrot.lane.b32.xlu0 %v873, 64
    %v876 = vpop.permute.xlu0 %875
    %878 = vst.msk [vmem:[#allocation3 + $0x15] sm:$0x1] %vm276, %v876
    %v879 = vld [vmem:[#allocation2 + $0x4a] sm:$0x1]
    %881 = vrot.lane.b32.xlu0 %v879, 80
    %v882 = vpop.permute.xlu0 %881
    %884 = vst.msk [vmem:[#allocation3 + $0x15] sm:$0x1] %vm283, %v882
    %v885 = vld [vmem:[#allocation2 + $0x4f] sm:$0x1]
    %887 = vrot.lane.b32.xlu0 %v885, 96
    %v888 = vpop.permute.xlu0 %887
    %890 = vst.msk [vmem:[#allocation3 + $0x15] sm:$0x1] %vm290, %v888
    %v891 = vld [vmem:[#allocation2 + $0x50] sm:$0x1]
    %893 = vrot.lane.b32.xlu0 %v891, 112
    %v894 = vpop.permute.xlu0 %893
    %896 = vst.msk [vmem:[#allocation3 + $0x15] sm:$0x1] %vm297, %v894
    %v897 = vld [vmem:[#allocation2 + $0x51] sm:$0x1]
    %898 = vst.msk [vmem:[#allocation3 + $0x1d] sm:$0x1] %vm248, %v897
    %v899 = vld [vmem:[#allocation2 + $0x43] sm:$0x1]
    %900 = vst.msk [vmem:[#allocation3 + $0x16] sm:$0x1] %vm248, %v899
    %v901 = vld [vmem:[#allocation2 + $0x44] sm:$0x1]
    %903 = vrot.lane.b32.xlu0 %v901, 16
    %v904 = vpop.permute.xlu0 %903
    %906 = vst.msk [vmem:[#allocation3 + $0x16] sm:$0x1] %vm255, %v904
    %v907 = vld [vmem:[#allocation2 + $0x45] sm:$0x1]
    %909 = vrot.lane.b32.xlu0 %v907, 32
    %v910 = vpop.permute.xlu0 %909
    %912 = vst.msk [vmem:[#allocation3 + $0x16] sm:$0x1] %vm262, %v910
    %v913 = vld [vmem:[#allocation2 + $0x4a] sm:$0x1]
    %915 = vrot.lane.b32.xlu0 %v913, 48
    %v916 = vpop.permute.xlu0 %915
    %918 = vst.msk [vmem:[#allocation3 + $0x16] sm:$0x1] %vm269, %v916
    %v919 = vld [vmem:[#allocation2 + $0x4b] sm:$0x1]
    %921 = vrot.lane.b32.xlu0 %v919, 64
    %v922 = vpop.permute.xlu0 %921
    %924 = vst.msk [vmem:[#allocation3 + $0x16] sm:$0x1] %vm276, %v922
    %v925 = vld [vmem:[#allocation2 + $0x4c] sm:$0x1]
    %927 = vrot.lane.b32.xlu0 %v925, 80
    %v928 = vpop.permute.xlu0 %927
    %930 = vst.msk [vmem:[#allocation3 + $0x16] sm:$0x1] %vm283, %v928
    %v931 = vld [vmem:[#allocation2 + $0x51] sm:$0x1]
    %933 = vrot.lane.b32.xlu0 %v931, 96
    %v934 = vpop.permute.xlu0 %933
    %936 = vst.msk [vmem:[#allocation3 + $0x16] sm:$0x1] %vm290, %v934
    %v937 = vld [vmem:[#allocation2 + $0x52] sm:$0x1]
    %939 = vrot.lane.b32.xlu0 %v937, 112
    %v940 = vpop.permute.xlu0 %939
    %942 = vst.msk [vmem:[#allocation3 + $0x16] sm:$0x1] %vm297, %v940
    %v943 = vld [vmem:[#allocation2 + $0x53] sm:$0x1]
    %944 = vst.msk [vmem:[#allocation3 + $0x1e] sm:$0x1] %vm248, %v943
    %v945 = vld [vmem:[#allocation2 + $0x4d] sm:$0x1]
    %946 = vst.msk [vmem:[#allocation3 + $0x17] sm:$0x1] %vm248, %v945
    %v947 = vld [vmem:[#allocation2 + $0x4e] sm:$0x1]
    %949 = vrot.lane.b32.xlu0 %v947, 16
    %v950 = vpop.permute.xlu0 %949
    %952 = vst.msk [vmem:[#allocation3 + $0x17] sm:$0x1] %vm255, %v950
    %v953 = vld [vmem:[#allocation2 + $0x4f] sm:$0x1]
    %955 = vrot.lane.b32.xlu0 %v953, 32
    %v956 = vpop.permute.xlu0 %955
    %958 = vst.msk [vmem:[#allocation3 + $0x17] sm:$0x1] %vm262, %v956
    %v959 = vld [vmem:[#allocation2 + $0x54] sm:$0x1]
    %961 = vrot.lane.b32.xlu0 %v959, 48
    %v962 = vpop.permute.xlu0 %961
    %964 = vst.msk [vmem:[#allocation3 + $0x17] sm:$0x1] %vm269, %v962
    %v965 = vld [vmem:[#allocation2 + $0x55] sm:$0x1]
    %967 = vrot.lane.b32.xlu0 %v965, 64
    %v968 = vpop.permute.xlu0 %967
    %970 = vst.msk [vmem:[#allocation3 + $0x17] sm:$0x1] %vm276, %v968
    %v971 = vld [vmem:[#allocation2 + $0x56] sm:$0x1]
    %973 = vrot.lane.b32.xlu0 %v971, 80
    %v974 = vpop.permute.xlu0 %973
    %976 = vst.msk [vmem:[#allocation3 + $0x17] sm:$0x1] %vm283, %v974
    %v977 = vld [vmem:[#allocation2 + $0x5b] sm:$0x1]
    %979 = vrot.lane.b32.xlu0 %v977, 96
    %v980 = vpop.permute.xlu0 %979
    %982 = vst.msk [vmem:[#allocation3 + $0x17] sm:$0x1] %vm290, %v980
    %v983 = vld [vmem:[#allocation2 + $0x5c] sm:$0x1]
    %985 = vrot.lane.b32.xlu0 %v983, 112
    %v986 = vpop.permute.xlu0 %985
    %988 = vst.msk [vmem:[#allocation3 + $0x17] sm:$0x1] %vm297, %v986
    %v989 = vld [vmem:[#allocation2 + $0x5d] sm:$0x1]
    %990 = vst.msk [vmem:[#allocation3 + $0x1f] sm:$0x1] %vm248, %v989
    %v991 = vld [vmem:[#allocation2 + $0x4f] sm:$0x1]
    %992 = vst.msk [vmem:[#allocation3 + $0x20] sm:$0x1] %vm248, %v991
    %v993 = vld [vmem:[#allocation2 + $0x50] sm:$0x1]
    %995 = vrot.lane.b32.xlu0 %v993, 16
    %v996 = vpop.permute.xlu0 %995
    %998 = vst.msk [vmem:[#allocation3 + $0x20] sm:$0x1] %vm255, %v996
    %v999 = vld [vmem:[#allocation2 + $0x51] sm:$0x1]
    %1001 = vrot.lane.b32.xlu0 %v999, 32
    %v1002 = vpop.permute.xlu0 %1001
    %1004 = vst.msk [vmem:[#allocation3 + $0x20] sm:$0x1] %vm262, %v1002
    %v1005 = vld [vmem:[#allocation2 + $0x56] sm:$0x1]
    %1007 = vrot.lane.b32.xlu0 %v1005, 48
    %v1008 = vpop.permute.xlu0 %1007
    %1010 = vst.msk [vmem:[#allocation3 + $0x20] sm:$0x1] %vm269, %v1008
    %v1011 = vld [vmem:[#allocation2 + $0x57] sm:$0x1]
    %1013 = vrot.lane.b32.xlu0 %v1011, 64
    %v1014 = vpop.permute.xlu0 %1013
    %1016 = vst.msk [vmem:[#allocation3 + $0x20] sm:$0x1] %vm276, %v1014
    %v1017 = vld [vmem:[#allocation2 + $0x58] sm:$0x1]
    %1019 = vrot.lane.b32.xlu0 %v1017, 80
    %v1020 = vpop.permute.xlu0 %1019
    %1022 = vst.msk [vmem:[#allocation3 + $0x20] sm:$0x1] %vm283, %v1020
    %v1023 = vld [vmem:[#allocation2 + $0x5d] sm:$0x1]
    %1025 = vrot.lane.b32.xlu0 %v1023, 96
    %v1026 = vpop.permute.xlu0 %1025
    %1028 = vst.msk [vmem:[#allocation3 + $0x20] sm:$0x1] %vm290, %v1026
    %v1029 = vld [vmem:[#allocation2 + $0x5e] sm:$0x1]
    %1031 = vrot.lane.b32.xlu0 %v1029, 112
    %v1032 = vpop.permute.xlu0 %1031
    %1034 = vst.msk [vmem:[#allocation3 + $0x20] sm:$0x1] %vm297, %v1032
    %v1035 = vld [vmem:[#allocation2 + $0x5f] sm:$0x1]
    %1036 = vst.msk [vmem:[#allocation3 + $0x28] sm:$0x1] %vm248, %v1035
    %v1037 = vld [vmem:[#allocation2 + $0x51] sm:$0x1]
    %1038 = vst.msk [vmem:[#allocation3 + $0x21] sm:$0x1] %vm248, %v1037
    %v1039 = vld [vmem:[#allocation2 + $0x52] sm:$0x1]
    %1041 = vrot.lane.b32.xlu0 %v1039, 16
    %v1042 = vpop.permute.xlu0 %1041
    %1044 = vst.msk [vmem:[#allocation3 + $0x21] sm:$0x1] %vm255, %v1042
    %v1045 = vld [vmem:[#allocation2 + $0x53] sm:$0x1]
    %1047 = vrot.lane.b32.xlu0 %v1045, 32
    %v1048 = vpop.permute.xlu0 %1047
    %1050 = vst.msk [vmem:[#allocation3 + $0x21] sm:$0x1] %vm262, %v1048
    %v1051 = vld [vmem:[#allocation2 + $0x58] sm:$0x1]
    %1053 = vrot.lane.b32.xlu0 %v1051, 48
    %v1054 = vpop.permute.xlu0 %1053
    %1056 = vst.msk [vmem:[#allocation3 + $0x21] sm:$0x1] %vm269, %v1054
    %v1057 = vld [vmem:[#allocation2 + $0x59] sm:$0x1]
    %1059 = vrot.lane.b32.xlu0 %v1057, 64
    %v1060 = vpop.permute.xlu0 %1059
    %1062 = vst.msk [vmem:[#allocation3 + $0x21] sm:$0x1] %vm276, %v1060
    %v1063 = vld [vmem:[#allocation2 + $0x5a] sm:$0x1]
    %1065 = vrot.lane.b32.xlu0 %v1063, 80
    %v1066 = vpop.permute.xlu0 %1065
    %1068 = vst.msk [vmem:[#allocation3 + $0x21] sm:$0x1] %vm283, %v1066
    %v1069 = vld [vmem:[#allocation2 + $0x5f] sm:$0x1]
    %1071 = vrot.lane.b32.xlu0 %v1069, 96
    %v1072 = vpop.permute.xlu0 %1071
    %1074 = vst.msk [vmem:[#allocation3 + $0x21] sm:$0x1] %vm290, %v1072
    %v1075 = vld [vmem:[#allocation2 + $0x60] sm:$0x1]
    %1077 = vrot.lane.b32.xlu0 %v1075, 112
    %v1078 = vpop.permute.xlu0 %1077
    %1080 = vst.msk [vmem:[#allocation3 + $0x21] sm:$0x1] %vm297, %v1078
    %v1081 = vld [vmem:[#allocation2 + $0x61] sm:$0x1]
    %1082 = vst.msk [vmem:[#allocation3 + $0x29] sm:$0x1] %vm248, %v1081
    %v1083 = vld [vmem:[#allocation3] sm:$0xff]
    %v1084 = vld [vmem:[#allocation3 + $0x8] sm:$0xff]
    %v1085 = vld [vmem:[#allocation3 + $0x10] sm:$0xff]
    %v1086 = vld [vmem:[#allocation3 + $0x18] sm:$0xff]
    %v1087 = vld [vmem:[#allocation3 + $0x20] sm:$0x3]
    %v1088 = vld [vmem:[#allocation3 + $0x28] sm:$0x3]
    %v1089 = vpack.c.bf16 %v1085, %v1083
    %v1090 = vpack.c.bf16 %v1086, %v1084
    %v1091 = vpack.c.bf16 %v1087, %v1087
    %v1092 = vpack.c.bf16 %v1088, %v1088
    %v1093 = vld [vmem:[%s3] sm:$0xf]
    %v1094 = vld [vmem:[%s3 + $0x4] sm:$0xf]
    %v1095 = vld [vmem:[%s3 + $0x8] sm:$0xf]
    %v1096 = vld [vmem:[%s3 + $0xc] sm:$0xf]
    %v1097 = vld [vmem:[%s3 + $0x10] sm:$0xf]
    %v1098 = vld [vmem:[%s3 + $0x14] sm:$0xf]
    %v1099 = vld [vmem:[%s3 + $0x18] sm:$0xf]
    %v1100 = vld [vmem:[%s3 + $0x1c] sm:$0xf]
    %v1101 = vld [vmem:[%s3 + $0x20] sm:$0xf]
    %v1102 = vld [vmem:[%s3 + $0x24] sm:$0xf]
    %v1103 = vld [vmem:[%s3 + $0x28] sm:$0xf]
    %v1104 = vld [vmem:[%s3 + $0x2c] sm:$0xf]
    %v1105 = vld [vmem:[%s3 + $0x30] sm:$0xf]
    %v1106 = vld [vmem:[%s3 + $0x34] sm:$0xf]
    %v1107 = vld [vmem:[%s3 + $0x38] sm:$0xf]
    %v1108 = vld [vmem:[%s3 + $0x3c] sm:$0xf]
    %v1109 = vld [vmem:[%s3 + $0x40] sm:$0xf]
    %v1110 = vld [vmem:[%s3 + $0x44] sm:$0xf]
    %v1111 = vld [vmem:[%s4] sm:$0x1]
    %v1113 = vlaneseq
    %v1114 = vshrl.u32 %v1113, 7
    %v1115 = vsub.s32 0, %v1114
    %v1116 = vrot.slane %v1111, %v1115
    %v1136 = vunpack.c.l.b16 %v1093
    %v1137 = vunpack.c.l.b16 %v1094
    %v1138 = vunpack.c.l.b16 %v1095
    %v1139 = vunpack.c.l.b16 %v1096
    %v1140 = vunpack.c.l.b16 %v1097
    %v1141 = vunpack.c.l.b16 %v1098
    %v1142 = vunpack.c.l.b16 %v1099
    %v1143 = vunpack.c.l.b16 %v1100
    %v1144 = vunpack.c.l.b16 %v1101
    %v1145 = vunpack.c.l.b16 %v1102
    %v1146 = vunpack.c.l.b16 %v1103
    %v1147 = vunpack.c.l.b16 %v1104
    %v1148 = vunpack.c.l.b16 %v1105
    %v1149 = vunpack.c.l.b16 %v1106
    %v1150 = vunpack.c.l.b16 %v1107
    %v1151 = vunpack.c.l.b16 %v1108
    %v1152 = vunpack.c.l.b16 %v1109
    %v1153 = vunpack.c.l.b16 %v1110
    %v1154 = vpack.c.b16 %v1137, %v1136
    %v1155 = vpack.c.b16 %v1139, %v1138
    %v1156 = vpack.c.b16 %v1141, %v1140
    %v1157 = vpack.c.b16 %v1143, %v1142
    %v1158 = vpack.c.b16 %v1145, %v1144
    %v1159 = vpack.c.b16 %v1147, %v1146
    %v1160 = vpack.c.b16 %v1149, %v1148
    %v1161 = vpack.c.b16 %v1151, %v1150
    %v1162 = vpack.c.b16 %v1153, %v1152
    %v1173 = vsel %vm232, %v1090, 0
    %v1176 = vsel %vm232, %v1092, 0
    %1178 = vmatprep.subr.bf16.mxu0 0
    %1179 = vmatpush1.bf16.msra.mxu0 %v1161
    %1180 = vmatprep.subr.bf16.mxu0 0
    %1181 = vmatpush1.bf16.msra.mxu0 %v1160
    %1182 = vmatprep.subr.bf16.mxu0 0
    %1183 = vmatpush1.bf16.msra.mxu0 %v1159
    %1184 = vmatprep.subr.bf16.mxu0 0
    %1185 = vmatpush1.bf16.msra.mxu0 %v1158
    %1186 = vmatprep.subr.bf16.mxu0 0
    %1187 = vmatpush1.bf16.msra.mxu0 %v1157
    %1188 = vmatprep.subr.bf16.mxu0 0
    %1189 = vmatpush1.bf16.msra.mxu0 %v1156
    %1190 = vmatprep.subr.bf16.mxu0 0
    %1191 = vmatpush1.bf16.msra.mxu0 %v1155
    %1192 = vmatprep.subr.bf16.mxu0 0
    %1193 = vmatpush1.bf16.msra.mxu0 %v1154
    %1194 = vmatprep.subr.bf16.mxu0 0
    %1195 = vmatpush2.bf16.msra.mxu0 0
    %1196 = vmatprep.subr.bf16.mxu0 0
    %1197 = vmatpush2.bf16.msra.mxu0 0
    %1198 = vmatprep.subr.bf16.mxu0 0
    %1199 = vmatpush2.bf16.msra.mxu0 0
    %1200 = vmatprep.subr.bf16.mxu0 0
    %1201 = vmatpush2.bf16.msra.mxu0 0
    %1202 = vmatprep.subr.bf16.mxu0 0
    %1203 = vmatpush2.bf16.msra.mxu0 0
    %1204 = vmatprep.subr.bf16.mxu0 0
    %1205 = vmatpush2.bf16.msra.mxu0 0
    %1206 = vmatprep.subr.bf16.mxu0 0
    %1207 = vmatpush2.bf16.msra.mxu0 0
    %1208 = vmatprep.subr.bf16.mxu0 0
    %1209 = vmatpush2.bf16.msra.mxu0 %v1162
    %1210 = vmatprep.mubr.bf16.mxu0 %v1173
    %1211 = vmatmul.mubr.bf16.gmra.mxu0 %v1089
    %v1212 = vpop.f32.mrf.mxu0
    %v1213 = vadd.f32 %v1116, %v1212
    %v1214 = vpop.f32.mrf.mxu0
    %v1215 = vpop.f32.mrf.mxu0
    %v1216 = vadd.f32 %v1116, %v1215
    %v1217 = vpop.f32.mrf.mxu0
    %1218 = vmatprep.mubr.bf16.mxu0 %v1176
    %1219 = vmatmul.mubr.bf16.gmra.mxu0 %v1091
    %v1220 = vpop.f32.mrf.mxu0
    %v1221 = vadd.f32 %v1116, %v1220
    %v1222 = vpop.f32.mrf.mxu0
    %v1223 = vpop.f32.mrf.mxu0
    %v1224 = vpop.f32.mrf.mxu0
    %1225 = vdwg.mxu0
    %v1226 = vmax.f32 %v1213, 0.0
    %v1227 = vmax.f32 %v1216, 0.0
    %v1228 = vmax.f32 %v1221, 0.0
    %vm1229 = vcmask 261120
    %1230 = vst.msk [vmem:[#allocation4] sm:$0xff] %vm1229, %v1226
    %1231 = vst.msk [vmem:[#allocation4 + $0x8] sm:$0xff] %vm1229, %v1227
    %vm1232 = vcmask 254976
    %1233 = vst.msk [vmem:[#allocation4 + $0x10] sm:$0x3] %vm1232, %v1228
    %v1234 = vld [vmem:[#allocation4] sm:$0x1]
    %vm1235 = vcmask 253952
    %1236 = vst.msk [vmem:[#allocation5] sm:$0x1] %vm1235, %v1234
    %v1237 = vld [vmem:[#allocation4 + $0x1] sm:$0x1]
    %v1240 = vunpack.c.l.s4 1983009808
    %v1241 = vunpack.c.0.s8 %v1240
    %v1242 = vlaneseq
    %v1243 = vshrl.u32 %v1242, 7
    %v1244 = vsub.s32 %v1241, %v1243
    %v1245 = vrot.slane %v1237, %v1244
    %1246 = vrot.lane.b32.xlu0 %v1245, 32
    %v1247 = vpop.permute.xlu0 %1246
    %vm1249 = vcmask 516352
    %1250 = vst.msk [vmem:[#allocation5] sm:$0x1] %vm1249, %v1247
    %v1251 = vld [vmem:[#allocation4 + $0x2] sm:$0x1]
    %v1254 = vunpack.c.l.s4 1983009808
    %v1255 = vunpack.c.0.s8 %v1254
    %v1256 = vlaneseq
    %v1257 = vshrl.u32 %v1256, 7
    %v1258 = vsub.s32 %v1255, %v1257
    %v1259 = vrot.slane %v1251, %v1258
    %1260 = vrot.lane.b32.xlu0 %v1259, 64
    %v1261 = vpop.permute.xlu0 %1260
    %vm1263 = vcmask 778752
    %1264 = vst.msk [vmem:[#allocation5] sm:$0x1] %vm1263, %v1261
    %v1265 = vld [vmem:[#allocation4 + $0x3] sm:$0x1]
    %v1268 = vunpack.c.l.s4 1983009808
    %v1269 = vunpack.c.0.s8 %v1268
    %v1270 = vlaneseq
    %v1271 = vshrl.u32 %v1270, 7
    %v1272 = vsub.s32 %v1269, %v1271
    %v1273 = vrot.slane %v1265, %v1272
    %1274 = vrot.lane.b32.xlu0 %v1273, 96
    %v1275 = vpop.permute.xlu0 %1274
    %vm1277 = vcmask 1041152
    %1278 = vst.msk [vmem:[#allocation5] sm:$0x1] %vm1277, %v1275
    %v1279 = vld [vmem:[#allocation4 + $0x4] sm:$0x1]
    %1280 = vst.msk [vmem:[#allocation5 + $0x2] sm:$0x1] %vm1235, %v1279
    %v1281 = vld [vmem:[#allocation4 + $0x5] sm:$0x1]
    %v1284 = vunpack.c.l.s4 1983009808
    %v1285 = vunpack.c.0.s8 %v1284
    %v1286 = vlaneseq
    %v1287 = vshrl.u32 %v1286, 7
    %v1288 = vsub.s32 %v1285, %v1287
    %v1289 = vrot.slane %v1281, %v1288
    %1290 = vrot.lane.b32.xlu0 %v1289, 32
    %v1291 = vpop.permute.xlu0 %1290
    %1293 = vst.msk [vmem:[#allocation5 + $0x2] sm:$0x1] %vm1249, %v1291
    %v1294 = vld [vmem:[#allocation4 + $0x6] sm:$0x1]
    %v1297 = vunpack.c.l.s4 1983009808
    %v1298 = vunpack.c.0.s8 %v1297
    %v1299 = vlaneseq
    %v1300 = vshrl.u32 %v1299, 7
    %v1301 = vsub.s32 %v1298, %v1300
    %v1302 = vrot.slane %v1294, %v1301
    %1303 = vrot.lane.b32.xlu0 %v1302, 64
    %v1304 = vpop.permute.xlu0 %1303
    %1306 = vst.msk [vmem:[#allocation5 + $0x2] sm:$0x1] %vm1263, %v1304
    %v1307 = vld [vmem:[#allocation4 + $0x7] sm:$0x1]
    %v1310 = vunpack.c.l.s4 1983009808
    %v1311 = vunpack.c.0.s8 %v1310
    %v1312 = vlaneseq
    %v1313 = vshrl.u32 %v1312, 7
    %v1314 = vsub.s32 %v1311, %v1313
    %v1315 = vrot.slane %v1307, %v1314
    %1316 = vrot.lane.b32.xlu0 %v1315, 96
    %v1317 = vpop.permute.xlu0 %1316
    %1319 = vst.msk [vmem:[#allocation5 + $0x2] sm:$0x1] %vm1277, %v1317
    %v1320 = vld [vmem:[#allocation4 + $0x8] sm:$0x1]
    %1321 = vst.msk [vmem:[#allocation5 + $0x4] sm:$0x1] %vm1235, %v1320
    %v1322 = vld [vmem:[#allocation4 + $0x9] sm:$0x1]
    %1323 = vst.msk [vmem:[#allocation5 + $0x1] sm:$0x1] %vm1235, %v1322
    %v1324 = vld [vmem:[#allocation4 + $0xa] sm:$0x1]
    %v1327 = vunpack.c.l.s4 1983009808
    %v1328 = vunpack.c.0.s8 %v1327
    %v1329 = vlaneseq
    %v1330 = vshrl.u32 %v1329, 7
    %v1331 = vsub.s32 %v1328, %v1330
    %v1332 = vrot.slane %v1324, %v1331
    %1333 = vrot.lane.b32.xlu0 %v1332, 32
    %v1334 = vpop.permute.xlu0 %1333
    %1336 = vst.msk [vmem:[#allocation5 + $0x1] sm:$0x1] %vm1249, %v1334
    %v1337 = vld [vmem:[#allocation4 + $0xb] sm:$0x1]
    %v1340 = vunpack.c.l.s4 1983009808
    %v1341 = vunpack.c.0.s8 %v1340
    %v1342 = vlaneseq
    %v1343 = vshrl.u32 %v1342, 7
    %v1344 = vsub.s32 %v1341, %v1343
    %v1345 = vrot.slane %v1337, %v1344
    %1346 = vrot.lane.b32.xlu0 %v1345, 64
    %v1347 = vpop.permute.xlu0 %1346
    %1349 = vst.msk [vmem:[#allocation5 + $0x1] sm:$0x1] %vm1263, %v1347
    %v1350 = vld [vmem:[#allocation4 + $0xc] sm:$0x1]
    %v1353 = vunpack.c.l.s4 1983009808
    %v1354 = vunpack.c.0.s8 %v1353
    %v1355 = vlaneseq
    %v1356 = vshrl.u32 %v1355, 7
    %v1357 = vsub.s32 %v1354, %v1356
    %v1358 = vrot.slane %v1350, %v1357
    %1359 = vrot.lane.b32.xlu0 %v1358, 96
    %v1360 = vpop.permute.xlu0 %1359
    %1362 = vst.msk [vmem:[#allocation5 + $0x1] sm:$0x1] %vm1277, %v1360
    %v1363 = vld [vmem:[#allocation4 + $0xd] sm:$0x1]
    %1364 = vst.msk [vmem:[#allocation5 + $0x3] sm:$0x1] %vm1235, %v1363
    %v1365 = vld [vmem:[#allocation4 + $0xe] sm:$0x1]
    %v1368 = vunpack.c.l.s4 1983009808
    %v1369 = vunpack.c.0.s8 %v1368
    %v1370 = vlaneseq
    %v1371 = vshrl.u32 %v1370, 7
    %v1372 = vsub.s32 %v1369, %v1371
    %v1373 = vrot.slane %v1365, %v1372
    %1374 = vrot.lane.b32.xlu0 %v1373, 32
    %v1375 = vpop.permute.xlu0 %1374
    %1377 = vst.msk [vmem:[#allocation5 + $0x3] sm:$0x1] %vm1249, %v1375
    %v1378 = vld [vmem:[#allocation4 + $0xf] sm:$0x1]
    %v1381 = vunpack.c.l.s4 1983009808
    %v1382 = vunpack.c.0.s8 %v1381
    %v1383 = vlaneseq
    %v1384 = vshrl.u32 %v1383, 7
    %v1385 = vsub.s32 %v1382, %v1384
    %v1386 = vrot.slane %v1378, %v1385
    %1387 = vrot.lane.b32.xlu0 %v1386, 64
    %v1388 = vpop.permute.xlu0 %1387
    %1390 = vst.msk [vmem:[#allocation5 + $0x3] sm:$0x1] %vm1263, %v1388
    %v1391 = vld [vmem:[#allocation4 + $0x10] sm:$0x1]
    %v1394 = vunpack.c.l.s4 1983009808
    %v1395 = vunpack.c.0.s8 %v1394
    %v1396 = vlaneseq
    %v1397 = vshrl.u32 %v1396, 7
    %v1398 = vsub.s32 %v1395, %v1397
    %v1399 = vrot.slane %v1391, %v1398
    %1400 = vrot.lane.b32.xlu0 %v1399, 96
    %v1401 = vpop.permute.xlu0 %1400
    %1403 = vst.msk [vmem:[#allocation5 + $0x3] sm:$0x1] %vm1277, %v1401
    %v1404 = vld [vmem:[#allocation4 + $0x11] sm:$0x1]
    %1405 = vst.msk [vmem:[#allocation5 + $0x5] sm:$0x1] %vm1235, %v1404
    %v1406 = vld [vmem:[#allocation5] sm:$0x3f]
    %v1408 = vcombine.high %v1406, %v1406
    %v1410 = vunpack.c.l.s4 1983009808
    %v1411 = vunpack.c.0.s8 %v1410
    %v1412 = vlaneseq
    %v1413 = vshrl.u32 %v1412, 7
    %v1414 = vsub.s32 %v1411, %v1413
    %v1415 = vrot.slane %v1406, %v1414
    %v1417 = vunpack.c.l.s4 1983009808
    %v1418 = vunpack.c.0.s8 %v1417
    %v1419 = vlaneseq
    %v1420 = vshrl.u32 %v1419, 7
    %v1421 = vsub.s32 %v1418, %v1420
    %v1422 = vrot.slane %v1408, %v1421
    %v1423 = vcombine.high %v1415, %v1415
    %v1427 = vpack.c.bf16 %v1415, %v1415
    %v1428 = vpack.c.bf16 %v1423, %v1423
    %v1429 = vpack.c.bf16 %v1422, %v1422
    %v1430 = vld [vmem:[%s5] sm:$0xf]
    %v1431 = vld [vmem:[%s5 + $0x4] sm:$0xf]
    %v1432 = vld [vmem:[%s5 + $0x8] sm:$0xf]
    %v1433 = vld [vmem:[%s5 + $0xc] sm:$0xf]
    %v1434 = vld [vmem:[%s5 + $0x10] sm:$0xf]
    %v1435 = vld [vmem:[%s5 + $0x14] sm:$0xf]
    %v1436 = vld [vmem:[%s5 + $0x18] sm:$0xf]
    %v1437 = vld [vmem:[%s5 + $0x1c] sm:$0xf]
    %v1438 = vld [vmem:[%s5 + $0x20] sm:$0xf]
    %v1439 = vld [vmem:[%s5 + $0x24] sm:$0xf]
    %v1440 = vld [vmem:[%s5 + $0x28] sm:$0xf]
    %v1441 = vld [vmem:[%s5 + $0x2c] sm:$0xf]
    %v1442 = vld [vmem:[%s5 + $0x30] sm:$0xf]
    %v1443 = vld [vmem:[%s5 + $0x34] sm:$0xf]
    %v1444 = vld [vmem:[%s5 + $0x38] sm:$0xf]
    %v1445 = vld [vmem:[%s5 + $0x3c] sm:$0xf]
    %v1446 = vld [vmem:[%s5 + $0x40] sm:$0xf]
    %v1447 = vld [vmem:[%s5 + $0x44] sm:$0xf]
    %v1448 = vld [vmem:[%s5 + $0x48] sm:$0xf]
    %v1449 = vld [vmem:[%s5 + $0x4c] sm:$0xf]
    %v1450 = vld [vmem:[%s5 + $0x50] sm:$0xf]
    %v1451 = vld [vmem:[%s5 + $0x54] sm:$0xf]
    %v1452 = vld [vmem:[%s5 + $0x58] sm:$0xf]
    %v1453 = vld [vmem:[%s5 + $0x5c] sm:$0xf]
    %v1454 = vld [vmem:[%s5 + $0x60] sm:$0xf]
    %v1455 = vld [vmem:[%s5 + $0x64] sm:$0xf]
    %v1456 = vld [vmem:[%s5 + $0x68] sm:$0xf]
    %v1457 = vld [vmem:[%s5 + $0x6c] sm:$0xf]
    %v1458 = vld [vmem:[%s5 + $0x70] sm:$0xf]
    %v1459 = vld [vmem:[%s5 + $0x74] sm:$0xf]
    %v1460 = vld [vmem:[%s5 + $0x78] sm:$0xf]
    %v1461 = vld [vmem:[%s5 + $0x7c] sm:$0xf]
    %v1462 = vld [vmem:[%s5 + $0x80] sm:$0xf]
    %v1463 = vld [vmem:[%s5 + $0x84] sm:$0xf]
    %v1464 = vld [vmem:[%s5 + $0x88] sm:$0xf]
    %v1465 = vld [vmem:[%s5 + $0x8c] sm:$0xf]
    %v1466 = vld [vmem:[%s6] sm:$0x1]
    %v1468 = vlaneseq
    %v1469 = vshrl.u32 %v1468, 7
    %v1470 = vsub.s32 0, %v1469
    %v1471 = vrot.slane %v1466, %v1470
    %v1509 = vunpack.c.l.b16 %v1430
    %v1510 = vunpack.c.l.b16 %v1431
    %v1511 = vunpack.c.l.b16 %v1432
    %v1512 = vunpack.c.l.b16 %v1433
    %v1513 = vunpack.c.l.b16 %v1434
    %v1514 = vunpack.c.l.b16 %v1435
    %v1515 = vunpack.c.l.b16 %v1436
    %v1516 = vunpack.c.l.b16 %v1437
    %v1517 = vunpack.c.l.b16 %v1438
    %v1518 = vunpack.c.l.b16 %v1439
    %v1519 = vunpack.c.l.b16 %v1440
    %v1520 = vunpack.c.l.b16 %v1441
    %v1521 = vunpack.c.l.b16 %v1442
    %v1522 = vunpack.c.l.b16 %v1443
    %v1523 = vunpack.c.l.b16 %v1444
    %v1524 = vunpack.c.l.b16 %v1445
    %v1525 = vunpack.c.l.b16 %v1446
    %v1526 = vunpack.c.l.b16 %v1447
    %v1527 = vunpack.c.l.b16 %v1448
    %v1528 = vunpack.c.l.b16 %v1449
    %v1529 = vunpack.c.l.b16 %v1450
    %v1530 = vunpack.c.l.b16 %v1451
    %v1531 = vunpack.c.l.b16 %v1452
    %v1532 = vunpack.c.l.b16 %v1453
    %v1533 = vunpack.c.l.b16 %v1454
    %v1534 = vunpack.c.l.b16 %v1455
    %v1535 = vunpack.c.l.b16 %v1456
    %v1536 = vunpack.c.l.b16 %v1457
    %v1537 = vunpack.c.l.b16 %v1458
    %v1538 = vunpack.c.l.b16 %v1459
    %v1539 = vunpack.c.l.b16 %v1460
    %v1540 = vunpack.c.l.b16 %v1461
    %v1541 = vunpack.c.l.b16 %v1462
    %v1542 = vunpack.c.l.b16 %v1463
    %v1543 = vunpack.c.l.b16 %v1464
    %v1544 = vunpack.c.l.b16 %v1465
    %v1545 = vpack.c.b16 %v1510, %v1509
    %v1546 = vpack.c.b16 %v1512, %v1511
    %v1547 = vpack.c.b16 %v1514, %v1513
    %v1548 = vpack.c.b16 %v1516, %v1515
    %v1549 = vpack.c.b16 %v1518, %v1517
    %v1550 = vpack.c.b16 %v1520, %v1519
    %v1551 = vpack.c.b16 %v1522, %v1521
    %v1552 = vpack.c.b16 %v1524, %v1523
    %v1553 = vpack.c.b16 %v1526, %v1525
    %v1554 = vpack.c.b16 %v1528, %v1527
    %v1555 = vpack.c.b16 %v1530, %v1529
    %v1556 = vpack.c.b16 %v1532, %v1531
    %v1557 = vpack.c.b16 %v1534, %v1533
    %v1558 = vpack.c.b16 %v1536, %v1535
    %v1559 = vpack.c.b16 %v1538, %v1537
    %v1560 = vpack.c.b16 %v1540, %v1539
    %v1561 = vpack.c.b16 %v1542, %v1541
    %v1562 = vpack.c.b16 %v1544, %v1543
    %v1582 = vsel %vm1229, %v1429, 0
    %1584 = vmatprep.subr.bf16.mxu0 0
    %1585 = vmatpush1.bf16.msra.mxu0 %v1552
    %1586 = vmatprep.subr.bf16.mxu0 0
    %1587 = vmatpush1.bf16.msra.mxu0 %v1551
    %1588 = vmatprep.subr.bf16.mxu0 0
    %1589 = vmatpush1.bf16.msra.mxu0 %v1550
    %1590 = vmatprep.subr.bf16.mxu0 0
    %1591 = vmatpush1.bf16.msra.mxu0 %v1549
    %1592 = vmatprep.subr.bf16.mxu0 0
    %1593 = vmatpush1.bf16.msra.mxu0 %v1548
    %1594 = vmatprep.subr.bf16.mxu0 0
    %1595 = vmatpush1.bf16.msra.mxu0 %v1547
    %1596 = vmatprep.subr.bf16.mxu0 0
    %1597 = vmatpush1.bf16.msra.mxu0 %v1546
    %1598 = vmatprep.subr.bf16.mxu0 0
    %1599 = vmatpush1.bf16.msra.mxu0 %v1545
    %1600 = vmatprep.subr.bf16.mxu0 0
    %1601 = vmatpush2.bf16.msra.mxu0 %v1560
    %1602 = vmatprep.subr.bf16.mxu0 0
    %1603 = vmatpush2.bf16.msra.mxu0 %v1559
    %1604 = vmatprep.subr.bf16.mxu0 0
    %1605 = vmatpush2.bf16.msra.mxu0 %v1558
    %1606 = vmatprep.subr.bf16.mxu0 0
    %1607 = vmatpush2.bf16.msra.mxu0 %v1557
    %1608 = vmatprep.subr.bf16.mxu0 0
    %1609 = vmatpush2.bf16.msra.mxu0 %v1556
    %1610 = vmatprep.subr.bf16.mxu0 0
    %1611 = vmatpush2.bf16.msra.mxu0 %v1555
    %1612 = vmatprep.subr.bf16.mxu0 0
    %1613 = vmatpush2.bf16.msra.mxu0 %v1554
    %1614 = vmatprep.subr.bf16.mxu0 0
    %1615 = vmatpush2.bf16.msra.mxu0 %v1553
    %1616 = vmatprep.mubr.bf16.mxu0 %v1428
    %1617 = vmatmul.mubr.bf16.gmra.mxu0 %v1427
    %v1618 = vpop.f32.mrf.mxu0
    %v1619 = vadd.f32 %v1471, %v1618
    %v1620 = vpop.f32.mrf.mxu0
    %v1621 = vpop.f32.mrf.mxu0
    %v1622 = vpop.f32.mrf.mxu0
    %1623 = vdwg.mxu0
    %1624 = vmatprep.subr.bf16.mxu0 0
    %1625 = vmatpush1.bf16.msra.mxu0 0
    %1626 = vmatprep.subr.bf16.mxu0 0
    %1627 = vmatpush1.bf16.msra.mxu0 0
    %1628 = vmatprep.subr.bf16.mxu0 0
    %1629 = vmatpush1.bf16.msra.mxu0 0
    %1630 = vmatprep.subr.bf16.mxu0 0
    %1631 = vmatpush1.bf16.msra.mxu0 0
    %1632 = vmatprep.subr.bf16.mxu0 0
    %1633 = vmatpush1.bf16.msra.mxu0 0
    %1634 = vmatprep.subr.bf16.mxu0 0
    %1635 = vmatpush1.bf16.msra.mxu0 0
    %1636 = vmatprep.subr.bf16.mxu0 0
    %1637 = vmatpush1.bf16.msra.mxu0 %v1562
    %1638 = vmatprep.subr.bf16.mxu0 0
    %1639 = vmatpush1.bf16.msra.mxu0 %v1561
    %1640 = vmatprep.subr.bf16.mxu0 0
    %1641 = vmatpush2.bf16.msra.mxu0 0
    %1642 = vmatprep.subr.bf16.mxu0 0
    %1643 = vmatpush2.bf16.msra.mxu0 0
    %1644 = vmatprep.subr.bf16.mxu0 0
    %1645 = vmatpush2.bf16.msra.mxu0 0
    %1646 = vmatprep.subr.bf16.mxu0 0
    %1647 = vmatpush2.bf16.msra.mxu0 0
    %1648 = vmatprep.subr.bf16.mxu0 0
    %1649 = vmatpush2.bf16.msra.mxu0 0
    %1650 = vmatprep.subr.bf16.mxu0 0
    %1651 = vmatpush2.bf16.msra.mxu0 0
    %1652 = vmatprep.subr.bf16.mxu0 0
    %1653 = vmatpush2.bf16.msra.mxu0 0
    %1654 = vmatprep.subr.bf16.mxu0 0
    %1655 = vmatpush2.bf16.msra.mxu0 0
    %1656 = vmatprep.mubr.bf16.mxu0 0
    %1657 = vmatmul.mubr.bf16.gmra.mxu0 %v1582
    %v1658 = vpop.f32.mrf.mxu0
    %v1659 = vadd.f32 %v1619, %v1658
    %v1660 = vpop.f32.mrf.mxu0
    %v1661 = vpop.f32.mrf.mxu0
    %v1662 = vpop.f32.mrf.mxu0
    %1663 = vdwg.mxu0
    %v1664 = vmax.f32 %v1659, 0.0
    %1665 = vst.msk [vmem:[#allocation6] sm:$0x1] %vm1235, %v1664
    %vm1666 = vcmask 254977
    %1667 = vst.msk [vmem:[#allocation6] sm:$0x2] %vm1666, %v1664
    %v1668 = vld [vmem:[#allocation6] sm:$0x3]
    %v1669 = vpack.c.bf16 %v1668, %v1668
    %v1670 = vld [vmem:[%s7] sm:$0xf]
    %v1671 = vld [vmem:[%s7 + $0x4] sm:$0xf]
    %v1672 = vld [vmem:[%s7 + $0x8] sm:$0xf]
    %v1673 = vld [vmem:[%s7 + $0xc] sm:$0xf]
    %v1674 = vld [vmem:[%s8] sm:$0x1]
    %v1676 = vlaneseq
    %v1677 = vshrl.u32 %v1676, 7
    %v1678 = vsub.s32 0, %v1677
    %v1679 = vrot.slane %v1674, %v1678
    %v1685 = vunpack.c.l.b16 %v1670
    %v1686 = vunpack.c.l.b16 %v1671
    %v1687 = vunpack.c.l.b16 %v1672
    %v1688 = vunpack.c.l.b16 %v1673
    %v1689 = vpack.c.b16 %v1686, %v1685
    %v1690 = vpack.c.b16 %v1688, %v1687
    %v1694 = vsel %vm1229, %v1669, 0
    %1696 = vmatprep.subr.bf16.mxu0 0
    %1697 = vmatpush1.bf16.msra.mxu0 0
    %1698 = vmatprep.subr.bf16.mxu0 0
    %1699 = vmatpush1.bf16.msra.mxu0 0
    %1700 = vmatprep.subr.bf16.mxu0 0
    %1701 = vmatpush1.bf16.msra.mxu0 0
    %1702 = vmatprep.subr.bf16.mxu0 0
    %1703 = vmatpush1.bf16.msra.mxu0 0
    %1704 = vmatprep.subr.bf16.mxu0 0
    %1705 = vmatpush1.bf16.msra.mxu0 0
    %1706 = vmatprep.subr.bf16.mxu0 0
    %1707 = vmatpush1.bf16.msra.mxu0 0
    %1708 = vmatprep.subr.bf16.mxu0 0
    %1709 = vmatpush1.bf16.msra.mxu0 %v1690
    %1710 = vmatprep.subr.bf16.mxu0 0
    %1711 = vmatpush1.bf16.msra.mxu0 %v1689
    %1712 = vmatprep.subr.bf16.mxu0 0
    %1713 = vmatpush2.bf16.msra.mxu0 0
    %1714 = vmatprep.subr.bf16.mxu0 0
    %1715 = vmatpush2.bf16.msra.mxu0 0
    %1716 = vmatprep.subr.bf16.mxu0 0
    %1717 = vmatpush2.bf16.msra.mxu0 0
    %1718 = vmatprep.subr.bf16.mxu0 0
    %1719 = vmatpush2.bf16.msra.mxu0 0
    %1720 = vmatprep.subr.bf16.mxu0 0
    %1721 = vmatpush2.bf16.msra.mxu0 0
    %1722 = vmatprep.subr.bf16.mxu0 0
    %1723 = vmatpush2.bf16.msra.mxu0 0
    %1724 = vmatprep.subr.bf16.mxu0 0
    %1725 = vmatpush2.bf16.msra.mxu0 0
    %1726 = vmatprep.subr.bf16.mxu0 0
    %1727 = vmatpush2.bf16.msra.mxu0 0
    %1728 = vmatprep.mubr.bf16.mxu0 0
    %1729 = vmatmul.mubr.bf16.gmra.mxu0 %v1694
    %v1730 = vpop.f32.mrf.mxu0
    %v1731 = vadd.f32 %v1679, %v1730
    %v1732 = vpop.f32.mrf.mxu0
    %v1733 = vpop.f32.mrf.mxu0
    %v1734 = vpop.f32.mrf.mxu0
    %1735 = vdwg.mxu0
    %vm1736 = vcmask 25600
    %1737 = vst.msk [vmem:[#allocation7] sm:$0x3] %vm1736, %v1731
    // Predicated region
    $region38: #{dcqn_forward.1} parent=1 // pred_check
      _
    $region39: #{dcqn_forward.1} parent=1 // pred_check_branch
      %1739 = sbr.rel (0) target = $region41
    $region40: #{dcqn_forward.1} parent=1 // pred_region
      %s1741 = ssub.s32 32, 32
      %1742 = vsyncadd [#allocation8], %s1741
      %s1744 = sshll.u32 [#allocation7], 4
      %s1745 = int_to_ptr.vmem [resolvable:$true] %s1744
      %1747 = dma.vmem_to_hbm [thread:$0]  %s1745, 32, %s9, [#allocation8]
    $region41: #{dcqn_forward.1} parent=1 // pred_fallthru
      _
    // Predicated region
    $region42: #{dcqn_forward.1} parent=1 // pred_check
      _
    $region43: #{dcqn_forward.1} parent=1 // pred_check_branch
      %1749 = sbr.rel (0) target = $region45
    $region44: #{dcqn_forward.1} parent=1 // pred_region
      %1750 = dma.done [#allocation8], 32
    $region45: #{dcqn_forward.1} parent=1 // pred_fallthru
      _
    %1751 = vsyncpa [#allocation8], 1

</llo_original>
